<compile_context>
chip_gen: v6e
topology: v6e:2x2x1
jax: 0.10.0
libtpu: 0.0.40
codegen_flags: <defaults>
</compile_context>

<pallas_src>
import math

import jax
import jax.numpy as jnp
from jax.experimental import pallas as pl
from jax.experimental.pallas import tpu as pltpu

NUM_HEADS = 2
NUM_EXPERTS = 2
OUT_DIM = 2            # start/end logits
OUT_PAD = 128          # lane width of the padded final matmul (VMEM-only)
MXU_DTYPE = jnp.bfloat16   # MXU operand dtype; accumulation stays float32
IN_DTYPE = jnp.bfloat16    # streamed activation dtype (halves input HBM bytes)


def _softmax_last(x):
    """f32 softmax; divide goes to the EUP approx-reciprocal path."""
    m = jnp.max(x, axis=-1, keepdims=True)
    e = jnp.exp(x - m)
    return e * pl.reciprocal(jnp.sum(e, axis=-1, keepdims=True), approx=True)


def _mxu_dot(a, b):
    return jnp.dot(a.astype(MXU_DTYPE), b.astype(MXU_DTYPE),
                   preferred_element_type=jnp.float32)


def enhanced_qa_kernel(x_ref, pos_ref,
                       wqkv_ref, bqkv_ref, wo_ref, bo_ref,
                       weg_ref, beg_ref,
                       lng_ref, lnb_ref, w1_ref, b1_ref, w2_ref, b2_ref,
                       out_ref):
    x = x_ref[...].astype(jnp.float32)              # (Bt, S, H), streamed bf16
    Bt, S, H = x.shape
    dh = H // NUM_HEADS
    E = NUM_EXPERTS

    # --- LearnablePositionalEncoding: x + pos[:S] ---
    x = x + pos_ref[...]                            # (S, H) broadcasts over Bt
    xr = x.reshape(Bt * S, H)

    # --- MultiHeadDynamicAttention: fused QKV; single bf16 downcast ---
    qkv = (_mxu_dot(xr, wqkv_ref[...]) + bqkv_ref[...]).astype(MXU_DTYPE)
    q = qkv[:, 0 * H:1 * H].reshape(Bt, S, H)
    k = qkv[:, 1 * H:2 * H].reshape(Bt, S, H)
    v = qkv[:, 2 * H:3 * H].reshape(Bt, S, H)

    scale = 1.0 / math.sqrt(dh)
    # Per-head output projection accumulated over the head's K-slice of wo:
    # no lane-concat of head contexts, no (Bt*S, H) context intermediate.
    a = bo_ref[...].astype(jnp.float32)             # (1, H), broadcasts on add
    for h in range(NUM_HEADS):                      # static, NUM_HEADS == 2
        sl = slice(h * dh, (h + 1) * dh)
        scores = jnp.einsum('bqd,bkd->bqk', q[..., sl], k[..., sl],
                            preferred_element_type=jnp.float32) * scale
        probs = _softmax_last(scores).astype(MXU_DTYPE)          # (Bt, S, S)
        ctx_h = jnp.einsum('bqk,bkd->bqd', probs, v[..., sl],
                           preferred_element_type=jnp.float32)   # (Bt, S, dh)
        a = a + _mxu_dot(ctx_h.reshape(Bt * S, dh), wo_ref[sl, :])

    # --- MoELayer: experts + gate fused into ONE matmul ---
    exg = _mxu_dot(a, weg_ref[...]) + beg_ref[...]    # (Bt*S, E*H + E) f32
    gate = _softmax_last(exg[:, E * H:E * H + E])     # softmax over real cols
    moe = gate[:, 0:1] * exg[:, 0:H]
    for e in range(1, E):
        moe = moe + gate[:, e:e + 1] * exg[:, e * H:(e + 1) * H]

    # --- qa_outputs: LayerNorm -> Linear(H, H//2) -> ReLU -> Linear ---
    mu = jnp.mean(moe, axis=-1, keepdims=True)
    var = jnp.mean(jnp.square(moe - mu), axis=-1, keepdims=True)
    xn = (moe - mu) * jax.lax.rsqrt(var + 1e-5)
    xn = xn * lng_ref[...] + lnb_ref[...]

    h1 = jnp.maximum(_mxu_dot(xn, w1_ref[...]) + b1_ref[...], 0.0)
    logits = _mxu_dot(h1, w2_ref[...]) + b2_ref[...]  # (Bt*S, OUT_PAD), VMEM

    # Store only the 2 real logit columns, tokens on the lane axis:
    # (Bt, OUT_DIM, S) — lane-dense when S % 128 == 0, and 64x fewer bytes
    # than the old padded (Bt, S, 128) writeback.
    lt = logits[:, :OUT_DIM].reshape(Bt, S, OUT_DIM)
    out_ref[...] = jnp.transpose(lt, (0, 2, 1))


def _vmem_limit_bytes():
    """~0.75x physical VMEM: ~96 MiB on v5e/v6e (128 MiB), ~48 MiB on v7x."""
    try:
        cap = int(pltpu.get_tpu_info().vmem_capacity_bytes)
    except Exception:
        cap = 64 * 1024 * 1024
    return int(cap * 3 // 4)


def _pick_batch_tile(B, S, H, vmem_limit_bytes, weight_bytes):
    """Sequences per grid step, from a VMEM intermediate budget, with >=4
    programs when B allows (2 per TensorCore on v7x so DMA overlaps compute)."""
    E = NUM_EXPERTS
    # Rough per-sequence live intermediate bytes inside the kernel.
    per_seq = (4 * S * (H + 3 * H + H + H + (E * H + E) + H + H + H // 2 + OUT_PAD)
               + 2 * S * 3 * H                          # bf16 qkv copy
               + NUM_HEADS * S * S * (4 + 2))           # scores f32 + probs bf16
    budget = max(1, (vmem_limit_bytes - 2 * weight_bytes) // 3)
    bt = max(1, min(B, budget // max(per_seq, 1)))
    if B >= 4:
        bt = min(bt, B // 4)
    elif B >= 2:
        bt = min(bt, B // 2)
    bt = max(bt, 1)
    while B % bt:
        bt -= 1
    return bt


def _weight_spec(a, single_buffer):
    """Grid-resident weight block: constant index map; single-buffered when
    supported (constant blocks need no double buffer)."""
    nd = a.ndim
    imap = lambda b, _nd=nd: (0,) * _nd
    if single_buffer:
        return pl.BlockSpec(a.shape, imap, pipeline_mode=pl.Buffered(1))
    return pl.BlockSpec(a.shape, imap)


def init_params(key, hidden_size, max_len=512):
    H = hidden_size
    ks = jax.random.split(key, 20)

    def lin_w(k, fan_in, shape):
        bound = 1.0 / math.sqrt(fan_in)
        return jax.random.uniform(k, shape, jnp.float32, -bound, bound)

    return {
        "pos": 0.02 * jax.random.normal(ks[0], (max_len, H), jnp.float32),
        "wq": lin_w(ks[1], H, (H, H)), "bq": lin_w(ks[2], H, (1, H)),
        "wk": lin_w(ks[3], H, (H, H)), "bk": lin_w(ks[4], H, (1, H)),
        "wv": lin_w(ks[5], H, (H, H)), "bv": lin_w(ks[6], H, (1, H)),
        "wo": lin_w(ks[7], H, (H, H)), "bo": lin_w(ks[8], H, (1, H)),
        "wg": lin_w(ks[9], H, (H, NUM_EXPERTS)),
        "bg": lin_w(ks[10], H, (1, NUM_EXPERTS)),
        "we": lin_w(ks[11], H, (NUM_EXPERTS, H, H)),
        "be": lin_w(ks[12], H, (NUM_EXPERTS, 1, H)),
        "lng": jnp.ones((1, H), jnp.float32),
        "lnb": jnp.zeros((1, H), jnp.float32),
        "w1": lin_w(ks[13], H, (H, H // 2)),
        "b1": lin_w(ks[14], H, (1, H // 2)),
        "w2": lin_w(ks[15], H // 2, (H // 2, OUT_DIM)),
        "b2": lin_w(ks[16], H // 2, (1, OUT_DIM)),
        # stand-in backbone embedding table (see TODO at top)
        "embed": 0.02 * jax.random.normal(ks[17], (100, H), jnp.float32),
    }


def enhanced_qa_forward(sequence_output, params):
    B, S, H = sequence_output.shape
    E = NUM_EXPERTS
    to_mxu = lambda w: w.astype(MXU_DTYPE)

    # Fused / padded weights (built once in the wrapper, outside the kernel).
    pos = params["pos"][:S].astype(jnp.float32)                          # (S, H)
    wqkv = to_mxu(jnp.concatenate(
        [params["wq"], params["wk"], params["wv"]], axis=1))             # (H, 3H)
    bqkv = jnp.concatenate([params["bq"], params["bk"], params["bv"]], axis=1)
    wo, bo = to_mxu(params["wo"]), params["bo"]
    # Experts + gate fused into one (H, E*H + E) operand.
    weg = to_mxu(jnp.concatenate(
        [params["we"][e] for e in range(E)] + [params["wg"]], axis=1))
    beg = jnp.concatenate(
        [params["be"][e] for e in range(E)] + [params["bg"]], axis=1)
    lng, lnb = params["lng"], params["lnb"]
    w1, b1 = to_mxu(params["w1"]), params["b1"]
    w2 = to_mxu(jnp.zeros((H // 2, OUT_PAD), jnp.float32)
                .at[:, :OUT_DIM].set(params["w2"]))
    b2 = jnp.zeros((1, OUT_PAD), jnp.float32).at[:, :OUT_DIM].set(params["b2"])

    weights = [pos, wqkv, bqkv, wo, bo, weg, beg, lng, lnb, w1, b1, w2, b2]
    weight_bytes = int(sum(int(w.size) * w.dtype.itemsize for w in weights))

    vmem_limit = _vmem_limit_bytes()
    Bt = _pick_batch_tile(B, S, H, vmem_limit, weight_bytes)
    grid = (B // Bt,)

    x_in = sequence_output.astype(IN_DTYPE)          # stream activations bf16

    # Advisory cost estimate so XLA schedules surrounding ops sensibly.
    dh = H // NUM_HEADS
    flops = 2 * B * S * (3 * H * H + NUM_HEADS * 2 * S * dh + H * H
                         + E * H * H + H * E + H * (H // 2)
                         + (H // 2) * OUT_PAD)
    transcendentals = B * S * (NUM_HEADS * S + E)
    bytes_accessed = (x_in.size * x_in.dtype.itemsize
                      + 4 * B * OUT_DIM * S + weight_bytes)

    def build(single_buffer_weights):
        in_specs = ([pl.BlockSpec((Bt, S, H), lambda b: (b, 0, 0))]
                    + [_weight_spec(w, single_buffer_weights) for w in weights])
        out_spec = pl.BlockSpec((Bt, OUT_DIM, S), lambda b: (b, 0, 0))
        return pl.pallas_call(
            enhanced_qa_kernel,
            out_shape=jax.ShapeDtypeStruct((B, OUT_DIM, S), jnp.float32),
            grid_spec=pltpu.PrefetchScalarGridSpec(
                num_scalar_prefetch=0,
                grid=grid,
                in_specs=in_specs,
                out_specs=out_spec,
            ),
            compiler_params=pltpu.CompilerParams(
                dimension_semantics=("parallel",),
                vmem_limit_bytes=vmem_limit,
            ),
            cost_estimate=pl.CostEstimate(
                flops=int(flops),
                transcendentals=int(transcendentals),
                bytes_accessed=int(bytes_accessed),
            ),
        )

    try:
        out = build(True)(x_in, *weights)
    except Exception:
        # Fallback for Pallas versions without pipeline_mode / pl.Buffered(1).
        out = build(False)(x_in, *weights)

    # (B, OUT_DIM, S) -> (B, S, OUT_DIM); tiny re-layout handled by XLA.
    return jnp.transpose(out, (0, 2, 1))


if __name__ == "__main__":
    B, S, H = 2, 8, 32
    key = jax.random.PRNGKey(0)
    k_param, k_ids = jax.random.split(key)

    params = init_params(k_param, H)

    # Module forward inputs.
    input_ids = jax.random.randint(k_ids, (B, S), 0, 100)
    attention_mask = jnp.ones((B, S), jnp.int32)  # consumed only by the backbone

    # Backbone stand-in (plain-JAX glue): last_hidden_state = embed[input_ids]
    sequence_output = params["embed"][input_ids]   # (B, S, H)

    logits = enhanced_qa_forward(sequence_output, params)
    jax.block_until_ready(logits)
    assert logits.shape == (B, S, 2) and logits.dtype == jnp.float32
    print("KERNEL_OK")
</pallas_src>

<mosaic_0001>
module attributes {stable_mosaic.version = 11 : i64} {
  func.func @enhanced_qa_kernel(%arg0: i32, %arg1: memref<1x8x32xbf16, #tpu.memory_space<vmem>>, %arg2: memref<8x32xf32, #tpu.memory_space<vmem>>, %arg3: memref<32x96xbf16, #tpu.memory_space<vmem>>, %arg4: memref<1x96xf32, #tpu.memory_space<vmem>>, %arg5: memref<32x32xbf16, #tpu.memory_space<vmem>>, %arg6: memref<1x32xf32, #tpu.memory_space<vmem>>, %arg7: memref<32x66xbf16, #tpu.memory_space<vmem>>, %arg8: memref<1x66xf32, #tpu.memory_space<vmem>>, %arg9: memref<1x32xf32, #tpu.memory_space<vmem>>, %arg10: memref<1x32xf32, #tpu.memory_space<vmem>>, %arg11: memref<32x16xbf16, #tpu.memory_space<vmem>>, %arg12: memref<1x16xf32, #tpu.memory_space<vmem>>, %arg13: memref<16x128xbf16, #tpu.memory_space<vmem>>, %arg14: memref<1x128xf32, #tpu.memory_space<vmem>>, %arg15: memref<1x2x8xf32, #tpu.memory_space<vmem>>) attributes {dimension_semantics = [#tpu.dimension_semantics<parallel>], iteration_bounds = array<i64: 2>, scalar_prefetch = 0 : i64, scratch_operands = 0 : i64, tpu.core_type = #tpu.core_type<tc>, window_params = [{transform_indices = @transform_0, window_bounds = array<i64: 1, 8, 32>}, {pipeline_mode = #tpu.pipeline_mode<synchronous>, transform_indices = @transform_1, window_bounds = array<i64: 8, 32>}, {pipeline_mode = #tpu.pipeline_mode<synchronous>, transform_indices = @transform_2, window_bounds = array<i64: 32, 96>}, {pipeline_mode = #tpu.pipeline_mode<synchronous>, transform_indices = @transform_3, window_bounds = array<i64: 1, 96>}, {pipeline_mode = #tpu.pipeline_mode<synchronous>, transform_indices = @transform_4, window_bounds = array<i64: 32, 32>}, {pipeline_mode = #tpu.pipeline_mode<synchronous>, transform_indices = @transform_5, window_bounds = array<i64: 1, 32>}, {pipeline_mode = #tpu.pipeline_mode<synchronous>, transform_indices = @transform_6, window_bounds = array<i64: 32, 66>}, {pipeline_mode = #tpu.pipeline_mode<synchronous>, transform_indices = @transform_7, window_bounds = array<i64: 1, 66>}, {pipeline_mode = #tpu.pipeline_mode<synchronous>, transform_indices = @transform_8, window_bounds = array<i64: 1, 32>}, {pipeline_mode = #tpu.pipeline_mode<synchronous>, transform_indices = @transform_9, window_bounds = array<i64: 1, 32>}, {pipeline_mode = #tpu.pipeline_mode<synchronous>, transform_indices = @transform_10, window_bounds = array<i64: 32, 16>}, {pipeline_mode = #tpu.pipeline_mode<synchronous>, transform_indices = @transform_11, window_bounds = array<i64: 1, 16>}, {pipeline_mode = #tpu.pipeline_mode<synchronous>, transform_indices = @transform_12, window_bounds = array<i64: 16, 128>}, {pipeline_mode = #tpu.pipeline_mode<synchronous>, transform_indices = @transform_13, window_bounds = array<i64: 1, 128>}, {transform_indices = @transform_14, window_bounds = array<i64: 1, 2, 8>}]} {
    %c0 = arith.constant 0 : index
    %c0_0 = arith.constant 0 : index
    %c0_1 = arith.constant 0 : index
    %0 = vector.load %arg1[%c0, %c0_0, %c0_1] : memref<1x8x32xbf16, #tpu.memory_space<vmem>>, vector<1x8x32xbf16>
    %1 = arith.extf %0 : vector<1x8x32xbf16> to vector<1x8x32xf32>
    %c0_2 = arith.constant 0 : index
    %c0_3 = arith.constant 0 : index
    %2 = vector.load %arg2[%c0_2, %c0_3] : memref<8x32xf32, #tpu.memory_space<vmem>>, vector<8x32xf32>
    %3 = vector.shape_cast %2 : vector<8x32xf32> to vector<1x8x32xf32>
    %4 = arith.addf %1, %3 : vector<1x8x32xf32>
    %5 = vector.shape_cast %4 : vector<1x8x32xf32> to vector<8x32xf32>
    %c0_4 = arith.constant 0 : index
    %c0_5 = arith.constant 0 : index
    %6 = vector.load %arg3[%c0_4, %c0_5] : memref<32x96xbf16, #tpu.memory_space<vmem>>, vector<32x96xbf16>
    %7 = arith.truncf %5 : vector<8x32xf32> to vector<8x32xbf16>
    %cst = arith.constant dense<0.000000e+00> : vector<8x96xf32>
    %8 = tpu.matmul %7, %6, %cst {dimension_numbers = #tpu.dot_dimension_numbers<[1], [0], [0], [1], [0, 0, 1, 1], [], []>} : vector<8x32xbf16>, vector<32x96xbf16>, vector<8x96xf32> -> vector<8x96xf32>
    %c0_6 = arith.constant 0 : index
    %c0_7 = arith.constant 0 : index
    %9 = vector.load %arg4[%c0_6, %c0_7] : memref<1x96xf32, #tpu.memory_space<vmem>>, vector<1x96xf32>
    %10 = vector.broadcast %9 : vector<1x96xf32> to vector<8x96xf32>
    %11 = arith.addf %8, %10 : vector<8x96xf32>
    %12 = arith.truncf %11 : vector<8x96xf32> to vector<8x96xbf16>
    %13 = vector.extract_strided_slice %12 {offsets = [0, 0], sizes = [8, 32], strides = [1, 1]} : vector<8x96xbf16> to vector<8x32xbf16>
    %14 = vector.shape_cast %13 : vector<8x32xbf16> to vector<1x8x32xbf16>
    %15 = vector.extract_strided_slice %12 {offsets = [0, 32], sizes = [8, 32], strides = [1, 1]} : vector<8x96xbf16> to vector<8x32xbf16>
    %16 = vector.shape_cast %15 : vector<8x32xbf16> to vector<1x8x32xbf16>
    %17 = vector.extract_strided_slice %12 {offsets = [0, 64], sizes = [8, 32], strides = [1, 1]} : vector<8x96xbf16> to vector<8x32xbf16>
    %18 = vector.shape_cast %17 : vector<8x32xbf16> to vector<1x8x32xbf16>
    %c0_8 = arith.constant 0 : index
    %c0_9 = arith.constant 0 : index
    %19 = vector.load %arg6[%c0_8, %c0_9] : memref<1x32xf32, #tpu.memory_space<vmem>>, vector<1x32xf32>
    %20 = vector.extract_strided_slice %14 {offsets = [0, 0, 0], sizes = [1, 8, 16], strides = [1, 1, 1]} : vector<1x8x32xbf16> to vector<1x8x16xbf16>
    %21 = vector.extract_strided_slice %16 {offsets = [0, 0, 0], sizes = [1, 8, 16], strides = [1, 1, 1]} : vector<1x8x32xbf16> to vector<1x8x16xbf16>
    "tpu.trace_start"() <{level = 10 : i32, message = "bqd,bkd->bqk"}> : () -> ()
    %cst_10 = arith.constant dense<0.000000e+00> : vector<1x8x8xf32>
    %22 = tpu.matmul %20, %21, %cst_10 {dimension_numbers = #tpu.dot_dimension_numbers<[2], [2], [1], [1], [0, 0, 0, 1, 1, 1], [0], [0]>} : vector<1x8x16xbf16>, vector<1x8x16xbf16>, vector<1x8x8xf32> -> vector<1x8x8xf32>
    "tpu.trace_stop"() : () -> ()
    %cst_11 = arith.constant 2.500000e-01 : f32
    %23 = vector.broadcast %cst_11 : f32 to vector<1x8x8xf32>
    %24 = arith.mulf %22, %23 : vector<1x8x8xf32>
    %cst_12 = arith.constant dense<0xFF800000> : vector<1x8xf32>
    %25 = vector.multi_reduction <maximumf>, %24, %cst_12 [2] : vector<1x8x8xf32> to vector<1x8xf32>
    %26 = vector.shape_cast %25 : vector<1x8xf32> to vector<1x8x1xf32>
    %27 = vector.broadcast %26 : vector<1x8x1xf32> to vector<1x8x8xf32>
    %28 = arith.subf %24, %27 : vector<1x8x8xf32>
    %29 = math.exp %28 : vector<1x8x8xf32>
    %cst_13 = arith.constant dense<0.000000e+00> : vector<1x8xf32>
    %30 = vector.multi_reduction <add>, %29, %cst_13 [2] : vector<1x8x8xf32> to vector<1x8xf32>
    %31 = vector.shape_cast %30 : vector<1x8xf32> to vector<1x8x1xf32>
    %32 = tpu.reciprocal %31 {approx = true} : vector<1x8x1xf32> -> vector<1x8x1xf32>
    %33 = vector.broadcast %32 : vector<1x8x1xf32> to vector<1x8x8xf32>
    %34 = arith.mulf %29, %33 : vector<1x8x8xf32>
    %35 = arith.truncf %34 : vector<1x8x8xf32> to vector<1x8x8xbf16>
    %36 = vector.extract_strided_slice %18 {offsets = [0, 0, 0], sizes = [1, 8, 16], strides = [1, 1, 1]} : vector<1x8x32xbf16> to vector<1x8x16xbf16>
    "tpu.trace_start"() <{level = 10 : i32, message = "bqk,bkd->bqd"}> : () -> ()
    %cst_14 = arith.constant dense<0.000000e+00> : vector<1x8x16xf32>
    %37 = tpu.matmul %35, %36, %cst_14 {dimension_numbers = #tpu.dot_dimension_numbers<[2], [1], [1], [2], [0, 0, 0, 1, 1, 2], [0], [0]>} : vector<1x8x8xbf16>, vector<1x8x16xbf16>, vector<1x8x16xf32> -> vector<1x8x16xf32>
    "tpu.trace_stop"() : () -> ()
    %38 = vector.shape_cast %37 : vector<1x8x16xf32> to vector<8x16xf32>
    %c0_15 = arith.constant 0 : index
    %c0_16 = arith.constant 0 : index
    %39 = vector.load %arg5[%c0_15, %c0_16] : memref<32x32xbf16, #tpu.memory_space<vmem>>, vector<16x32xbf16>
    %40 = arith.truncf %38 : vector<8x16xf32> to vector<8x16xbf16>
    %cst_17 = arith.constant dense<0.000000e+00> : vector<8x32xf32>
    %41 = tpu.matmul %40, %39, %cst_17 {dimension_numbers = #tpu.dot_dimension_numbers<[1], [0], [0], [1], [0, 0, 1, 1], [], []>} : vector<8x16xbf16>, vector<16x32xbf16>, vector<8x32xf32> -> vector<8x32xf32>
    %42 = vector.broadcast %19 : vector<1x32xf32> to vector<8x32xf32>
    %43 = arith.addf %42, %41 : vector<8x32xf32>
    %44 = vector.extract_strided_slice %14 {offsets = [0, 0, 16], sizes = [1, 8, 16], strides = [1, 1, 1]} : vector<1x8x32xbf16> to vector<1x8x16xbf16>
    %45 = vector.extract_strided_slice %16 {offsets = [0, 0, 16], sizes = [1, 8, 16], strides = [1, 1, 1]} : vector<1x8x32xbf16> to vector<1x8x16xbf16>
    "tpu.trace_start"() <{level = 10 : i32, message = "bqd,bkd->bqk"}> : () -> ()
    %cst_18 = arith.constant dense<0.000000e+00> : vector<1x8x8xf32>
    %46 = tpu.matmul %44, %45, %cst_18 {dimension_numbers = #tpu.dot_dimension_numbers<[2], [2], [1], [1], [0, 0, 0, 1, 1, 1], [0], [0]>} : vector<1x8x16xbf16>, vector<1x8x16xbf16>, vector<1x8x8xf32> -> vector<1x8x8xf32>
    "tpu.trace_stop"() : () -> ()
    %cst_19 = arith.constant 2.500000e-01 : f32
    %47 = vector.broadcast %cst_19 : f32 to vector<1x8x8xf32>
    %48 = arith.mulf %46, %47 : vector<1x8x8xf32>
    %cst_20 = arith.constant dense<0xFF800000> : vector<1x8xf32>
    %49 = vector.multi_reduction <maximumf>, %48, %cst_20 [2] : vector<1x8x8xf32> to vector<1x8xf32>
    %50 = vector.shape_cast %49 : vector<1x8xf32> to vector<1x8x1xf32>
    %51 = vector.broadcast %50 : vector<1x8x1xf32> to vector<1x8x8xf32>
    %52 = arith.subf %48, %51 : vector<1x8x8xf32>
    %53 = math.exp %52 : vector<1x8x8xf32>
    %cst_21 = arith.constant dense<0.000000e+00> : vector<1x8xf32>
    %54 = vector.multi_reduction <add>, %53, %cst_21 [2] : vector<1x8x8xf32> to vector<1x8xf32>
    %55 = vector.shape_cast %54 : vector<1x8xf32> to vector<1x8x1xf32>
    %56 = tpu.reciprocal %55 {approx = true} : vector<1x8x1xf32> -> vector<1x8x1xf32>
    %57 = vector.broadcast %56 : vector<1x8x1xf32> to vector<1x8x8xf32>
    %58 = arith.mulf %53, %57 : vector<1x8x8xf32>
    %59 = arith.truncf %58 : vector<1x8x8xf32> to vector<1x8x8xbf16>
    %60 = vector.extract_strided_slice %18 {offsets = [0, 0, 16], sizes = [1, 8, 16], strides = [1, 1, 1]} : vector<1x8x32xbf16> to vector<1x8x16xbf16>
    "tpu.trace_start"() <{level = 10 : i32, message = "bqk,bkd->bqd"}> : () -> ()
    %cst_22 = arith.constant dense<0.000000e+00> : vector<1x8x16xf32>
    %61 = tpu.matmul %59, %60, %cst_22 {dimension_numbers = #tpu.dot_dimension_numbers<[2], [1], [1], [2], [0, 0, 0, 1, 1, 2], [0], [0]>} : vector<1x8x8xbf16>, vector<1x8x16xbf16>, vector<1x8x16xf32> -> vector<1x8x16xf32>
    "tpu.trace_stop"() : () -> ()
    %62 = vector.shape_cast %61 : vector<1x8x16xf32> to vector<8x16xf32>
    %c16 = arith.constant 16 : index
    %c0_23 = arith.constant 0 : index
    %63 = vector.load %arg5[%c16, %c0_23] : memref<32x32xbf16, #tpu.memory_space<vmem>>, vector<16x32xbf16>
    %64 = arith.truncf %62 : vector<8x16xf32> to vector<8x16xbf16>
    %cst_24 = arith.constant dense<0.000000e+00> : vector<8x32xf32>
    %65 = tpu.matmul %64, %63, %cst_24 {dimension_numbers = #tpu.dot_dimension_numbers<[1], [0], [0], [1], [0, 0, 1, 1], [], []>} : vector<8x16xbf16>, vector<16x32xbf16>, vector<8x32xf32> -> vector<8x32xf32>
    %66 = arith.addf %43, %65 : vector<8x32xf32>
    %c0_25 = arith.constant 0 : index
    %c0_26 = arith.constant 0 : index
    %67 = vector.load %arg7[%c0_25, %c0_26] : memref<32x66xbf16, #tpu.memory_space<vmem>>, vector<32x66xbf16>
    %68 = arith.truncf %66 : vector<8x32xf32> to vector<8x32xbf16>
    %cst_27 = arith.constant dense<0.000000e+00> : vector<8x66xf32>
    %69 = tpu.matmul %68, %67, %cst_27 {dimension_numbers = #tpu.dot_dimension_numbers<[1], [0], [0], [1], [0, 0, 1, 1], [], []>} : vector<8x32xbf16>, vector<32x66xbf16>, vector<8x66xf32> -> vector<8x66xf32>
    %c0_28 = arith.constant 0 : index
    %c0_29 = arith.constant 0 : index
    %70 = vector.load %arg8[%c0_28, %c0_29] : memref<1x66xf32, #tpu.memory_space<vmem>>, vector<1x66xf32>
    %71 = vector.broadcast %70 : vector<1x66xf32> to vector<8x66xf32>
    %72 = arith.addf %69, %71 : vector<8x66xf32>
    %73 = vector.extract_strided_slice %72 {offsets = [0, 64], sizes = [8, 2], strides = [1, 1]} : vector<8x66xf32> to vector<8x2xf32>
    %cst_30 = arith.constant dense<0xFF800000> : vector<8xf32>
    %74 = vector.multi_reduction <maximumf>, %73, %cst_30 [1] : vector<8x2xf32> to vector<8xf32>
    %75 = vector.shape_cast %74 : vector<8xf32> to vector<8x1xf32>
    %76 = vector.broadcast %75 : vector<8x1xf32> to vector<8x2xf32>
    %77 = arith.subf %73, %76 : vector<8x2xf32>
    %78 = math.exp %77 : vector<8x2xf32>
    %cst_31 = arith.constant dense<0.000000e+00> : vector<8xf32>
    %79 = vector.multi_reduction <add>, %78, %cst_31 [1] : vector<8x2xf32> to vector<8xf32>
    %80 = vector.shape_cast %79 : vector<8xf32> to vector<8x1xf32>
    %81 = tpu.reciprocal %80 {approx = true} : vector<8x1xf32> -> vector<8x1xf32>
    %82 = vector.broadcast %81 : vector<8x1xf32> to vector<8x2xf32>
    %83 = arith.mulf %78, %82 : vector<8x2xf32>
    %84 = vector.extract_strided_slice %83 {offsets = [0, 0], sizes = [8, 1], strides = [1, 1]} : vector<8x2xf32> to vector<8x1xf32>
    %85 = vector.extract_strided_slice %72 {offsets = [0, 0], sizes = [8, 32], strides = [1, 1]} : vector<8x66xf32> to vector<8x32xf32>
    %86 = vector.broadcast %84 : vector<8x1xf32> to vector<8x32xf32>
    %87 = arith.mulf %86, %85 : vector<8x32xf32>
    %88 = vector.extract_strided_slice %83 {offsets = [0, 1], sizes = [8, 1], strides = [1, 1]} : vector<8x2xf32> to vector<8x1xf32>
    %89 = vector.extract_strided_slice %72 {offsets = [0, 32], sizes = [8, 32], strides = [1, 1]} : vector<8x66xf32> to vector<8x32xf32>
    %90 = vector.broadcast %88 : vector<8x1xf32> to vector<8x32xf32>
    %91 = arith.mulf %90, %89 : vector<8x32xf32>
    %92 = arith.addf %87, %91 : vector<8x32xf32>
    %cst_32 = arith.constant dense<0.000000e+00> : vector<8xf32>
    %93 = vector.multi_reduction <add>, %92, %cst_32 [1] : vector<8x32xf32> to vector<8xf32>
    %94 = vector.shape_cast %93 : vector<8xf32> to vector<8x1xf32>
    %cst_33 = arith.constant 3.200000e+01 : f32
    %95 = vector.broadcast %cst_33 : f32 to vector<8x1xf32>
    %96 = arith.divf %94, %95 : vector<8x1xf32>
    %97 = vector.broadcast %96 : vector<8x1xf32> to vector<8x32xf32>
    %98 = arith.subf %92, %97 : vector<8x32xf32>
    %99 = arith.mulf %98, %98 : vector<8x32xf32>
    %cst_34 = arith.constant dense<0.000000e+00> : vector<8xf32>
    %100 = vector.multi_reduction <add>, %99, %cst_34 [1] : vector<8x32xf32> to vector<8xf32>
    %101 = vector.shape_cast %100 : vector<8xf32> to vector<8x1xf32>
    %cst_35 = arith.constant 3.200000e+01 : f32
    %102 = vector.broadcast %cst_35 : f32 to vector<8x1xf32>
    %103 = arith.divf %101, %102 : vector<8x1xf32>
    %104 = vector.broadcast %96 : vector<8x1xf32> to vector<8x32xf32>
    %105 = arith.subf %92, %104 : vector<8x32xf32>
    %cst_36 = arith.constant 9.99999974E-6 : f32
    %106 = vector.broadcast %cst_36 : f32 to vector<8x1xf32>
    %107 = arith.addf %103, %106 : vector<8x1xf32>
    %108 = math.rsqrt %107 : vector<8x1xf32>
    %109 = vector.broadcast %108 : vector<8x1xf32> to vector<8x32xf32>
    %110 = arith.mulf %105, %109 : vector<8x32xf32>
    %c0_37 = arith.constant 0 : index
    %c0_38 = arith.constant 0 : index
    %111 = vector.load %arg9[%c0_37, %c0_38] : memref<1x32xf32, #tpu.memory_space<vmem>>, vector<1x32xf32>
    %112 = vector.broadcast %111 : vector<1x32xf32> to vector<8x32xf32>
    %113 = arith.mulf %110, %112 : vector<8x32xf32>
    %c0_39 = arith.constant 0 : index
    %c0_40 = arith.constant 0 : index
    %114 = vector.load %arg10[%c0_39, %c0_40] : memref<1x32xf32, #tpu.memory_space<vmem>>, vector<1x32xf32>
    %115 = vector.broadcast %114 : vector<1x32xf32> to vector<8x32xf32>
    %116 = arith.addf %113, %115 : vector<8x32xf32>
    %c0_41 = arith.constant 0 : index
    %c0_42 = arith.constant 0 : index
    %117 = vector.load %arg11[%c0_41, %c0_42] : memref<32x16xbf16, #tpu.memory_space<vmem>>, vector<32x16xbf16>
    %118 = arith.truncf %116 : vector<8x32xf32> to vector<8x32xbf16>
    %cst_43 = arith.constant dense<0.000000e+00> : vector<8x16xf32>
    %119 = tpu.matmul %118, %117, %cst_43 {dimension_numbers = #tpu.dot_dimension_numbers<[1], [0], [0], [1], [0, 0, 1, 1], [], []>} : vector<8x32xbf16>, vector<32x16xbf16>, vector<8x16xf32> -> vector<8x16xf32>
    %c0_44 = arith.constant 0 : index
    %c0_45 = arith.constant 0 : index
    %120 = vector.load %arg12[%c0_44, %c0_45] : memref<1x16xf32, #tpu.memory_space<vmem>>, vector<1x16xf32>
    %121 = vector.broadcast %120 : vector<1x16xf32> to vector<8x16xf32>
    %122 = arith.addf %119, %121 : vector<8x16xf32>
    %cst_46 = arith.constant 0.000000e+00 : f32
    %123 = vector.broadcast %cst_46 : f32 to vector<8x16xf32>
    %124 = arith.maximumf %122, %123 : vector<8x16xf32>
    %c0_47 = arith.constant 0 : index
    %c0_48 = arith.constant 0 : index
    %125 = vector.load %arg13[%c0_47, %c0_48] : memref<16x128xbf16, #tpu.memory_space<vmem>>, vector<16x128xbf16>
    %126 = arith.truncf %124 : vector<8x16xf32> to vector<8x16xbf16>
    %cst_49 = arith.constant dense<0.000000e+00> : vector<8x128xf32>
    %127 = tpu.matmul %126, %125, %cst_49 {dimension_numbers = #tpu.dot_dimension_numbers<[1], [0], [0], [1], [0, 0, 1, 1], [], []>} : vector<8x16xbf16>, vector<16x128xbf16>, vector<8x128xf32> -> vector<8x128xf32>
    %c0_50 = arith.constant 0 : index
    %c0_51 = arith.constant 0 : index
    %128 = vector.load %arg14[%c0_50, %c0_51] : memref<1x128xf32, #tpu.memory_space<vmem>>, vector<1x128xf32>
    %129 = vector.broadcast %128 : vector<1x128xf32> to vector<8x128xf32>
    %130 = arith.addf %127, %129 : vector<8x128xf32>
    %131 = vector.extract_strided_slice %130 {offsets = [0, 0], sizes = [8, 2], strides = [1, 1]} : vector<8x128xf32> to vector<8x2xf32>
    %132 = vector.shape_cast %131 : vector<8x2xf32> to vector<1x8x2xf32>
    %133 = tpu.transpose %132, [0, 2, 1] : vector<1x8x2xf32> -> vector<1x2x8xf32>
    %c0_52 = arith.constant 0 : index
    %c0_53 = arith.constant 0 : index
    %c0_54 = arith.constant 0 : index
    %134 = vector.load %arg15[%c0_52, %c0_53, %c0_54] : memref<1x2x8xf32, #tpu.memory_space<vmem>>, vector<1x2x8xf32>
    tpu.vector_store %arg15[%c0_52, %c0_53, %c0_54], %133 {strides = array<i32>} : memref<1x2x8xf32, #tpu.memory_space<vmem>>, vector<1x2x8xf32>,
    return
  }
  func.func @transform_0(%arg0: i32) -> (i32, i32, i32) {
    %c0_i32 = arith.constant 0 : i32
    %c0_i32_0 = arith.constant 0 : i32
    %c0_i32_1 = arith.constant 0 : i32
    return %arg0, %c0_i32, %c0_i32_0 : i32, i32, i32
  }
  func.func @transform_1(%arg0: i32) -> (i32, i32) {
    %c0_i32 = arith.constant 0 : i32
    %c0_i32_0 = arith.constant 0 : i32
    %c0_i32_1 = arith.constant 0 : i32
    return %c0_i32, %c0_i32_0 : i32, i32
  }
  func.func @transform_2(%arg0: i32) -> (i32, i32) {
    %c0_i32 = arith.constant 0 : i32
    %c0_i32_0 = arith.constant 0 : i32
    %c0_i32_1 = arith.constant 0 : i32
    return %c0_i32, %c0_i32_0 : i32, i32
  }
  func.func @transform_3(%arg0: i32) -> (i32, i32) {
    %c0_i32 = arith.constant 0 : i32
    %c0_i32_0 = arith.constant 0 : i32
    %c0_i32_1 = arith.constant 0 : i32
    return %c0_i32, %c0_i32_0 : i32, i32
  }
  func.func @transform_4(%arg0: i32) -> (i32, i32) {
    %c0_i32 = arith.constant 0 : i32
    %c0_i32_0 = arith.constant 0 : i32
    %c0_i32_1 = arith.constant 0 : i32
    return %c0_i32, %c0_i32_0 : i32, i32
  }
  func.func @transform_5(%arg0: i32) -> (i32, i32) {
    %c0_i32 = arith.constant 0 : i32
    %c0_i32_0 = arith.constant 0 : i32
    %c0_i32_1 = arith.constant 0 : i32
    return %c0_i32, %c0_i32_0 : i32, i32
  }
  func.func @transform_6(%arg0: i32) -> (i32, i32) {
    %c0_i32 = arith.constant 0 : i32
    %c0_i32_0 = arith.constant 0 : i32
    %c0_i32_1 = arith.constant 0 : i32
    return %c0_i32, %c0_i32_0 : i32, i32
  }
  func.func @transform_7(%arg0: i32) -> (i32, i32) {
    %c0_i32 = arith.constant 0 : i32
    %c0_i32_0 = arith.constant 0 : i32
    %c0_i32_1 = arith.constant 0 : i32
    return %c0_i32, %c0_i32_0 : i32, i32
  }
  func.func @transform_8(%arg0: i32) -> (i32, i32) {
    %c0_i32 = arith.constant 0 : i32
    %c0_i32_0 = arith.constant 0 : i32
    %c0_i32_1 = arith.constant 0 : i32
    return %c0_i32, %c0_i32_0 : i32, i32
  }
  func.func @transform_9(%arg0: i32) -> (i32, i32) {
    %c0_i32 = arith.constant 0 : i32
    %c0_i32_0 = arith.constant 0 : i32
    %c0_i32_1 = arith.constant 0 : i32
    return %c0_i32, %c0_i32_0 : i32, i32
  }
  func.func @transform_10(%arg0: i32) -> (i32, i32) {
    %c0_i32 = arith.constant 0 : i32
    %c0_i32_0 = arith.constant 0 : i32
    %c0_i32_1 = arith.constant 0 : i32
    return %c0_i32, %c0_i32_0 : i32, i32
  }
  func.func @transform_11(%arg0: i32) -> (i32, i32) {
    %c0_i32 = arith.constant 0 : i32
    %c0_i32_0 = arith.constant 0 : i32
    %c0_i32_1 = arith.constant 0 : i32
    return %c0_i32, %c0_i32_0 : i32, i32
  }
  func.func @transform_12(%arg0: i32) -> (i32, i32) {
    %c0_i32 = arith.constant 0 : i32
    %c0_i32_0 = arith.constant 0 : i32
    %c0_i32_1 = arith.constant 0 : i32
    return %c0_i32, %c0_i32_0 : i32, i32
  }
  func.func @transform_13(%arg0: i32) -> (i32, i32) {
    %c0_i32 = arith.constant 0 : i32
    %c0_i32_0 = arith.constant 0 : i32
    %c0_i32_1 = arith.constant 0 : i32
    return %c0_i32, %c0_i32_0 : i32, i32
  }
  func.func @transform_14(%arg0: i32) -> (i32, i32, i32) {
    %c0_i32 = arith.constant 0 : i32
    %c0_i32_0 = arith.constant 0 : i32
    %c0_i32_1 = arith.constant 0 : i32
    return %arg0, %c0_i32, %c0_i32_0 : i32, i32, i32
  }
}

module attributes {stable_mosaic.version = 11 : i64} {
  func.func @enhanced_qa_kernel(%arg0: i32, %arg1: memref<1x8x32xbf16, #tpu.memory_space<vmem>>, %arg2: memref<8x32xf32, #tpu.memory_space<vmem>>, %arg3: memref<32x96xbf16, #tpu.memory_space<vmem>>, %arg4: memref<1x96xf32, #tpu.memory_space<vmem>>, %arg5: memref<32x32xbf16, #tpu.memory_space<vmem>>, %arg6: memref<1x32xf32, #tpu.memory_space<vmem>>, %arg7: memref<32x66xbf16, #tpu.memory_space<vmem>>, %arg8: memref<1x66xf32, #tpu.memory_space<vmem>>, %arg9: memref<1x32xf32, #tpu.memory_space<vmem>>, %arg10: memref<1x32xf32, #tpu.memory_space<vmem>>, %arg11: memref<32x16xbf16, #tpu.memory_space<vmem>>, %arg12: memref<1x16xf32, #tpu.memory_space<vmem>>, %arg13: memref<16x128xbf16, #tpu.memory_space<vmem>>, %arg14: memref<1x128xf32, #tpu.memory_space<vmem>>, %arg15: memref<1x2x8xf32, #tpu.memory_space<vmem>>) attributes {dimension_semantics = [#tpu.dimension_semantics<parallel>], iteration_bounds = array<i64: 2>, scalar_prefetch = 0 : i64, scratch_operands = 0 : i64, tpu.core_type = #tpu.core_type<tc>, window_params = [{transform_indices = @transform_0, window_bounds = array<i64: 1, 8, 32>}, {pipeline_mode = #tpu.pipeline_mode<synchronous>, transform_indices = @transform_1, window_bounds = array<i64: 8, 32>}, {pipeline_mode = #tpu.pipeline_mode<synchronous>, transform_indices = @transform_2, window_bounds = array<i64: 32, 96>}, {pipeline_mode = #tpu.pipeline_mode<synchronous>, transform_indices = @transform_3, window_bounds = array<i64: 1, 96>}, {pipeline_mode = #tpu.pipeline_mode<synchronous>, transform_indices = @transform_4, window_bounds = array<i64: 32, 32>}, {pipeline_mode = #tpu.pipeline_mode<synchronous>, transform_indices = @transform_5, window_bounds = array<i64: 1, 32>}, {pipeline_mode = #tpu.pipeline_mode<synchronous>, transform_indices = @transform_6, window_bounds = array<i64: 32, 66>}, {pipeline_mode = #tpu.pipeline_mode<synchronous>, transform_indices = @transform_7, window_bounds = array<i64: 1, 66>}, {pipeline_mode = #tpu.pipeline_mode<synchronous>, transform_indices = @transform_8, window_bounds = array<i64: 1, 32>}, {pipeline_mode = #tpu.pipeline_mode<synchronous>, transform_indices = @transform_9, window_bounds = array<i64: 1, 32>}, {pipeline_mode = #tpu.pipeline_mode<synchronous>, transform_indices = @transform_10, window_bounds = array<i64: 32, 16>}, {pipeline_mode = #tpu.pipeline_mode<synchronous>, transform_indices = @transform_11, window_bounds = array<i64: 1, 16>}, {pipeline_mode = #tpu.pipeline_mode<synchronous>, transform_indices = @transform_12, window_bounds = array<i64: 16, 128>}, {pipeline_mode = #tpu.pipeline_mode<synchronous>, transform_indices = @transform_13, window_bounds = array<i64: 1, 128>}, {transform_indices = @transform_14, window_bounds = array<i64: 1, 2, 8>}]} {
    %c0 = arith.constant 0 : index
    %c0_0 = arith.constant 0 : index
    %c0_1 = arith.constant 0 : index
    %0 = vector.load %arg1[%c0, %c0_0, %c0_1] : memref<1x8x32xbf16, #tpu.memory_space<vmem>>, vector<1x8x32xbf16>
    %1 = arith.extf %0 : vector<1x8x32xbf16> to vector<1x8x32xf32>
    %c0_2 = arith.constant 0 : index
    %c0_3 = arith.constant 0 : index
    %2 = vector.load %arg2[%c0_2, %c0_3] : memref<8x32xf32, #tpu.memory_space<vmem>>, vector<8x32xf32>
    %3 = vector.shape_cast %2 : vector<8x32xf32> to vector<1x8x32xf32>
    %4 = arith.addf %1, %3 : vector<1x8x32xf32>
    %5 = vector.shape_cast %4 : vector<1x8x32xf32> to vector<8x32xf32>
    %c0_4 = arith.constant 0 : index
    %c0_5 = arith.constant 0 : index
    %6 = vector.load %arg3[%c0_4, %c0_5] : memref<32x96xbf16, #tpu.memory_space<vmem>>, vector<32x96xbf16>
    %7 = arith.truncf %5 : vector<8x32xf32> to vector<8x32xbf16>
    %cst = arith.constant dense<0.000000e+00> : vector<8x96xf32>
    %8 = tpu.matmul %7, %6, %cst {dimension_numbers = #tpu.dot_dimension_numbers<[1], [0], [0], [1], [0, 0, 1, 1], [], []>} : vector<8x32xbf16>, vector<32x96xbf16>, vector<8x96xf32> -> vector<8x96xf32>
    %c0_6 = arith.constant 0 : index
    %c0_7 = arith.constant 0 : index
    %9 = vector.load %arg4[%c0_6, %c0_7] : memref<1x96xf32, #tpu.memory_space<vmem>>, vector<1x96xf32>
    %10 = vector.broadcast %9 : vector<1x96xf32> to vector<8x96xf32>
    %11 = arith.addf %8, %10 : vector<8x96xf32>
    %12 = arith.truncf %11 : vector<8x96xf32> to vector<8x96xbf16>
    %13 = vector.extract_strided_slice %12 {offsets = [0, 0], sizes = [8, 32], strides = [1, 1]} : vector<8x96xbf16> to vector<8x32xbf16>
    %14 = vector.shape_cast %13 : vector<8x32xbf16> to vector<1x8x32xbf16>
    %15 = vector.extract_strided_slice %12 {offsets = [0, 32], sizes = [8, 32], strides = [1, 1]} : vector<8x96xbf16> to vector<8x32xbf16>
    %16 = vector.shape_cast %15 : vector<8x32xbf16> to vector<1x8x32xbf16>
    %17 = vector.extract_strided_slice %12 {offsets = [0, 64], sizes = [8, 32], strides = [1, 1]} : vector<8x96xbf16> to vector<8x32xbf16>
    %18 = vector.shape_cast %17 : vector<8x32xbf16> to vector<1x8x32xbf16>
    %c0_8 = arith.constant 0 : index
    %c0_9 = arith.constant 0 : index
    %19 = vector.load %arg6[%c0_8, %c0_9] : memref<1x32xf32, #tpu.memory_space<vmem>>, vector<1x32xf32>
    %20 = vector.extract_strided_slice %14 {offsets = [0, 0, 0], sizes = [1, 8, 16], strides = [1, 1, 1]} : vector<1x8x32xbf16> to vector<1x8x16xbf16>
    %21 = vector.extract_strided_slice %16 {offsets = [0, 0, 0], sizes = [1, 8, 16], strides = [1, 1, 1]} : vector<1x8x32xbf16> to vector<1x8x16xbf16>
    "tpu.trace_start"() <{level = 10 : i32, message = "bqd,bkd->bqk"}> : () -> ()
    %cst_10 = arith.constant dense<0.000000e+00> : vector<1x8x8xf32>
    %22 = tpu.matmul %20, %21, %cst_10 {dimension_numbers = #tpu.dot_dimension_numbers<[2], [2], [1], [1], [0, 0, 0, 1, 1, 1], [0], [0]>} : vector<1x8x16xbf16>, vector<1x8x16xbf16>, vector<1x8x8xf32> -> vector<1x8x8xf32>
    "tpu.trace_stop"() : () -> ()
    %cst_11 = arith.constant 2.500000e-01 : f32
    %23 = vector.broadcast %cst_11 : f32 to vector<1x8x8xf32>
    %24 = arith.mulf %22, %23 : vector<1x8x8xf32>
    %cst_12 = arith.constant dense<0xFF800000> : vector<1x8xf32>
    %25 = vector.multi_reduction <maximumf>, %24, %cst_12 [2] : vector<1x8x8xf32> to vector<1x8xf32>
    %26 = vector.shape_cast %25 : vector<1x8xf32> to vector<1x8x1xf32>
    %27 = vector.broadcast %26 : vector<1x8x1xf32> to vector<1x8x8xf32>
    %28 = arith.subf %24, %27 : vector<1x8x8xf32>
    %29 = math.exp %28 : vector<1x8x8xf32>
    %cst_13 = arith.constant dense<0.000000e+00> : vector<1x8xf32>
    %30 = vector.multi_reduction <add>, %29, %cst_13 [2] : vector<1x8x8xf32> to vector<1x8xf32>
    %31 = vector.shape_cast %30 : vector<1x8xf32> to vector<1x8x1xf32>
    %32 = tpu.reciprocal %31 {approx = true} : vector<1x8x1xf32> -> vector<1x8x1xf32>
    %33 = vector.broadcast %32 : vector<1x8x1xf32> to vector<1x8x8xf32>
    %34 = arith.mulf %29, %33 : vector<1x8x8xf32>
    %35 = arith.truncf %34 : vector<1x8x8xf32> to vector<1x8x8xbf16>
    %36 = vector.extract_strided_slice %18 {offsets = [0, 0, 0], sizes = [1, 8, 16], strides = [1, 1, 1]} : vector<1x8x32xbf16> to vector<1x8x16xbf16>
    "tpu.trace_start"() <{level = 10 : i32, message = "bqk,bkd->bqd"}> : () -> ()
    %cst_14 = arith.constant dense<0.000000e+00> : vector<1x8x16xf32>
    %37 = tpu.matmul %35, %36, %cst_14 {dimension_numbers = #tpu.dot_dimension_numbers<[2], [1], [1], [2], [0, 0, 0, 1, 1, 2], [0], [0]>} : vector<1x8x8xbf16>, vector<1x8x16xbf16>, vector<1x8x16xf32> -> vector<1x8x16xf32>
    "tpu.trace_stop"() : () -> ()
    %38 = vector.shape_cast %37 : vector<1x8x16xf32> to vector<8x16xf32>
    %c0_15 = arith.constant 0 : index
    %c0_16 = arith.constant 0 : index
    %39 = vector.load %arg5[%c0_15, %c0_16] : memref<32x32xbf16, #tpu.memory_space<vmem>>, vector<16x32xbf16>
    %40 = arith.truncf %38 : vector<8x16xf32> to vector<8x16xbf16>
    %cst_17 = arith.constant dense<0.000000e+00> : vector<8x32xf32>
    %41 = tpu.matmul %40, %39, %cst_17 {dimension_numbers = #tpu.dot_dimension_numbers<[1], [0], [0], [1], [0, 0, 1, 1], [], []>} : vector<8x16xbf16>, vector<16x32xbf16>, vector<8x32xf32> -> vector<8x32xf32>
    %42 = vector.broadcast %19 : vector<1x32xf32> to vector<8x32xf32>
    %43 = arith.addf %42, %41 : vector<8x32xf32>
    %44 = vector.extract_strided_slice %14 {offsets = [0, 0, 16], sizes = [1, 8, 16], strides = [1, 1, 1]} : vector<1x8x32xbf16> to vector<1x8x16xbf16>
    %45 = vector.extract_strided_slice %16 {offsets = [0, 0, 16], sizes = [1, 8, 16], strides = [1, 1, 1]} : vector<1x8x32xbf16> to vector<1x8x16xbf16>
    "tpu.trace_start"() <{level = 10 : i32, message = "bqd,bkd->bqk"}> : () -> ()
    %cst_18 = arith.constant dense<0.000000e+00> : vector<1x8x8xf32>
    %46 = tpu.matmul %44, %45, %cst_18 {dimension_numbers = #tpu.dot_dimension_numbers<[2], [2], [1], [1], [0, 0, 0, 1, 1, 1], [0], [0]>} : vector<1x8x16xbf16>, vector<1x8x16xbf16>, vector<1x8x8xf32> -> vector<1x8x8xf32>
    "tpu.trace_stop"() : () -> ()
    %cst_19 = arith.constant 2.500000e-01 : f32
    %47 = vector.broadcast %cst_19 : f32 to vector<1x8x8xf32>
    %48 = arith.mulf %46, %47 : vector<1x8x8xf32>
    %cst_20 = arith.constant dense<0xFF800000> : vector<1x8xf32>
    %49 = vector.multi_reduction <maximumf>, %48, %cst_20 [2] : vector<1x8x8xf32> to vector<1x8xf32>
    %50 = vector.shape_cast %49 : vector<1x8xf32> to vector<1x8x1xf32>
    %51 = vector.broadcast %50 : vector<1x8x1xf32> to vector<1x8x8xf32>
    %52 = arith.subf %48, %51 : vector<1x8x8xf32>
    %53 = math.exp %52 : vector<1x8x8xf32>
    %cst_21 = arith.constant dense<0.000000e+00> : vector<1x8xf32>
    %54 = vector.multi_reduction <add>, %53, %cst_21 [2] : vector<1x8x8xf32> to vector<1x8xf32>
    %55 = vector.shape_cast %54 : vector<1x8xf32> to vector<1x8x1xf32>
    %56 = tpu.reciprocal %55 {approx = true} : vector<1x8x1xf32> -> vector<1x8x1xf32>
    %57 = vector.broadcast %56 : vector<1x8x1xf32> to vector<1x8x8xf32>
    %58 = arith.mulf %53, %57 : vector<1x8x8xf32>
    %59 = arith.truncf %58 : vector<1x8x8xf32> to vector<1x8x8xbf16>
    %60 = vector.extract_strided_slice %18 {offsets = [0, 0, 16], sizes = [1, 8, 16], strides = [1, 1, 1]} : vector<1x8x32xbf16> to vector<1x8x16xbf16>
    "tpu.trace_start"() <{level = 10 : i32, message = "bqk,bkd->bqd"}> : () -> ()
    %cst_22 = arith.constant dense<0.000000e+00> : vector<1x8x16xf32>
    %61 = tpu.matmul %59, %60, %cst_22 {dimension_numbers = #tpu.dot_dimension_numbers<[2], [1], [1], [2], [0, 0, 0, 1, 1, 2], [0], [0]>} : vector<1x8x8xbf16>, vector<1x8x16xbf16>, vector<1x8x16xf32> -> vector<1x8x16xf32>
    "tpu.trace_stop"() : () -> ()
    %62 = vector.shape_cast %61 : vector<1x8x16xf32> to vector<8x16xf32>
    %c16 = arith.constant 16 : index
    %c0_23 = arith.constant 0 : index
    %63 = vector.load %arg5[%c16, %c0_23] : memref<32x32xbf16, #tpu.memory_space<vmem>>, vector<16x32xbf16>
    %64 = arith.truncf %62 : vector<8x16xf32> to vector<8x16xbf16>
    %cst_24 = arith.constant dense<0.000000e+00> : vector<8x32xf32>
    %65 = tpu.matmul %64, %63, %cst_24 {dimension_numbers = #tpu.dot_dimension_numbers<[1], [0], [0], [1], [0, 0, 1, 1], [], []>} : vector<8x16xbf16>, vector<16x32xbf16>, vector<8x32xf32> -> vector<8x32xf32>
    %66 = arith.addf %43, %65 : vector<8x32xf32>
    %c0_25 = arith.constant 0 : index
    %c0_26 = arith.constant 0 : index
    %67 = vector.load %arg7[%c0_25, %c0_26] : memref<32x66xbf16, #tpu.memory_space<vmem>>, vector<32x66xbf16>
    %68 = arith.truncf %66 : vector<8x32xf32> to vector<8x32xbf16>
    %cst_27 = arith.constant dense<0.000000e+00> : vector<8x66xf32>
    %69 = tpu.matmul %68, %67, %cst_27 {dimension_numbers = #tpu.dot_dimension_numbers<[1], [0], [0], [1], [0, 0, 1, 1], [], []>} : vector<8x32xbf16>, vector<32x66xbf16>, vector<8x66xf32> -> vector<8x66xf32>
    %c0_28 = arith.constant 0 : index
    %c0_29 = arith.constant 0 : index
    %70 = vector.load %arg8[%c0_28, %c0_29] : memref<1x66xf32, #tpu.memory_space<vmem>>, vector<1x66xf32>
    %71 = vector.broadcast %70 : vector<1x66xf32> to vector<8x66xf32>
    %72 = arith.addf %69, %71 : vector<8x66xf32>
    %73 = vector.extract_strided_slice %72 {offsets = [0, 64], sizes = [8, 2], strides = [1, 1]} : vector<8x66xf32> to vector<8x2xf32>
    %cst_30 = arith.constant dense<0xFF800000> : vector<8xf32>
    %74 = vector.multi_reduction <maximumf>, %73, %cst_30 [1] : vector<8x2xf32> to vector<8xf32>
    %75 = vector.shape_cast %74 : vector<8xf32> to vector<8x1xf32>
    %76 = vector.broadcast %75 : vector<8x1xf32> to vector<8x2xf32>
    %77 = arith.subf %73, %76 : vector<8x2xf32>
    %78 = math.exp %77 : vector<8x2xf32>
    %cst_31 = arith.constant dense<0.000000e+00> : vector<8xf32>
    %79 = vector.multi_reduction <add>, %78, %cst_31 [1] : vector<8x2xf32> to vector<8xf32>
    %80 = vector.shape_cast %79 : vector<8xf32> to vector<8x1xf32>
    %81 = tpu.reciprocal %80 {approx = true} : vector<8x1xf32> -> vector<8x1xf32>
    %82 = vector.broadcast %81 : vector<8x1xf32> to vector<8x2xf32>
    %83 = arith.mulf %78, %82 : vector<8x2xf32>
    %84 = vector.extract_strided_slice %83 {offsets = [0, 0], sizes = [8, 1], strides = [1, 1]} : vector<8x2xf32> to vector<8x1xf32>
    %85 = vector.extract_strided_slice %72 {offsets = [0, 0], sizes = [8, 32], strides = [1, 1]} : vector<8x66xf32> to vector<8x32xf32>
    %86 = vector.broadcast %84 : vector<8x1xf32> to vector<8x32xf32>
    %87 = arith.mulf %86, %85 : vector<8x32xf32>
    %88 = vector.extract_strided_slice %83 {offsets = [0, 1], sizes = [8, 1], strides = [1, 1]} : vector<8x2xf32> to vector<8x1xf32>
    %89 = vector.extract_strided_slice %72 {offsets = [0, 32], sizes = [8, 32], strides = [1, 1]} : vector<8x66xf32> to vector<8x32xf32>
    %90 = vector.broadcast %88 : vector<8x1xf32> to vector<8x32xf32>
    %91 = arith.mulf %90, %89 : vector<8x32xf32>
    %92 = arith.addf %87, %91 : vector<8x32xf32>
    %cst_32 = arith.constant dense<0.000000e+00> : vector<8xf32>
    %93 = vector.multi_reduction <add>, %92, %cst_32 [1] : vector<8x32xf32> to vector<8xf32>
    %94 = vector.shape_cast %93 : vector<8xf32> to vector<8x1xf32>
    %cst_33 = arith.constant 3.200000e+01 : f32
    %95 = vector.broadcast %cst_33 : f32 to vector<8x1xf32>
    %96 = arith.divf %94, %95 : vector<8x1xf32>
    %97 = vector.broadcast %96 : vector<8x1xf32> to vector<8x32xf32>
    %98 = arith.subf %92, %97 : vector<8x32xf32>
    %99 = arith.mulf %98, %98 : vector<8x32xf32>
    %cst_34 = arith.constant dense<0.000000e+00> : vector<8xf32>
    %100 = vector.multi_reduction <add>, %99, %cst_34 [1] : vector<8x32xf32> to vector<8xf32>
    %101 = vector.shape_cast %100 : vector<8xf32> to vector<8x1xf32>
    %cst_35 = arith.constant 3.200000e+01 : f32
    %102 = vector.broadcast %cst_35 : f32 to vector<8x1xf32>
    %103 = arith.divf %101, %102 : vector<8x1xf32>
    %104 = vector.broadcast %96 : vector<8x1xf32> to vector<8x32xf32>
    %105 = arith.subf %92, %104 : vector<8x32xf32>
    %cst_36 = arith.constant 9.99999974E-6 : f32
    %106 = vector.broadcast %cst_36 : f32 to vector<8x1xf32>
    %107 = arith.addf %103, %106 : vector<8x1xf32>
    %108 = math.rsqrt %107 : vector<8x1xf32>
    %109 = vector.broadcast %108 : vector<8x1xf32> to vector<8x32xf32>
    %110 = arith.mulf %105, %109 : vector<8x32xf32>
    %c0_37 = arith.constant 0 : index
    %c0_38 = arith.constant 0 : index
    %111 = vector.load %arg9[%c0_37, %c0_38] : memref<1x32xf32, #tpu.memory_space<vmem>>, vector<1x32xf32>
    %112 = vector.broadcast %111 : vector<1x32xf32> to vector<8x32xf32>
    %113 = arith.mulf %110, %112 : vector<8x32xf32>
    %c0_39 = arith.constant 0 : index
    %c0_40 = arith.constant 0 : index
    %114 = vector.load %arg10[%c0_39, %c0_40] : memref<1x32xf32, #tpu.memory_space<vmem>>, vector<1x32xf32>
    %115 = vector.broadcast %114 : vector<1x32xf32> to vector<8x32xf32>
    %116 = arith.addf %113, %115 : vector<8x32xf32>
    %c0_41 = arith.constant 0 : index
    %c0_42 = arith.constant 0 : index
    %117 = vector.load %arg11[%c0_41, %c0_42] : memref<32x16xbf16, #tpu.memory_space<vmem>>, vector<32x16xbf16>
    %118 = arith.truncf %116 : vector<8x32xf32> to vector<8x32xbf16>
    %cst_43 = arith.constant dense<0.000000e+00> : vector<8x16xf32>
    %119 = tpu.matmul %118, %117, %cst_43 {dimension_numbers = #tpu.dot_dimension_numbers<[1], [0], [0], [1], [0, 0, 1, 1], [], []>} : vector<8x32xbf16>, vector<32x16xbf16>, vector<8x16xf32> -> vector<8x16xf32>
    %c0_44 = arith.constant 0 : index
    %c0_45 = arith.constant 0 : index
    %120 = vector.load %arg12[%c0_44, %c0_45] : memref<1x16xf32, #tpu.memory_space<vmem>>, vector<1x16xf32>
    %121 = vector.broadcast %120 : vector<1x16xf32> to vector<8x16xf32>
    %122 = arith.addf %119, %121 : vector<8x16xf32>
    %cst_46 = arith.constant 0.000000e+00 : f32
    %123 = vector.broadcast %cst_46 : f32 to vector<8x16xf32>
    %124 = arith.maximumf %122, %123 : vector<8x16xf32>
    %c0_47 = arith.constant 0 : index
    %c0_48 = arith.constant 0 : index
    %125 = vector.load %arg13[%c0_47, %c0_48] : memref<16x128xbf16, #tpu.memory_space<vmem>>, vector<16x128xbf16>
    %126 = arith.truncf %124 : vector<8x16xf32> to vector<8x16xbf16>
    %cst_49 = arith.constant dense<0.000000e+00> : vector<8x128xf32>
    %127 = tpu.matmul %126, %125, %cst_49 {dimension_numbers = #tpu.dot_dimension_numbers<[1], [0], [0], [1], [0, 0, 1, 1], [], []>} : vector<8x16xbf16>, vector<16x128xbf16>, vector<8x128xf32> -> vector<8x128xf32>
    %c0_50 = arith.constant 0 : index
    %c0_51 = arith.constant 0 : index
    %128 = vector.load %arg14[%c0_50, %c0_51] : memref<1x128xf32, #tpu.memory_space<vmem>>, vector<1x128xf32>
    %129 = vector.broadcast %128 : vector<1x128xf32> to vector<8x128xf32>
    %130 = arith.addf %127, %129 : vector<8x128xf32>
    %131 = vector.extract_strided_slice %130 {offsets = [0, 0], sizes = [8, 2], strides = [1, 1]} : vector<8x128xf32> to vector<8x2xf32>
    %132 = vector.shape_cast %131 : vector<8x2xf32> to vector<1x8x2xf32>
    %133 = tpu.transpose %132, [0, 2, 1] : vector<1x8x2xf32> -> vector<1x2x8xf32>
    %c0_52 = arith.constant 0 : index
    %c0_53 = arith.constant 0 : index
    %c0_54 = arith.constant 0 : index
    %134 = vector.load %arg15[%c0_52, %c0_53, %c0_54] : memref<1x2x8xf32, #tpu.memory_space<vmem>>, vector<1x2x8xf32>
    tpu.vector_store %arg15[%c0_52, %c0_53, %c0_54], %133 {strides = array<i32>} : memref<1x2x8xf32, #tpu.memory_space<vmem>>, vector<1x2x8xf32>,
    return
  }
  func.func @transform_0(%arg0: i32) -> (i32, i32, i32) {
    %c0_i32 = arith.constant 0 : i32
    %c0_i32_0 = arith.constant 0 : i32
    %c0_i32_1 = arith.constant 0 : i32
    return %arg0, %c0_i32, %c0_i32_0 : i32, i32, i32
  }
  func.func @transform_1(%arg0: i32) -> (i32, i32) {
    %c0_i32 = arith.constant 0 : i32
    %c0_i32_0 = arith.constant 0 : i32
    %c0_i32_1 = arith.constant 0 : i32
    return %c0_i32, %c0_i32_0 : i32, i32
  }
  func.func @transform_2(%arg0: i32) -> (i32, i32) {
    %c0_i32 = arith.constant 0 : i32
    %c0_i32_0 = arith.constant 0 : i32
    %c0_i32_1 = arith.constant 0 : i32
    return %c0_i32, %c0_i32_0 : i32, i32
  }
  func.func @transform_3(%arg0: i32) -> (i32, i32) {
    %c0_i32 = arith.constant 0 : i32
    %c0_i32_0 = arith.constant 0 : i32
    %c0_i32_1 = arith.constant 0 : i32
    return %c0_i32, %c0_i32_0 : i32, i32
  }
  func.func @transform_4(%arg0: i32) -> (i32, i32) {
    %c0_i32 = arith.constant 0 : i32
    %c0_i32_0 = arith.constant 0 : i32
    %c0_i32_1 = arith.constant 0 : i32
    return %c0_i32, %c0_i32_0 : i32, i32
  }
  func.func @transform_5(%arg0: i32) -> (i32, i32) {
    %c0_i32 = arith.constant 0 : i32
    %c0_i32_0 = arith.constant 0 : i32
    %c0_i32_1 = arith.constant 0 : i32
    return %c0_i32, %c0_i32_0 : i32, i32
  }
  func.func @transform_6(%arg0: i32) -> (i32, i32) {
    %c0_i32 = arith.constant 0 : i32
    %c0_i32_0 = arith.constant 0 : i32
    %c0_i32_1 = arith.constant 0 : i32
    return %c0_i32, %c0_i32_0 : i32, i32
  }
  func.func @transform_7(%arg0: i32) -> (i32, i32) {
    %c0_i32 = arith.constant 0 : i32
    %c0_i32_0 = arith.constant 0 : i32
    %c0_i32_1 = arith.constant 0 : i32
    return %c0_i32, %c0_i32_0 : i32, i32
  }
  func.func @transform_8(%arg0: i32) -> (i32, i32) {
    %c0_i32 = arith.constant 0 : i32
    %c0_i32_0 = arith.constant 0 : i32
    %c0_i32_1 = arith.constant 0 : i32
    return %c0_i32, %c0_i32_0 : i32, i32
  }
  func.func @transform_9(%arg0: i32) -> (i32, i32) {
    %c0_i32 = arith.constant 0 : i32
    %c0_i32_0 = arith.constant 0 : i32
    %c0_i32_1 = arith.constant 0 : i32
    return %c0_i32, %c0_i32_0 : i32, i32
  }
  func.func @transform_10(%arg0: i32) -> (i32, i32) {
    %c0_i32 = arith.constant 0 : i32
    %c0_i32_0 = arith.constant 0 : i32
    %c0_i32_1 = arith.constant 0 : i32
    return %c0_i32, %c0_i32_0 : i32, i32
  }
  func.func @transform_11(%arg0: i32) -> (i32, i32) {
    %c0_i32 = arith.constant 0 : i32
    %c0_i32_0 = arith.constant 0 : i32
    %c0_i32_1 = arith.constant 0 : i32
    return %c0_i32, %c0_i32_0 : i32, i32
  }
  func.func @transform_12(%arg0: i32) -> (i32, i32) {
    %c0_i32 = arith.constant 0 : i32
    %c0_i32_0 = arith.constant 0 : i32
    %c0_i32_1 = arith.constant 0 : i32
    return %c0_i32, %c0_i32_0 : i32, i32
  }
  func.func @transform_13(%arg0: i32) -> (i32, i32) {
    %c0_i32 = arith.constant 0 : i32
    %c0_i32_0 = arith.constant 0 : i32
    %c0_i32_1 = arith.constant 0 : i32
    return %c0_i32, %c0_i32_0 : i32, i32
  }
  func.func @transform_14(%arg0: i32) -> (i32, i32, i32) {
    %c0_i32 = arith.constant 0 : i32
    %c0_i32_0 = arith.constant 0 : i32
    %c0_i32_1 = arith.constant 0 : i32
    return %arg0, %c0_i32, %c0_i32_0 : i32, i32, i32
  }
}

</mosaic_0001>

<llo_original>
// kernel: tpu_custom_call.1
$region0: #{tpu_custom_call.1}
  #allocation0 [shape = 'u32[]', space=smem, size = 0x4, offset = 0x4, fixed_abs, tag = 'smem constant byte address 0x4 - core index']
  #allocation1 [shape = 'u32[144,128]{1,0:T(1,128)}', space=vmem, size = 0x12000, scoped, tag = 'internal scratch']
  %s0 = inlined_call_operand.hbm [shape: bf16[2,8,32], index: 0, kind: input, shape index: {}]
  %s1 = inlined_call_operand.hbm [shape: f32[8,32], index: 1, kind: input, shape index: {}]
  %s2 = inlined_call_operand.vmem [shape: bf16[32,96], index: 2, kind: input, shape index: {}]
  %s3 = inlined_call_operand.hbm [shape: f32[1,96], index: 3, kind: input, shape index: {}]
  %s4 = inlined_call_operand.hbm [shape: bf16[32,32], index: 4, kind: input, shape index: {}]
  %s5 = inlined_call_operand.hbm [shape: f32[1,32], index: 5, kind: input, shape index: {}]
  %s6 = inlined_call_operand.vmem [shape: bf16[32,66], index: 6, kind: input, shape index: {}]
  %s7 = inlined_call_operand.hbm [shape: f32[1,66], index: 7, kind: input, shape index: {}]
  %s8 = inlined_call_operand.hbm [shape: f32[1,32], index: 8, kind: input, shape index: {}]
  %s9 = inlined_call_operand.hbm [shape: f32[1,32], index: 9, kind: input, shape index: {}]
  %s10 = inlined_call_operand.vmem [shape: bf16[32,16], index: 10, kind: input, shape index: {}]
  %s11 = inlined_call_operand.vmem [shape: f32[1,16], index: 11, kind: input, shape index: {}]
  %s12 = inlined_call_operand.vmem [shape: bf16[16,128], index: 12, kind: input, shape index: {}]
  %s13 = inlined_call_operand.vmem [shape: f32[1,128], index: 13, kind: input, shape index: {}]
  %s14 = inlined_call_operand.hbm [shape: f32[2,2,8], index: 14, kind: output, shape index: {}]
  %s15 = sld [smem:[#allocation0]]
  $region121: #{tpu_custom_call.1} parent=0
    _
  %s17 = ssub.s32 1, %s15
  %s18 = scalar_select 0, %s17, %s15
  $region1: #{tpu_custom_call.1} parent=0
    #allocation2 [shape = 'u8[4096]{0}', space=vmem, size = 0x1000, scoped, tag = 'input window, operand 0']
    #allocation3 [shape = 's32[2]{0}', space=sflag, size = 0x8, scoped, tag = 'scoped memory for tpu_custom_call.1']
    #allocation4 [shape = 's32[2]{0}', space=sflag, size = 0x8, scoped, tag = 'scoped memory for tpu_custom_call.1']
    #allocation5 [shape = 'u8[4096]{0}', space=vmem, size = 0x1000, scoped, tag = 'input window, operand 1, single buffered']
    #allocation6 [shape = 's32[1]{0}', space=sflag, size = 0x4, scoped, tag = 'scoped memory for tpu_custom_call.1']
    #allocation7 [shape = 'u8[512]{0}', space=vmem, size = 0x400, scoped, tag = 'input window, operand 3, single buffered']
    #allocation8 [shape = 'u8[8192]{0}', space=vmem, size = 0x2000, scoped, tag = 'input window, operand 4, single buffered']
    #allocation9 [shape = 's32[1]{0}', space=sflag, size = 0x4, scoped, tag = 'scoped memory for tpu_custom_call.1']
    #allocation10 [shape = 'u8[512]{0}', space=vmem, size = 0x400, scoped, tag = 'input window, operand 5, single buffered']
    #allocation11 [shape = 'u8[512]{0}', space=vmem, size = 0x400, scoped, tag = 'input window, operand 7, single buffered']
    #allocation12 [shape = 's32[1]{0}', space=sflag, size = 0x4, scoped, tag = 'scoped memory for tpu_custom_call.1']
    #allocation13 [shape = 'u8[512]{0}', space=vmem, size = 0x400, scoped, tag = 'input window, operand 8, single buffered']
    #allocation14 [shape = 'u8[512]{0}', space=vmem, size = 0x400, scoped, tag = 'input window, operand 9, single buffered']
    #allocation15 [shape = 's32[1]{0}', space=sflag, size = 0x4, scoped, tag = 'scoped memory for tpu_custom_call.1']
    #allocation16 [shape = 'u8[2048]{0}', space=vmem, size = 0x800, scoped, tag = 'output window, operand 0']
    %19 = vsyncpa [#allocation3], 0
    %s20 = scalar_lea.sflag [#allocation3], 1
    %21 = vsyncpa %s20, 0
    %22 = vsyncpa [#allocation6], 0
    %23 = vsyncpa [#allocation9], 0
    %24 = vsyncpa [#allocation12], 0
    %25 = vsyncpa [#allocation15], 0
    %26 = vsyncpa [#allocation4], 0
    %s27 = scalar_lea.sflag [#allocation4], 1
    %28 = vsyncpa %s27, 0
    loop: start=0, step=1, limit=4
    $region2: #{tpu_custom_call.1} parent=1 // loop_pre_header
      _
    $region3: #{tpu_custom_call.1} parent=1 // loop_header
      %s30 = sphi 0, %s34
      %p31 = scmp.ge.s32.totalorder %s30, 4
      %s40 = sphi 0, %s42
      %s43 = sphi 0, %s40
      %s44 = sphi 0, %s43
      %s60 = sphi 0, %s44
      %s64 = sphi 0, %s64
      %s66 = sphi 0, %s64
      %s67 = sphi 0, %s66
      %s81 = sphi 0, %s67
      %s85 = sphi 0, %s85
      %s87 = sphi 0, %s85
      %s88 = sphi 0, %s87
      %s102 = sphi 0, %s88
      %s106 = sphi 0, %s106
      %s108 = sphi 0, %s106
      %s109 = sphi 0, %s108
      %s123 = sphi 0, %s109
      %s127 = sphi 0, %s127
      %s129 = sphi 0, %s127
      %s130 = sphi 0, %s129
      %s144 = sphi 0, %s130
      %s148 = sphi 0, %s148
      %s150 = sphi 0, %s148
      %s151 = sphi 0, %s150
      %s165 = sphi 0, %s151
      %s169 = sphi 0, %s169
      %s171 = sphi 0, %s169
      %s172 = sphi 0, %s171
      %s186 = sphi 0, %s172
      %s190 = sphi 0, %s190
      %s192 = sphi 0, %s190
      %s193 = sphi 0, %s192
      %s207 = sphi 0, %s193
      %s211 = sphi 0, %s211
      %s213 = sphi 0, %s211
      %s214 = sphi 0, %s213
      %s228 = sphi 0, %s214
      %s232 = sphi 0, %s232
      %s234 = sphi 0, %s232
      %s235 = sphi 0, %s234
      %s249 = sphi 0, %s235
      %s253 = sphi 0, %s253
      %s255 = sphi 0, %s253
      %s256 = sphi 0, %s255
      %s270 = sphi 0, %s256
      %s274 = sphi 0, %s274
      %s276 = sphi 0, %s274
      %s277 = sphi 0, %s276
      %s291 = sphi 0, %s277
      %s295 = sphi 0, %s295
      %s297 = sphi 0, %s295
      %s298 = sphi 0, %s297
      %s312 = sphi 0, %s298
      %s316 = sphi 0, %s316
      %s318 = sphi 0, %s316
      %s319 = sphi 0, %s318
      %s333 = sphi 0, %s319
      %s339 = sphi 0, %s341
      %s342 = sphi 0, %s339
      %s343 = sphi 0, %s342
      %s359 = sphi 0, %s343
    $region4: #{tpu_custom_call.1} parent=1 // loop_header_branch
      %33 = sbr.rel (%p31) target = $region8
    $region5: #{tpu_custom_call.1} parent=1 // loop_body
      %s35 = ssub.s32 %s30, 1
      %s36 = ssub.s32 %s30, 2
      %s37 = sadd.s32 %s30, 1
      %s38 = ssub.s32 %s30, %s37
      %p39 = scmp.eq.s32.totalorder %s38, 0
      %s41 = sadd.s32 %s40, 1
      %s42 = scalar_select %p39, %s40, %s41
      %p45 = pneg %p39
      %p46 = scmp.eq.s32.totalorder %s30, 1
      %p47 = por %p45, %p46
      %p48 = scmp.ne.s32.totalorder %s40, %s43
      %p49 = scmp.eq.s32.totalorder %s30, 0
      %p50 = por %p48, %p49
      %p51 = scmp.ne.s32.totalorder %s40, %s43
      %p52 = scmp.eq.s32.totalorder %s35, 1
      %p53 = por %p51, %p52
      %p54 = scmp.ne.s32.totalorder %s43, %s44
      %p55 = scmp.eq.s32.totalorder %s35, 0
      %p56 = por %p54, %p55
      %p57 = scmp.ne.s32.totalorder %s43, %s44
      %p58 = scmp.eq.s32.totalorder %s36, 1
      %p59 = por %p57, %p58
      %p61 = scmp.ne.s32.totalorder %s44, %s60
      %p62 = scmp.eq.s32.totalorder %s36, 0
      %p63 = por %p61, %p62
      %s65 = sadd.s32 %s64, 1
      %p68 = scmp.eq.s32.totalorder %s30, 1
      %p69 = scmp.ne.s32.totalorder %s64, %s66
      %p70 = scmp.eq.s32.totalorder %s30, 0
      %p71 = por %p69, %p70
      %p72 = scmp.ne.s32.totalorder %s64, %s66
      %p73 = scmp.eq.s32.totalorder %s35, 1
      %p74 = por %p72, %p73
      %p75 = scmp.ne.s32.totalorder %s66, %s67
      %p76 = scmp.eq.s32.totalorder %s35, 0
      %p77 = por %p75, %p76
      %p78 = scmp.ne.s32.totalorder %s66, %s67
      %p79 = scmp.eq.s32.totalorder %s36, 1
      %p80 = por %p78, %p79
      %p82 = scmp.ne.s32.totalorder %s67, %s81
      %p83 = scmp.eq.s32.totalorder %s36, 0
      %p84 = por %p82, %p83
      %s86 = sadd.s32 %s85, 1
      %p89 = scmp.eq.s32.totalorder %s30, 1
      %p90 = scmp.ne.s32.totalorder %s85, %s87
      %p91 = scmp.eq.s32.totalorder %s30, 0
      %p92 = por %p90, %p91
      %p93 = scmp.ne.s32.totalorder %s85, %s87
      %p94 = scmp.eq.s32.totalorder %s35, 1
      %p95 = por %p93, %p94
      %p96 = scmp.ne.s32.totalorder %s87, %s88
      %p97 = scmp.eq.s32.totalorder %s35, 0
      %p98 = por %p96, %p97
      %p99 = scmp.ne.s32.totalorder %s87, %s88
      %p100 = scmp.eq.s32.totalorder %s36, 1
      %p101 = por %p99, %p100
      %p103 = scmp.ne.s32.totalorder %s88, %s102
      %p104 = scmp.eq.s32.totalorder %s36, 0
      %p105 = por %p103, %p104
      %s107 = sadd.s32 %s106, 1
      %p110 = scmp.eq.s32.totalorder %s30, 1
      %p111 = scmp.ne.s32.totalorder %s106, %s108
      %p112 = scmp.eq.s32.totalorder %s30, 0
      %p113 = por %p111, %p112
      %p114 = scmp.ne.s32.totalorder %s106, %s108
      %p115 = scmp.eq.s32.totalorder %s35, 1
      %p116 = por %p114, %p115
      %p117 = scmp.ne.s32.totalorder %s108, %s109
      %p118 = scmp.eq.s32.totalorder %s35, 0
      %p119 = por %p117, %p118
      %p120 = scmp.ne.s32.totalorder %s108, %s109
      %p121 = scmp.eq.s32.totalorder %s36, 1
      %p122 = por %p120, %p121
      %p124 = scmp.ne.s32.totalorder %s109, %s123
      %p125 = scmp.eq.s32.totalorder %s36, 0
      %p126 = por %p124, %p125
      %s128 = sadd.s32 %s127, 1
      %p131 = scmp.eq.s32.totalorder %s30, 1
      %p132 = scmp.ne.s32.totalorder %s127, %s129
      %p133 = scmp.eq.s32.totalorder %s30, 0
      %p134 = por %p132, %p133
      %p135 = scmp.ne.s32.totalorder %s127, %s129
      %p136 = scmp.eq.s32.totalorder %s35, 1
      %p137 = por %p135, %p136
      %p138 = scmp.ne.s32.totalorder %s129, %s130
      %p139 = scmp.eq.s32.totalorder %s35, 0
      %p140 = por %p138, %p139
      %p141 = scmp.ne.s32.totalorder %s129, %s130
      %p142 = scmp.eq.s32.totalorder %s36, 1
      %p143 = por %p141, %p142
      %p145 = scmp.ne.s32.totalorder %s130, %s144
      %p146 = scmp.eq.s32.totalorder %s36, 0
      %p147 = por %p145, %p146
      %s149 = sadd.s32 %s148, 1
      %p152 = scmp.eq.s32.totalorder %s30, 1
      %p153 = scmp.ne.s32.totalorder %s148, %s150
      %p154 = scmp.eq.s32.totalorder %s30, 0
      %p155 = por %p153, %p154
      %p156 = scmp.ne.s32.totalorder %s148, %s150
      %p157 = scmp.eq.s32.totalorder %s35, 1
      %p158 = por %p156, %p157
      %p159 = scmp.ne.s32.totalorder %s150, %s151
      %p160 = scmp.eq.s32.totalorder %s35, 0
      %p161 = por %p159, %p160
      %p162 = scmp.ne.s32.totalorder %s150, %s151
      %p163 = scmp.eq.s32.totalorder %s36, 1
      %p164 = por %p162, %p163
      %p166 = scmp.ne.s32.totalorder %s151, %s165
      %p167 = scmp.eq.s32.totalorder %s36, 0
      %p168 = por %p166, %p167
      %s170 = sadd.s32 %s169, 1
      %p173 = scmp.eq.s32.totalorder %s30, 1
      %p174 = scmp.ne.s32.totalorder %s169, %s171
      %p175 = scmp.eq.s32.totalorder %s30, 0
      %p176 = por %p174, %p175
      %p177 = scmp.ne.s32.totalorder %s169, %s171
      %p178 = scmp.eq.s32.totalorder %s35, 1
      %p179 = por %p177, %p178
      %p180 = scmp.ne.s32.totalorder %s171, %s172
      %p181 = scmp.eq.s32.totalorder %s35, 0
      %p182 = por %p180, %p181
      %p183 = scmp.ne.s32.totalorder %s171, %s172
      %p184 = scmp.eq.s32.totalorder %s36, 1
      %p185 = por %p183, %p184
      %p187 = scmp.ne.s32.totalorder %s172, %s186
      %p188 = scmp.eq.s32.totalorder %s36, 0
      %p189 = por %p187, %p188
      %s191 = sadd.s32 %s190, 1
      %p194 = scmp.eq.s32.totalorder %s30, 1
      %p195 = scmp.ne.s32.totalorder %s190, %s192
      %p196 = scmp.eq.s32.totalorder %s30, 0
      %p197 = por %p195, %p196
      %p198 = scmp.ne.s32.totalorder %s190, %s192
      %p199 = scmp.eq.s32.totalorder %s35, 1
      %p200 = por %p198, %p199
      %p201 = scmp.ne.s32.totalorder %s192, %s193
      %p202 = scmp.eq.s32.totalorder %s35, 0
      %p203 = por %p201, %p202
      %p204 = scmp.ne.s32.totalorder %s192, %s193
      %p205 = scmp.eq.s32.totalorder %s36, 1
      %p206 = por %p204, %p205
      %p208 = scmp.ne.s32.totalorder %s193, %s207
      %p209 = scmp.eq.s32.totalorder %s36, 0
      %p210 = por %p208, %p209
      %s212 = sadd.s32 %s211, 1
      %p215 = scmp.eq.s32.totalorder %s30, 1
      %p216 = scmp.ne.s32.totalorder %s211, %s213
      %p217 = scmp.eq.s32.totalorder %s30, 0
      %p218 = por %p216, %p217
      %p219 = scmp.ne.s32.totalorder %s211, %s213
      %p220 = scmp.eq.s32.totalorder %s35, 1
      %p221 = por %p219, %p220
      %p222 = scmp.ne.s32.totalorder %s213, %s214
      %p223 = scmp.eq.s32.totalorder %s35, 0
      %p224 = por %p222, %p223
      %p225 = scmp.ne.s32.totalorder %s213, %s214
      %p226 = scmp.eq.s32.totalorder %s36, 1
      %p227 = por %p225, %p226
      %p229 = scmp.ne.s32.totalorder %s214, %s228
      %p230 = scmp.eq.s32.totalorder %s36, 0
      %p231 = por %p229, %p230
      %s233 = sadd.s32 %s232, 1
      %p236 = scmp.eq.s32.totalorder %s30, 1
      %p237 = scmp.ne.s32.totalorder %s232, %s234
      %p238 = scmp.eq.s32.totalorder %s30, 0
      %p239 = por %p237, %p238
      %p240 = scmp.ne.s32.totalorder %s232, %s234
      %p241 = scmp.eq.s32.totalorder %s35, 1
      %p242 = por %p240, %p241
      %p243 = scmp.ne.s32.totalorder %s234, %s235
      %p244 = scmp.eq.s32.totalorder %s35, 0
      %p245 = por %p243, %p244
      %p246 = scmp.ne.s32.totalorder %s234, %s235
      %p247 = scmp.eq.s32.totalorder %s36, 1
      %p248 = por %p246, %p247
      %p250 = scmp.ne.s32.totalorder %s235, %s249
      %p251 = scmp.eq.s32.totalorder %s36, 0
      %p252 = por %p250, %p251
      %s254 = sadd.s32 %s253, 1
      %p257 = scmp.eq.s32.totalorder %s30, 1
      %p258 = scmp.ne.s32.totalorder %s253, %s255
      %p259 = scmp.eq.s32.totalorder %s30, 0
      %p260 = por %p258, %p259
      %p261 = scmp.ne.s32.totalorder %s253, %s255
      %p262 = scmp.eq.s32.totalorder %s35, 1
      %p263 = por %p261, %p262
      %p264 = scmp.ne.s32.totalorder %s255, %s256
      %p265 = scmp.eq.s32.totalorder %s35, 0
      %p266 = por %p264, %p265
      %p267 = scmp.ne.s32.totalorder %s255, %s256
      %p268 = scmp.eq.s32.totalorder %s36, 1
      %p269 = por %p267, %p268
      %p271 = scmp.ne.s32.totalorder %s256, %s270
      %p272 = scmp.eq.s32.totalorder %s36, 0
      %p273 = por %p271, %p272
      %s275 = sadd.s32 %s274, 1
      %p278 = scmp.eq.s32.totalorder %s30, 1
      %p279 = scmp.ne.s32.totalorder %s274, %s276
      %p280 = scmp.eq.s32.totalorder %s30, 0
      %p281 = por %p279, %p280
      %p282 = scmp.ne.s32.totalorder %s274, %s276
      %p283 = scmp.eq.s32.totalorder %s35, 1
      %p284 = por %p282, %p283
      %p285 = scmp.ne.s32.totalorder %s276, %s277
      %p286 = scmp.eq.s32.totalorder %s35, 0
      %p287 = por %p285, %p286
      %p288 = scmp.ne.s32.totalorder %s276, %s277
      %p289 = scmp.eq.s32.totalorder %s36, 1
      %p290 = por %p288, %p289
      %p292 = scmp.ne.s32.totalorder %s277, %s291
      %p293 = scmp.eq.s32.totalorder %s36, 0
      %p294 = por %p292, %p293
      %s296 = sadd.s32 %s295, 1
      %p299 = scmp.eq.s32.totalorder %s30, 1
      %p300 = scmp.ne.s32.totalorder %s295, %s297
      %p301 = scmp.eq.s32.totalorder %s30, 0
      %p302 = por %p300, %p301
      %p303 = scmp.ne.s32.totalorder %s295, %s297
      %p304 = scmp.eq.s32.totalorder %s35, 1
      %p305 = por %p303, %p304
      %p306 = scmp.ne.s32.totalorder %s297, %s298
      %p307 = scmp.eq.s32.totalorder %s35, 0
      %p308 = por %p306, %p307
      %p309 = scmp.ne.s32.totalorder %s297, %s298
      %p310 = scmp.eq.s32.totalorder %s36, 1
      %p311 = por %p309, %p310
      %p313 = scmp.ne.s32.totalorder %s298, %s312
      %p314 = scmp.eq.s32.totalorder %s36, 0
      %p315 = por %p313, %p314
      %s317 = sadd.s32 %s316, 1
      %p320 = scmp.eq.s32.totalorder %s30, 1
      %p321 = scmp.ne.s32.totalorder %s316, %s318
      %p322 = scmp.eq.s32.totalorder %s30, 0
      %p323 = por %p321, %p322
      %p324 = scmp.ne.s32.totalorder %s316, %s318
      %p325 = scmp.eq.s32.totalorder %s35, 1
      %p326 = por %p324, %p325
      %p327 = scmp.ne.s32.totalorder %s318, %s319
      %p328 = scmp.eq.s32.totalorder %s35, 0
      %p329 = por %p327, %p328
      %p330 = scmp.ne.s32.totalorder %s318, %s319
      %p331 = scmp.eq.s32.totalorder %s36, 1
      %p332 = por %p330, %p331
      %p334 = scmp.ne.s32.totalorder %s319, %s333
      %p335 = scmp.eq.s32.totalorder %s36, 0
      %p336 = por %p334, %p335
      %s337 = ssub.s32 %s30, %s37
      %p338 = scmp.eq.s32.totalorder %s337, 0
      %s340 = sadd.s32 %s339, 1
      %s341 = scalar_select %p338, %s339, %s340
      %p344 = pneg %p338
      %p345 = scmp.eq.s32.totalorder %s30, 1
      %p346 = por %p344, %p345
      %p347 = scmp.ne.s32.totalorder %s339, %s342
      %p348 = scmp.eq.s32.totalorder %s30, 0
      %p349 = por %p347, %p348
      %p350 = scmp.ne.s32.totalorder %s339, %s342
      %p351 = scmp.eq.s32.totalorder %s35, 1
      %p352 = por %p350, %p351
      %p353 = scmp.ne.s32.totalorder %s342, %s343
      %p354 = scmp.eq.s32.totalorder %s35, 0
      %p355 = por %p353, %p354
      %p356 = scmp.ne.s32.totalorder %s342, %s343
      %p357 = scmp.eq.s32.totalorder %s36, 1
      %p358 = por %p356, %p357
      %p360 = scmp.ne.s32.totalorder %s343, %s359
      %p361 = scmp.eq.s32.totalorder %s36, 0
      %p362 = por %p360, %p361
      %p363 = scmp.le.s32.totalorder 1, %s30
      %p364 = scmp.lt.s32.totalorder %s30, 3
      %p365 = pnand %p363, %p364
      %p366 = pneg %p365
      // Predicated region
      $region9: #{tpu_custom_call.1} parent=5 // pred_check
        _
      $region10: #{tpu_custom_call.1} parent=5 // pred_check_branch
        %368 = sbr.rel (%p365) target = $region12
      $region11: #{tpu_custom_call.1} parent=5 // pred_region
        %s369 = ssub.s32 %s30, 1
        // Predicated region
        $region13: #{tpu_custom_call.1} parent=11 // pred_check
          %p370 = pneg %p77
        $region14: #{tpu_custom_call.1} parent=11 // pred_check_branch
          %372 = sbr.rel (%p370) target = $region16
        $region15: #{tpu_custom_call.1} parent=11 // pred_region
          %s374 = ssub.s32 128, 128
          %375 = vsyncadd [#allocation6], %s374
          %s377 = sshll.u32 [#allocation5], 4
          %s378 = int_to_ptr.vmem [resolvable:$true] %s377
          %380 = dma.hbm_to_vmem [thread:$0]  %s1, 128, %s378, [#allocation6]
        $region16: #{tpu_custom_call.1} parent=11 // pred_fallthru
          _
        // Predicated region
        $region17: #{tpu_custom_call.1} parent=11 // pred_check
          %p381 = pneg %p98
        $region18: #{tpu_custom_call.1} parent=11 // pred_check_branch
          %383 = sbr.rel (%p381) target = $region20
        $region19: #{tpu_custom_call.1} parent=11 // pred_region
          _
        $region20: #{tpu_custom_call.1} parent=11 // pred_fallthru
          _
        // Predicated region
        $region21: #{tpu_custom_call.1} parent=11 // pred_check
          %p384 = pneg %p119
        $region22: #{tpu_custom_call.1} parent=11 // pred_check_branch
          %386 = sbr.rel (%p384) target = $region24
        $region23: #{tpu_custom_call.1} parent=11 // pred_region
          %s388 = ssub.s32 16, 16
          %389 = vsyncadd [#allocation6], %s388
          %s391 = sshll.u32 [#allocation7], 4
          %s392 = int_to_ptr.vmem [resolvable:$true] %s391
          %394 = dma.hbm_to_vmem [thread:$0]  %s3, 16, %s392, [#allocation6]
        $region24: #{tpu_custom_call.1} parent=11 // pred_fallthru
          _
        // Predicated region
        $region25: #{tpu_custom_call.1} parent=11 // pred_check
          %p395 = pneg %p140
        $region26: #{tpu_custom_call.1} parent=11 // pred_check_branch
          %397 = sbr.rel (%p395) target = $region28
        $region27: #{tpu_custom_call.1} parent=11 // pred_region
          %s399 = ssub.s32 256, 256
          %400 = vsyncadd [#allocation9], %s399
          %s401 = sshll.u32 [#allocation8], 4
          %s402 = int_to_ptr.vmem [resolvable:$true] %s401
          %407 = dma.hbm_to_vmem [thread:$0]  %s4, 256, %s402, [#allocation9], 64, 64, 4
        $region28: #{tpu_custom_call.1} parent=11 // pred_fallthru
          _
        // Predicated region
        $region29: #{tpu_custom_call.1} parent=11 // pred_check
          %p408 = pneg %p161
        $region30: #{tpu_custom_call.1} parent=11 // pred_check_branch
          %410 = sbr.rel (%p408) target = $region32
        $region31: #{tpu_custom_call.1} parent=11 // pred_region
          %s412 = ssub.s32 16, 16
          %413 = vsyncadd [#allocation9], %s412
          %s415 = sshll.u32 [#allocation10], 4
          %s416 = int_to_ptr.vmem [resolvable:$true] %s415
          %418 = dma.hbm_to_vmem [thread:$0]  %s5, 16, %s416, [#allocation9]
        $region32: #{tpu_custom_call.1} parent=11 // pred_fallthru
          _
        // Predicated region
        $region33: #{tpu_custom_call.1} parent=11 // pred_check
          %p419 = pneg %p182
        $region34: #{tpu_custom_call.1} parent=11 // pred_check_branch
          %421 = sbr.rel (%p419) target = $region36
        $region35: #{tpu_custom_call.1} parent=11 // pred_region
          _
        $region36: #{tpu_custom_call.1} parent=11 // pred_fallthru
          _
        // Predicated region
        $region37: #{tpu_custom_call.1} parent=11 // pred_check
          %p422 = pneg %p203
        $region38: #{tpu_custom_call.1} parent=11 // pred_check_branch
          %424 = sbr.rel (%p422) target = $region40
        $region39: #{tpu_custom_call.1} parent=11 // pred_region
          %s426 = ssub.s32 16, 16
          %427 = vsyncadd [#allocation12], %s426
          %s429 = sshll.u32 [#allocation11], 4
          %s430 = int_to_ptr.vmem [resolvable:$true] %s429
          %432 = dma.hbm_to_vmem [thread:$0]  %s7, 16, %s430, [#allocation12]
        $region40: #{tpu_custom_call.1} parent=11 // pred_fallthru
          _
        // Predicated region
        $region41: #{tpu_custom_call.1} parent=11 // pred_check
          %p433 = pneg %p224
        $region42: #{tpu_custom_call.1} parent=11 // pred_check_branch
          %435 = sbr.rel (%p433) target = $region44
        $region43: #{tpu_custom_call.1} parent=11 // pred_region
          %s437 = ssub.s32 16, 16
          %438 = vsyncadd [#allocation12], %s437
          %s440 = sshll.u32 [#allocation13], 4
          %s441 = int_to_ptr.vmem [resolvable:$true] %s440
          %443 = dma.hbm_to_vmem [thread:$0]  %s8, 16, %s441, [#allocation12]
        $region44: #{tpu_custom_call.1} parent=11 // pred_fallthru
          _
        // Predicated region
        $region45: #{tpu_custom_call.1} parent=11 // pred_check
          %p444 = pneg %p245
        $region46: #{tpu_custom_call.1} parent=11 // pred_check_branch
          %446 = sbr.rel (%p444) target = $region48
        $region47: #{tpu_custom_call.1} parent=11 // pred_region
          %s448 = ssub.s32 16, 16
          %449 = vsyncadd [#allocation15], %s448
          %s451 = sshll.u32 [#allocation14], 4
          %s452 = int_to_ptr.vmem [resolvable:$true] %s451
          %454 = dma.hbm_to_vmem [thread:$0]  %s9, 16, %s452, [#allocation15]
        $region48: #{tpu_custom_call.1} parent=11 // pred_fallthru
          _
        // Predicated region
        $region49: #{tpu_custom_call.1} parent=11 // pred_check
          %p455 = pneg %p266
        $region50: #{tpu_custom_call.1} parent=11 // pred_check_branch
          %457 = sbr.rel (%p455) target = $region52
        $region51: #{tpu_custom_call.1} parent=11 // pred_region
          _
        $region52: #{tpu_custom_call.1} parent=11 // pred_fallthru
          _
        // Predicated region
        $region53: #{tpu_custom_call.1} parent=11 // pred_check
          %p458 = pneg %p287
        $region54: #{tpu_custom_call.1} parent=11 // pred_check_branch
          %460 = sbr.rel (%p458) target = $region56
        $region55: #{tpu_custom_call.1} parent=11 // pred_region
          _
        $region56: #{tpu_custom_call.1} parent=11 // pred_fallthru
          _
        // Predicated region
        $region57: #{tpu_custom_call.1} parent=11 // pred_check
          %p461 = pneg %p308
        $region58: #{tpu_custom_call.1} parent=11 // pred_check_branch
          %463 = sbr.rel (%p461) target = $region60
        $region59: #{tpu_custom_call.1} parent=11 // pred_region
          _
        $region60: #{tpu_custom_call.1} parent=11 // pred_fallthru
          _
        // Predicated region
        $region61: #{tpu_custom_call.1} parent=11 // pred_check
          %p464 = pneg %p329
        $region62: #{tpu_custom_call.1} parent=11 // pred_check_branch
          %466 = sbr.rel (%p464) target = $region64
        $region63: #{tpu_custom_call.1} parent=11 // pred_region
          _
        $region64: #{tpu_custom_call.1} parent=11 // pred_fallthru
          _
      $region12: #{tpu_custom_call.1} parent=5 // pred_fallthru
        _
      %p467 = scmp.lt.s32.totalorder %s30, 2
      // Predicated region
      $region65: #{tpu_custom_call.1} parent=5 // pred_check
        %p468 = pneg %p467
      $region66: #{tpu_custom_call.1} parent=5 // pred_check_branch
        %470 = sbr.rel (%p468) target = $region68
      $region67: #{tpu_custom_call.1} parent=5 // pred_region
        // Predicated region
        $region69: #{tpu_custom_call.1} parent=67 // pred_check
          %p471 = pneg %p50
        $region70: #{tpu_custom_call.1} parent=67 // pred_check_branch
          %473 = sbr.rel (%p471) target = $region72
        $region71: #{tpu_custom_call.1} parent=67 // pred_region
          %s474 = sand.u32 %s40, 1
          %s475 = scalar_lea.sflag [#allocation3], %s474
          %s476 = sand.u32 %s40, 1
          %s477 = smul.addr %s476, 4
          %s478 = scalar_lea.vmem [#allocation2], %s477
          %s480 = ssub.s32 64, 64
          %481 = vsyncadd %s475, %s480
          %s482 = smul.addr %s30, 64
          %s483 = scalar_lea.hbm %s0, %s482
          %s485 = sshll.u32 %s478, 4
          %s486 = int_to_ptr.vmem [resolvable:$true] %s485
          %488 = dma.hbm_to_vmem [thread:$0]  %s483, 64, %s486, %s475
        $region72: #{tpu_custom_call.1} parent=67 // pred_fallthru
          _
      $region68: #{tpu_custom_call.1} parent=5 // pred_fallthru
        _
      %p489 = scmp.le.s32.totalorder 1, %s30
      %p490 = scmp.lt.s32.totalorder %s30, 3
      %p491 = pnand %p489, %p490
      %p492 = pneg %p491
      // Predicated region
      $region73: #{tpu_custom_call.1} parent=5 // pred_check
        _
      $region74: #{tpu_custom_call.1} parent=5 // pred_check_branch
        %494 = sbr.rel (%p491) target = $region76
      $region75: #{tpu_custom_call.1} parent=5 // pred_region
        %s495 = ssub.s32 %s30, 1
        %s496 = sand.u32 %s43, 1
        %s497 = scalar_lea.sflag [#allocation3], %s496
        %s498 = sand.u32 %s43, 1
        %s499 = smul.addr %s498, 4
        %s500 = scalar_lea.vmem [#allocation2], %s499
        // Predicated region
        $region77: #{tpu_custom_call.1} parent=75 // pred_check
          %p501 = pneg %p56
        $region78: #{tpu_custom_call.1} parent=75 // pred_check_branch
          %503 = sbr.rel (%p501) target = $region80
        $region79: #{tpu_custom_call.1} parent=75 // pred_region
          %504 = dma.done %s497, 64
        $region80: #{tpu_custom_call.1} parent=75 // pred_fallthru
          _
        // Predicated region
        $region81: #{tpu_custom_call.1} parent=75 // pred_check
          %p505 = pneg %p77
        $region82: #{tpu_custom_call.1} parent=75 // pred_check_branch
          %507 = sbr.rel (%p505) target = $region84
        $region83: #{tpu_custom_call.1} parent=75 // pred_region
          %508 = dma.done [#allocation6], 128
        $region84: #{tpu_custom_call.1} parent=75 // pred_fallthru
          _
        // Predicated region
        $region85: #{tpu_custom_call.1} parent=75 // pred_check
          %p509 = pneg %p119
        $region86: #{tpu_custom_call.1} parent=75 // pred_check_branch
          %511 = sbr.rel (%p509) target = $region88
        $region87: #{tpu_custom_call.1} parent=75 // pred_region
          %512 = dma.done [#allocation6], 16
        $region88: #{tpu_custom_call.1} parent=75 // pred_fallthru
          _
        // Predicated region
        $region89: #{tpu_custom_call.1} parent=75 // pred_check
          %p513 = pneg %p140
        $region90: #{tpu_custom_call.1} parent=75 // pred_check_branch
          %515 = sbr.rel (%p513) target = $region92
        $region91: #{tpu_custom_call.1} parent=75 // pred_region
          %516 = dma.done [#allocation9], 256
        $region92: #{tpu_custom_call.1} parent=75 // pred_fallthru
          _
        // Predicated region
        $region93: #{tpu_custom_call.1} parent=75 // pred_check
          %p517 = pneg %p161
        $region94: #{tpu_custom_call.1} parent=75 // pred_check_branch
          %519 = sbr.rel (%p517) target = $region96
        $region95: #{tpu_custom_call.1} parent=75 // pred_region
          %520 = dma.done [#allocation9], 16
        $region96: #{tpu_custom_call.1} parent=75 // pred_fallthru
          _
        // Predicated region
        $region97: #{tpu_custom_call.1} parent=75 // pred_check
          %p521 = pneg %p203
        $region98: #{tpu_custom_call.1} parent=75 // pred_check_branch
          %523 = sbr.rel (%p521) target = $region100
        $region99: #{tpu_custom_call.1} parent=75 // pred_region
          %524 = dma.done [#allocation12], 16
        $region100: #{tpu_custom_call.1} parent=75 // pred_fallthru
          _
        // Predicated region
        $region101: #{tpu_custom_call.1} parent=75 // pred_check
          %p525 = pneg %p224
        $region102: #{tpu_custom_call.1} parent=75 // pred_check_branch
          %527 = sbr.rel (%p525) target = $region104
        $region103: #{tpu_custom_call.1} parent=75 // pred_region
          %528 = dma.done [#allocation12], 16
        $region104: #{tpu_custom_call.1} parent=75 // pred_fallthru
          _
        // Predicated region
        $region105: #{tpu_custom_call.1} parent=75 // pred_check
          %p529 = pneg %p245
        $region106: #{tpu_custom_call.1} parent=75 // pred_check_branch
          %531 = sbr.rel (%p529) target = $region108
        $region107: #{tpu_custom_call.1} parent=75 // pred_region
          %532 = dma.done [#allocation15], 16
        $region108: #{tpu_custom_call.1} parent=75 // pred_fallthru
          _
        %s533 = sand.u32 %s43, 1
        %s534 = scalar_lea.sflag [#allocation3], %s533
        %s535 = sand.u32 %s43, 1
        %s536 = smul.addr %s535, 4
        %s537 = scalar_lea.vmem [#allocation2], %s536
        %p538 = pneg %p56
        %p539 = pneg %p53
        %p540 = pneg %p77
        %p541 = pneg %p74
        %p542 = pneg %p98
        %p543 = pneg %p95
        %p544 = pneg %p119
        %p545 = pneg %p116
        %p546 = pneg %p140
        %p547 = pneg %p137
        %p548 = pneg %p161
        %p549 = pneg %p158
        %p550 = pneg %p182
        %p551 = pneg %p179
        %p552 = pneg %p203
        %p553 = pneg %p200
        %p554 = pneg %p224
        %p555 = pneg %p221
        %p556 = pneg %p245
        %p557 = pneg %p242
        %p558 = pneg %p266
        %p559 = pneg %p263
        %p560 = pneg %p287
        %p561 = pneg %p284
        %p562 = pneg %p308
        %p563 = pneg %p305
        %p564 = pneg %p329
        %p565 = pneg %p326
        %p566 = pneg %p355
        %p567 = pneg %p352
        %s568 = sand.u32 %s342, 1
        %s569 = scalar_lea.sflag [#allocation4], %s568
        %s570 = sand.u32 %s342, 1
        %s571 = smul.addr %s570, 2
        %s572 = scalar_lea.vmem [#allocation16], %s571
        %v574 = vld [vmem:[%s500] sm:$0xf]
        %v575 = vunpack.c.l.bf16 %v574
        %v576 = vld [vmem:[#allocation5] sm:$0xff]
        %v577 = vadd.f32 %v575, %v576
        %v578 = vld [vmem:[%s2] sm:$0xf]
        %v579 = vld [vmem:[%s2 + $0x4] sm:$0xf]
        %v580 = vld [vmem:[%s2 + $0x8] sm:$0xf]
        %v581 = vld [vmem:[%s2 + $0xc] sm:$0xf]
        %v582 = vpack.c.bf16 %v577, %v577
        %v583 = vld [vmem:[#allocation7] sm:$0x1]
        %v585 = vlaneseq
        %v586 = vshrl.u32 %v585, 7
        %v587 = vsub.s32 0, %v586
        %v588 = vrot.slane %v583, %v587
        %v594 = vunpack.c.l.b16 %v578
        %v595 = vunpack.c.l.b16 %v579
        %v596 = vunpack.c.l.b16 %v580
        %v597 = vunpack.c.l.b16 %v581
        %v598 = vpack.c.b16 %v595, %v594
        %v599 = vpack.c.b16 %v597, %v596
        %vm602 = vcmask 261120
        %v604 = vsel %vm602, %v582, 0
        %606 = vmatprep.subr.bf16.mxu0 0
        %607 = vmatpush1.bf16.msra.mxu0 0
        %608 = vmatprep.subr.bf16.mxu0 0
        %609 = vmatpush1.bf16.msra.mxu0 0
        %610 = vmatprep.subr.bf16.mxu0 0
        %611 = vmatpush1.bf16.msra.mxu0 0
        %612 = vmatprep.subr.bf16.mxu0 0
        %613 = vmatpush1.bf16.msra.mxu0 0
        %614 = vmatprep.subr.bf16.mxu0 0
        %615 = vmatpush1.bf16.msra.mxu0 0
        %616 = vmatprep.subr.bf16.mxu0 0
        %617 = vmatpush1.bf16.msra.mxu0 0
        %618 = vmatprep.subr.bf16.mxu0 0
        %619 = vmatpush1.bf16.msra.mxu0 %v599
        %620 = vmatprep.subr.bf16.mxu0 0
        %621 = vmatpush1.bf16.msra.mxu0 %v598
        %622 = vmatprep.subr.bf16.mxu0 0
        %623 = vmatpush2.bf16.msra.mxu0 0
        %624 = vmatprep.subr.bf16.mxu0 0
        %625 = vmatpush2.bf16.msra.mxu0 0
        %626 = vmatprep.subr.bf16.mxu0 0
        %627 = vmatpush2.bf16.msra.mxu0 0
        %628 = vmatprep.subr.bf16.mxu0 0
        %629 = vmatpush2.bf16.msra.mxu0 0
        %630 = vmatprep.subr.bf16.mxu0 0
        %631 = vmatpush2.bf16.msra.mxu0 0
        %632 = vmatprep.subr.bf16.mxu0 0
        %633 = vmatpush2.bf16.msra.mxu0 0
        %634 = vmatprep.subr.bf16.mxu0 0
        %635 = vmatpush2.bf16.msra.mxu0 0
        %636 = vmatprep.subr.bf16.mxu0 0
        %637 = vmatpush2.bf16.msra.mxu0 0
        %638 = vmatprep.mubr.bf16.mxu0 0
        %639 = vmatmul.mubr.bf16.gmra.mxu0 %v604
        %v640 = vpop.f32.mrf.mxu0
        %v641 = vadd.f32 %v588, %v640
        %v642 = vpop.f32.mrf.mxu0
        %v643 = vpop.f32.mrf.mxu0
        %v644 = vpop.f32.mrf.mxu0
        %645 = vdwg.mxu0
        %v646 = vpack.c.bf16 %v641, %v641
        %v647 = vld [vmem:[#allocation10] sm:$0x1]
        %649 = vrot.lane.b32.xlu0 %v646, 96
        %v650 = vpop.permute.xlu0 %649
        %vm651 = vcmask 130048
        %v653 = vsel %vm651, %v646, 0
        %v656 = vsel %vm651, %v650, 0
        %658 = vmatprep.subr.bf16.mxu0 0
        %659 = vmatpush1.bf16.xpose.msra.mxu0 0
        %660 = vmatprep.subr.bf16.mxu0 0
        %661 = vmatpush1.bf16.xpose.msra.mxu0 0
        %662 = vmatprep.subr.bf16.mxu0 0
        %663 = vmatpush1.bf16.xpose.msra.mxu0 0
        %664 = vmatprep.subr.bf16.mxu0 0
        %665 = vmatpush1.bf16.xpose.msra.mxu0 0
        %666 = vmatprep.subr.bf16.mxu0 0
        %667 = vmatpush1.bf16.xpose.msra.mxu0 0
        %668 = vmatprep.subr.bf16.mxu0 0
        %669 = vmatpush1.bf16.xpose.msra.mxu0 0
        %670 = vmatprep.subr.bf16.mxu0 0
        %671 = vmatpush1.bf16.xpose.msra.mxu0 0
        %672 = vmatprep.subr.bf16.mxu0 0
        %673 = vmatpush1.bf16.xpose.msra.mxu0 %v656
        %674 = vmatprep.subr.bf16.mxu0 0
        %675 = vmatpush2.bf16.xpose.msra.mxu0 0
        %676 = vmatprep.subr.bf16.mxu0 0
        %677 = vmatpush2.bf16.xpose.msra.mxu0 0
        %678 = vmatprep.subr.bf16.mxu0 0
        %679 = vmatpush2.bf16.xpose.msra.mxu0 0
        %680 = vmatprep.subr.bf16.mxu0 0
        %681 = vmatpush2.bf16.xpose.msra.mxu0 0
        %682 = vmatprep.subr.bf16.mxu0 0
        %683 = vmatpush2.bf16.xpose.msra.mxu0 0
        %684 = vmatprep.subr.bf16.mxu0 0
        %685 = vmatpush2.bf16.xpose.msra.mxu0 0
        %686 = vmatprep.subr.bf16.mxu0 0
        %687 = vmatpush2.bf16.xpose.msra.mxu0 0
        %688 = vmatprep.subr.bf16.mxu0 0
        %689 = vmatpush2.bf16.xpose.msra.mxu0 0
        %690 = vmatprep.mubr.bf16.mxu0 0
        %691 = vmatmul.mubr.bf16.gmra.mxu0 %v653
        %v692 = vpop.f32.mrf.mxu0
        %v693 = vadd.f32 0.0, %v692
        %v694 = vpop.f32.mrf.mxu0
        %v695 = vpop.f32.mrf.mxu0
        %v696 = vpop.f32.mrf.mxu0
        %697 = vdwg.mxu0
        %v698 = vmul.f32 %v693, 0.25
        %vm699 = vcmask 64512
        %v700 = vsel %vm699, %v698, -inf
        %701 = vmax.xlane.f32.xlu0 %v700
        %v702 = vpop.xlane.xlu0 %701
        %v703 = vsub.f32 %v698, %v702
        %v704 = vmul.f32 %v703, 1.442695
        %v705 = vpow.pop %v704
        %v706 = vsel %vm699, %v705, 0.0
        %707 = vadd.xlane.f32.xlu0 %v706
        %v708 = vpop.xlane.xlu0 %707
        %v709 = vrcp.pop %v708
        %v710 = vmul.f32 %v705, %v709
        %v711 = vpack.c.bf16 %v710, %v710
        %712 = vrot.lane.b32.xlu0 %v646, 64
        %v713 = vpop.permute.xlu0 %712
        %v715 = vsel %vm699, %v711, 0
        %vm717 = vcmask 1043456
        %v719 = vsel %vm717, %v713, 0
        %721 = vmatprep.subr.bf16.mxu0 0
        %722 = vmatpush1.bf16.msra.mxu0 0
        %723 = vmatprep.subr.bf16.mxu0 0
        %724 = vmatpush1.bf16.msra.mxu0 0
        %725 = vmatprep.subr.bf16.mxu0 0
        %726 = vmatpush1.bf16.msra.mxu0 0
        %727 = vmatprep.subr.bf16.mxu0 0
        %728 = vmatpush1.bf16.msra.mxu0 0
        %729 = vmatprep.subr.bf16.mxu0 0
        %730 = vmatpush1.bf16.msra.mxu0 0
        %731 = vmatprep.subr.bf16.mxu0 0
        %732 = vmatpush1.bf16.msra.mxu0 0
        %733 = vmatprep.subr.bf16.mxu0 0
        %734 = vmatpush1.bf16.msra.mxu0 0
        %735 = vmatprep.subr.bf16.mxu0 0
        %736 = vmatpush1.bf16.msra.mxu0 %v719
        %737 = vmatprep.subr.bf16.mxu0 0
        %738 = vmatpush2.bf16.msra.mxu0 0
        %739 = vmatprep.subr.bf16.mxu0 0
        %740 = vmatpush2.bf16.msra.mxu0 0
        %741 = vmatprep.subr.bf16.mxu0 0
        %742 = vmatpush2.bf16.msra.mxu0 0
        %743 = vmatprep.subr.bf16.mxu0 0
        %744 = vmatpush2.bf16.msra.mxu0 0
        %745 = vmatprep.subr.bf16.mxu0 0
        %746 = vmatpush2.bf16.msra.mxu0 0
        %747 = vmatprep.subr.bf16.mxu0 0
        %748 = vmatpush2.bf16.msra.mxu0 0
        %749 = vmatprep.subr.bf16.mxu0 0
        %750 = vmatpush2.bf16.msra.mxu0 0
        %751 = vmatprep.subr.bf16.mxu0 0
        %752 = vmatpush2.bf16.msra.mxu0 0
        %753 = vmatprep.mubr.bf16.mxu0 0
        %754 = vmatmul.mubr.bf16.gmra.mxu0 %v715
        %v755 = vpop.f32.mrf.mxu0
        %v756 = vadd.f32 0.0, %v755
        %v757 = vpop.f32.mrf.mxu0
        %v758 = vpop.f32.mrf.mxu0
        %v759 = vpop.f32.mrf.mxu0
        %760 = vdwg.mxu0
        %v761 = vld [vmem:[#allocation8] sm:$0xf]
        %v762 = vld [vmem:[#allocation8 + $0x4] sm:$0xf]
        %v763 = vpack.c.bf16 %v756, %v756
        %v766 = vunpack.c.l.b16 %v761
        %v767 = vunpack.c.l.b16 %v762
        %v768 = vpack.c.b16 %v767, %v766
        %v771 = vsel %vm651, %v763, 0
        %773 = vmatprep.subr.bf16.mxu0 0
        %774 = vmatpush1.bf16.msra.mxu0 0
        %775 = vmatprep.subr.bf16.mxu0 0
        %776 = vmatpush1.bf16.msra.mxu0 0
        %777 = vmatprep.subr.bf16.mxu0 0
        %778 = vmatpush1.bf16.msra.mxu0 0
        %779 = vmatprep.subr.bf16.mxu0 0
        %780 = vmatpush1.bf16.msra.mxu0 0
        %781 = vmatprep.subr.bf16.mxu0 0
        %782 = vmatpush1.bf16.msra.mxu0 0
        %783 = vmatprep.subr.bf16.mxu0 0
        %784 = vmatpush1.bf16.msra.mxu0 0
        %785 = vmatprep.subr.bf16.mxu0 0
        %786 = vmatpush1.bf16.msra.mxu0 0
        %787 = vmatprep.subr.bf16.mxu0 0
        %788 = vmatpush1.bf16.msra.mxu0 %v768
        %789 = vmatprep.subr.bf16.mxu0 0
        %790 = vmatpush2.bf16.msra.mxu0 0
        %791 = vmatprep.subr.bf16.mxu0 0
        %792 = vmatpush2.bf16.msra.mxu0 0
        %793 = vmatprep.subr.bf16.mxu0 0
        %794 = vmatpush2.bf16.msra.mxu0 0
        %795 = vmatprep.subr.bf16.mxu0 0
        %796 = vmatpush2.bf16.msra.mxu0 0
        %797 = vmatprep.subr.bf16.mxu0 0
        %798 = vmatpush2.bf16.msra.mxu0 0
        %799 = vmatprep.subr.bf16.mxu0 0
        %800 = vmatpush2.bf16.msra.mxu0 0
        %801 = vmatprep.subr.bf16.mxu0 0
        %802 = vmatpush2.bf16.msra.mxu0 0
        %803 = vmatprep.subr.bf16.mxu0 0
        %804 = vmatpush2.bf16.msra.mxu0 0
        %805 = vmatprep.mubr.bf16.mxu0 0
        %806 = vmatmul.mubr.bf16.gmra.mxu0 %v771
        %v807 = vpop.f32.mrf.mxu0
        %v808 = vadd.f32 0.0, %v807
        %v809 = vpop.f32.mrf.mxu0
        %v810 = vpop.f32.mrf.mxu0
        %v811 = vpop.f32.mrf.mxu0
        %812 = vdwg.mxu0
        %v814 = vlaneseq
        %v815 = vshrl.u32 %v814, 7
        %v816 = vsub.s32 0, %v815
        %v817 = vrot.slane %v647, %v816
        %v819 = vadd.f32 %v817, %v808
        %820 = vrot.lane.b32.xlu0 %v646, 112
        %v821 = vpop.permute.xlu0 %820
        %822 = vrot.lane.b32.xlu0 %v646, 80
        %v823 = vpop.permute.xlu0 %822
        %v825 = vsel %vm651, %v821, 0
        %v828 = vsel %vm651, %v823, 0
        %830 = vmatprep.subr.bf16.mxu0 0
        %831 = vmatpush1.bf16.xpose.msra.mxu0 0
        %832 = vmatprep.subr.bf16.mxu0 0
        %833 = vmatpush1.bf16.xpose.msra.mxu0 0
        %834 = vmatprep.subr.bf16.mxu0 0
        %835 = vmatpush1.bf16.xpose.msra.mxu0 0
        %836 = vmatprep.subr.bf16.mxu0 0
        %837 = vmatpush1.bf16.xpose.msra.mxu0 0
        %838 = vmatprep.subr.bf16.mxu0 0
        %839 = vmatpush1.bf16.xpose.msra.mxu0 0
        %840 = vmatprep.subr.bf16.mxu0 0
        %841 = vmatpush1.bf16.xpose.msra.mxu0 0
        %842 = vmatprep.subr.bf16.mxu0 0
        %843 = vmatpush1.bf16.xpose.msra.mxu0 0
        %844 = vmatprep.subr.bf16.mxu0 0
        %845 = vmatpush1.bf16.xpose.msra.mxu0 %v828
        %846 = vmatprep.subr.bf16.mxu0 0
        %847 = vmatpush2.bf16.xpose.msra.mxu0 0
        %848 = vmatprep.subr.bf16.mxu0 0
        %849 = vmatpush2.bf16.xpose.msra.mxu0 0
        %850 = vmatprep.subr.bf16.mxu0 0
        %851 = vmatpush2.bf16.xpose.msra.mxu0 0
        %852 = vmatprep.subr.bf16.mxu0 0
        %853 = vmatpush2.bf16.xpose.msra.mxu0 0
        %854 = vmatprep.subr.bf16.mxu0 0
        %855 = vmatpush2.bf16.xpose.msra.mxu0 0
        %856 = vmatprep.subr.bf16.mxu0 0
        %857 = vmatpush2.bf16.xpose.msra.mxu0 0
        %858 = vmatprep.subr.bf16.mxu0 0
        %859 = vmatpush2.bf16.xpose.msra.mxu0 0
        %860 = vmatprep.subr.bf16.mxu0 0
        %861 = vmatpush2.bf16.xpose.msra.mxu0 0
        %862 = vmatprep.mubr.bf16.mxu0 0
        %863 = vmatmul.mubr.bf16.gmra.mxu0 %v825
        %v864 = vpop.f32.mrf.mxu0
        %v865 = vadd.f32 0.0, %v864
        %v866 = vpop.f32.mrf.mxu0
        %v867 = vpop.f32.mrf.mxu0
        %v868 = vpop.f32.mrf.mxu0
        %869 = vdwg.mxu0
        %v870 = vmul.f32 %v865, 0.25
        %v871 = vsel %vm699, %v870, -inf
        %872 = vmax.xlane.f32.xlu0 %v871
        %v873 = vpop.xlane.xlu0 %872
        %v874 = vsub.f32 %v870, %v873
        %v875 = vmul.f32 %v874, 1.442695
        %v876 = vpow.pop %v875
        %v877 = vsel %vm699, %v876, 0.0
        %878 = vadd.xlane.f32.xlu0 %v877
        %v879 = vpop.xlane.xlu0 %878
        %v880 = vrcp.pop %v879
        %v881 = vmul.f32 %v876, %v880
        %v882 = vpack.c.bf16 %v881, %v881
        %883 = vrot.lane.b32.xlu0 %v646, 48
        %v884 = vpop.permute.xlu0 %883
        %v886 = vsel %vm699, %v882, 0
        %v889 = vsel %vm717, %v884, 0
        %891 = vmatprep.subr.bf16.mxu0 0
        %892 = vmatpush1.bf16.msra.mxu0 0
        %893 = vmatprep.subr.bf16.mxu0 0
        %894 = vmatpush1.bf16.msra.mxu0 0
        %895 = vmatprep.subr.bf16.mxu0 0
        %896 = vmatpush1.bf16.msra.mxu0 0
        %897 = vmatprep.subr.bf16.mxu0 0
        %898 = vmatpush1.bf16.msra.mxu0 0
        %899 = vmatprep.subr.bf16.mxu0 0
        %900 = vmatpush1.bf16.msra.mxu0 0
        %901 = vmatprep.subr.bf16.mxu0 0
        %902 = vmatpush1.bf16.msra.mxu0 0
        %903 = vmatprep.subr.bf16.mxu0 0
        %904 = vmatpush1.bf16.msra.mxu0 0
        %905 = vmatprep.subr.bf16.mxu0 0
        %906 = vmatpush1.bf16.msra.mxu0 %v889
        %907 = vmatprep.subr.bf16.mxu0 0
        %908 = vmatpush2.bf16.msra.mxu0 0
        %909 = vmatprep.subr.bf16.mxu0 0
        %910 = vmatpush2.bf16.msra.mxu0 0
        %911 = vmatprep.subr.bf16.mxu0 0
        %912 = vmatpush2.bf16.msra.mxu0 0
        %913 = vmatprep.subr.bf16.mxu0 0
        %914 = vmatpush2.bf16.msra.mxu0 0
        %915 = vmatprep.subr.bf16.mxu0 0
        %916 = vmatpush2.bf16.msra.mxu0 0
        %917 = vmatprep.subr.bf16.mxu0 0
        %918 = vmatpush2.bf16.msra.mxu0 0
        %919 = vmatprep.subr.bf16.mxu0 0
        %920 = vmatpush2.bf16.msra.mxu0 0
        %921 = vmatprep.subr.bf16.mxu0 0
        %922 = vmatpush2.bf16.msra.mxu0 0
        %923 = vmatprep.mubr.bf16.mxu0 0
        %924 = vmatmul.mubr.bf16.gmra.mxu0 %v886
        %v925 = vpop.f32.mrf.mxu0
        %v926 = vadd.f32 0.0, %v925
        %v927 = vpop.f32.mrf.mxu0
        %v928 = vpop.f32.mrf.mxu0
        %v929 = vpop.f32.mrf.mxu0
        %930 = vdwg.mxu0
        %v931 = vld [vmem:[#allocation8 + $0x8] sm:$0xf]
        %v932 = vld [vmem:[#allocation8 + $0xc] sm:$0xf]
        %v933 = vpack.c.bf16 %v926, %v926
        %v936 = vunpack.c.l.b16 %v931
        %v937 = vunpack.c.l.b16 %v932
        %v938 = vpack.c.b16 %v937, %v936
        %v941 = vsel %vm651, %v933, 0
        %943 = vmatprep.subr.bf16.mxu0 0
        %944 = vmatpush1.bf16.msra.mxu0 0
        %945 = vmatprep.subr.bf16.mxu0 0
        %946 = vmatpush1.bf16.msra.mxu0 0
        %947 = vmatprep.subr.bf16.mxu0 0
        %948 = vmatpush1.bf16.msra.mxu0 0
        %949 = vmatprep.subr.bf16.mxu0 0
        %950 = vmatpush1.bf16.msra.mxu0 0
        %951 = vmatprep.subr.bf16.mxu0 0
        %952 = vmatpush1.bf16.msra.mxu0 0
        %953 = vmatprep.subr.bf16.mxu0 0
        %954 = vmatpush1.bf16.msra.mxu0 0
        %955 = vmatprep.subr.bf16.mxu0 0
        %956 = vmatpush1.bf16.msra.mxu0 0
        %957 = vmatprep.subr.bf16.mxu0 0
        %958 = vmatpush1.bf16.msra.mxu0 %v938
        %959 = vmatprep.subr.bf16.mxu0 0
        %960 = vmatpush2.bf16.msra.mxu0 0
        %961 = vmatprep.subr.bf16.mxu0 0
        %962 = vmatpush2.bf16.msra.mxu0 0
        %963 = vmatprep.subr.bf16.mxu0 0
        %964 = vmatpush2.bf16.msra.mxu0 0
        %965 = vmatprep.subr.bf16.mxu0 0
        %966 = vmatpush2.bf16.msra.mxu0 0
        %967 = vmatprep.subr.bf16.mxu0 0
        %968 = vmatpush2.bf16.msra.mxu0 0
        %969 = vmatprep.subr.bf16.mxu0 0
        %970 = vmatpush2.bf16.msra.mxu0 0
        %971 = vmatprep.subr.bf16.mxu0 0
        %972 = vmatpush2.bf16.msra.mxu0 0
        %973 = vmatprep.subr.bf16.mxu0 0
        %974 = vmatpush2.bf16.msra.mxu0 0
        %975 = vmatprep.mubr.bf16.mxu0 0
        %976 = vmatmul.mubr.bf16.gmra.mxu0 %v941
        %v977 = vpop.f32.mrf.mxu0
        %v978 = vadd.f32 0.0, %v977
        %v979 = vpop.f32.mrf.mxu0
        %v980 = vpop.f32.mrf.mxu0
        %v981 = vpop.f32.mrf.mxu0
        %982 = vdwg.mxu0
        %v983 = vadd.f32 %v819, %v978
        %v984 = vld [vmem:[%s6] sm:$0xf]
        %v985 = vld [vmem:[%s6 + $0x4] sm:$0xf]
        %v986 = vld [vmem:[%s6 + $0x8] sm:$0xf]
        %v987 = vld [vmem:[%s6 + $0xc] sm:$0xf]
        %v988 = vpack.c.bf16 %v983, %v983
        %v989 = vld [vmem:[#allocation11] sm:$0x1]
        %v991 = vlaneseq
        %v992 = vshrl.u32 %v991, 7
        %v993 = vsub.s32 0, %v992
        %v994 = vrot.slane %v989, %v993
        %v1000 = vunpack.c.l.b16 %v984
        %v1001 = vunpack.c.l.b16 %v985
        %v1002 = vunpack.c.l.b16 %v986
        %v1003 = vunpack.c.l.b16 %v987
        %v1004 = vpack.c.b16 %v1001, %v1000
        %v1005 = vpack.c.b16 %v1003, %v1002
        %v1009 = vsel %vm602, %v988, 0
        %1011 = vmatprep.subr.bf16.mxu0 0
        %1012 = vmatpush1.bf16.msra.mxu0 0
        %1013 = vmatprep.subr.bf16.mxu0 0
        %1014 = vmatpush1.bf16.msra.mxu0 0
        %1015 = vmatprep.subr.bf16.mxu0 0
        %1016 = vmatpush1.bf16.msra.mxu0 0
        %1017 = vmatprep.subr.bf16.mxu0 0
        %1018 = vmatpush1.bf16.msra.mxu0 0
        %1019 = vmatprep.subr.bf16.mxu0 0
        %1020 = vmatpush1.bf16.msra.mxu0 0
        %1021 = vmatprep.subr.bf16.mxu0 0
        %1022 = vmatpush1.bf16.msra.mxu0 0
        %1023 = vmatprep.subr.bf16.mxu0 0
        %1024 = vmatpush1.bf16.msra.mxu0 %v1005
        %1025 = vmatprep.subr.bf16.mxu0 0
        %1026 = vmatpush1.bf16.msra.mxu0 %v1004
        %1027 = vmatprep.subr.bf16.mxu0 0
        %1028 = vmatpush2.bf16.msra.mxu0 0
        %1029 = vmatprep.subr.bf16.mxu0 0
        %1030 = vmatpush2.bf16.msra.mxu0 0
        %1031 = vmatprep.subr.bf16.mxu0 0
        %1032 = vmatpush2.bf16.msra.mxu0 0
        %1033 = vmatprep.subr.bf16.mxu0 0
        %1034 = vmatpush2.bf16.msra.mxu0 0
        %1035 = vmatprep.subr.bf16.mxu0 0
        %1036 = vmatpush2.bf16.msra.mxu0 0
        %1037 = vmatprep.subr.bf16.mxu0 0
        %1038 = vmatpush2.bf16.msra.mxu0 0
        %1039 = vmatprep.subr.bf16.mxu0 0
        %1040 = vmatpush2.bf16.msra.mxu0 0
        %1041 = vmatprep.subr.bf16.mxu0 0
        %1042 = vmatpush2.bf16.msra.mxu0 0
        %1043 = vmatprep.mubr.bf16.mxu0 0
        %1044 = vmatmul.mubr.bf16.gmra.mxu0 %v1009
        %v1045 = vpop.f32.mrf.mxu0
        %v1046 = vadd.f32 %v994, %v1045
        %v1047 = vpop.f32.mrf.mxu0
        %v1048 = vpop.f32.mrf.mxu0
        %v1049 = vpop.f32.mrf.mxu0
        %1050 = vdwg.mxu0
        %vm1051 = vcmask 540160
        %v1052 = vsel %vm1051, %v1046, -inf
        %1053 = vmax.xlane.f32.xlu0 %v1052
        %v1054 = vpop.xlane.xlu0 %1053
        %v1055 = vsub.f32 %v1046, %v1054
        %v1056 = vmul.f32 %v1055, 1.442695
        %v1057 = vpow.pop %v1056
        %1059 = vrot.lane.b32.xlu0 %v1057, 64
        %v1060 = vpop.permute.xlu0 %1059
        %vm1062 = vcmask 15360
        %v1063 = vsel %vm1062, %v1060, 0.0
        %1064 = vadd.xlane.f32.xlu0 %v1063
        %v1065 = vpop.xlane.xlu0 %1064
        %v1066 = vrcp.pop %v1065
        %v1067 = vmul.f32 %v1057, %v1066
        %1069 = vset.pattern.permute.xlu0 64
        %1070 = vperm.xlu0 %1069, %v1067
        %v1071 = vpop.permute.xlu0 %1070
        %v1073 = vmul.f32 %v1071, %v1046
        %1074 = vset.pattern.permute.xlu0 65
        %1075 = vperm.xlu0 %1074, %v1067
        %v1076 = vpop.permute.xlu0 %1075
        %v1078 = vmul.f32 %v1076, %v1046
        %1080 = vrot.lane.b32.xlu0 %v1078, 96
        %v1081 = vpop.permute.xlu0 %1080
        %v1083 = vadd.f32 %v1073, %v1081
        %v1084 = vsel %vm602, %v1083, 0.0
        %1085 = vadd.xlane.f32.xlu0 %v1084
        %v1086 = vpop.xlane.xlu0 %1085
        %v1087 = vrcp.pop 32.0
        %v1088 = vmul.f32 %v1086, %v1087
        %v1089 = vsub.f32 %v1083, %v1088
        %v1090 = vmul.f32 %v1089, %v1089
        %v1091 = vsel %vm602, %v1090, 0.0
        %1092 = vadd.xlane.f32.xlu0 %v1091
        %v1093 = vpop.xlane.xlu0 %1092
        %v1094 = vmul.f32 %v1093, %v1087
        %v1095 = vadd.f32 %v1094, 1e-05
        %v1096 = vrsqrt.pop %v1095
        %v1097 = vmul.f32 %v1089, %v1096
        %v1098 = vld [vmem:[#allocation13] sm:$0x1]
        %v1100 = vlaneseq
        %v1101 = vshrl.u32 %v1100, 7
        %v1102 = vsub.s32 0, %v1101
        %v1103 = vrot.slane %v1098, %v1102
        %v1105 = vmul.f32 %v1097, %v1103
        %v1106 = vld [vmem:[#allocation14] sm:$0x1]
        %v1108 = vlaneseq
        %v1109 = vshrl.u32 %v1108, 7
        %v1110 = vsub.s32 0, %v1109
        %v1111 = vrot.slane %v1106, %v1110
        %v1113 = vadd.f32 %v1105, %v1111
        %v1114 = vld [vmem:[%s10] sm:$0xf]
        %v1115 = vld [vmem:[%s10 + $0x4] sm:$0xf]
        %v1116 = vld [vmem:[%s10 + $0x8] sm:$0xf]
        %v1117 = vld [vmem:[%s10 + $0xc] sm:$0xf]
        %v1118 = vpack.c.bf16 %v1113, %v1113
        %v1119 = vld [vmem:[%s11] sm:$0x1]
        %v1121 = vlaneseq
        %v1122 = vshrl.u32 %v1121, 7
        %v1123 = vsub.s32 0, %v1122
        %v1124 = vrot.slane %v1119, %v1123
        %v1130 = vunpack.c.l.b16 %v1114
        %v1131 = vunpack.c.l.b16 %v1115
        %v1132 = vunpack.c.l.b16 %v1116
        %v1133 = vunpack.c.l.b16 %v1117
        %v1134 = vpack.c.b16 %v1131, %v1130
        %v1135 = vpack.c.b16 %v1133, %v1132
        %v1139 = vsel %vm602, %v1118, 0
        %1141 = vmatprep.subr.bf16.mxu0 0
        %1142 = vmatpush1.bf16.msra.mxu0 0
        %1143 = vmatprep.subr.bf16.mxu0 0
        %1144 = vmatpush1.bf16.msra.mxu0 0
        %1145 = vmatprep.subr.bf16.mxu0 0
        %1146 = vmatpush1.bf16.msra.mxu0 0
        %1147 = vmatprep.subr.bf16.mxu0 0
        %1148 = vmatpush1.bf16.msra.mxu0 0
        %1149 = vmatprep.subr.bf16.mxu0 0
        %1150 = vmatpush1.bf16.msra.mxu0 0
        %1151 = vmatprep.subr.bf16.mxu0 0
        %1152 = vmatpush1.bf16.msra.mxu0 0
        %1153 = vmatprep.subr.bf16.mxu0 0
        %1154 = vmatpush1.bf16.msra.mxu0 %v1135
        %1155 = vmatprep.subr.bf16.mxu0 0
        %1156 = vmatpush1.bf16.msra.mxu0 %v1134
        %1157 = vmatprep.subr.bf16.mxu0 0
        %1158 = vmatpush2.bf16.msra.mxu0 0
        %1159 = vmatprep.subr.bf16.mxu0 0
        %1160 = vmatpush2.bf16.msra.mxu0 0
        %1161 = vmatprep.subr.bf16.mxu0 0
        %1162 = vmatpush2.bf16.msra.mxu0 0
        %1163 = vmatprep.subr.bf16.mxu0 0
        %1164 = vmatpush2.bf16.msra.mxu0 0
        %1165 = vmatprep.subr.bf16.mxu0 0
        %1166 = vmatpush2.bf16.msra.mxu0 0
        %1167 = vmatprep.subr.bf16.mxu0 0
        %1168 = vmatpush2.bf16.msra.mxu0 0
        %1169 = vmatprep.subr.bf16.mxu0 0
        %1170 = vmatpush2.bf16.msra.mxu0 0
        %1171 = vmatprep.subr.bf16.mxu0 0
        %1172 = vmatpush2.bf16.msra.mxu0 0
        %1173 = vmatprep.mubr.bf16.mxu0 0
        %1174 = vmatmul.mubr.bf16.gmra.mxu0 %v1139
        %v1175 = vpop.f32.mrf.mxu0
        %v1176 = vadd.f32 %v1124, %v1175
        %v1177 = vpop.f32.mrf.mxu0
        %v1178 = vpop.f32.mrf.mxu0
        %v1179 = vpop.f32.mrf.mxu0
        %1180 = vdwg.mxu0
        %v1181 = vmax.f32 %v1176, 0.0
        %v1182 = vld [vmem:[%s12] sm:$0xf]
        %v1183 = vld [vmem:[%s12 + $0x4] sm:$0xf]
        %v1184 = vpack.c.bf16 %v1181, %v1181
        %v1185 = vld [vmem:[%s13] sm:$0x1]
        %v1187 = vlaneseq
        %v1188 = vshrl.u32 %v1187, 7
        %v1189 = vsub.s32 0, %v1188
        %v1190 = vrot.slane %v1185, %v1189
        %v1194 = vunpack.c.l.b16 %v1182
        %v1195 = vunpack.c.l.b16 %v1183
        %v1196 = vpack.c.b16 %v1195, %v1194
        %v1199 = vsel %vm651, %v1184, 0
        %1201 = vmatprep.subr.bf16.mxu0 0
        %1202 = vmatpush1.bf16.msra.mxu0 0
        %1203 = vmatprep.subr.bf16.mxu0 0
        %1204 = vmatpush1.bf16.msra.mxu0 0
        %1205 = vmatprep.subr.bf16.mxu0 0
        %1206 = vmatpush1.bf16.msra.mxu0 0
        %1207 = vmatprep.subr.bf16.mxu0 0
        %1208 = vmatpush1.bf16.msra.mxu0 0
        %1209 = vmatprep.subr.bf16.mxu0 0
        %1210 = vmatpush1.bf16.msra.mxu0 0
        %1211 = vmatprep.subr.bf16.mxu0 0
        %1212 = vmatpush1.bf16.msra.mxu0 0
        %1213 = vmatprep.subr.bf16.mxu0 0
        %1214 = vmatpush1.bf16.msra.mxu0 0
        %1215 = vmatprep.subr.bf16.mxu0 0
        %1216 = vmatpush1.bf16.msra.mxu0 %v1196
        %1217 = vmatprep.subr.bf16.mxu0 0
        %1218 = vmatpush2.bf16.msra.mxu0 0
        %1219 = vmatprep.subr.bf16.mxu0 0
        %1220 = vmatpush2.bf16.msra.mxu0 0
        %1221 = vmatprep.subr.bf16.mxu0 0
        %1222 = vmatpush2.bf16.msra.mxu0 0
        %1223 = vmatprep.subr.bf16.mxu0 0
        %1224 = vmatpush2.bf16.msra.mxu0 0
        %1225 = vmatprep.subr.bf16.mxu0 0
        %1226 = vmatpush2.bf16.msra.mxu0 0
        %1227 = vmatprep.subr.bf16.mxu0 0
        %1228 = vmatpush2.bf16.msra.mxu0 0
        %1229 = vmatprep.subr.bf16.mxu0 0
        %1230 = vmatpush2.bf16.msra.mxu0 0
        %1231 = vmatprep.subr.bf16.mxu0 0
        %1232 = vmatpush2.bf16.msra.mxu0 0
        %1233 = vmatprep.mubr.bf16.mxu0 0
        %1234 = vmatmul.mubr.bf16.gmra.mxu0 %v1199
        %v1235 = vpop.f32.mrf.mxu0
        %v1236 = vadd.f32 %v1190, %v1235
        %v1237 = vpop.f32.mrf.mxu0
        %v1238 = vpop.f32.mrf.mxu0
        %v1239 = vpop.f32.mrf.mxu0
        %1240 = vdwg.mxu0
        %1241 = vxpose.xlu0.b32.start [1/16] %v1236, 128
        %1242 = vxpose.xlu0.b32.cont [2/16] 0.0, 128
        %1243 = vxpose.xlu0.b32.cont [3/16] 0.0, 128
        %1244 = vxpose.xlu0.b32.cont [4/16] 0.0, 128
        %1245 = vxpose.xlu0.b32.cont [5/16] 0.0, 128
        %1246 = vxpose.xlu0.b32.cont [6/16] 0.0, 128
        %1247 = vxpose.xlu0.b32.cont [7/16] 0.0, 128
        %1248 = vxpose.xlu0.b32.cont [8/16] 0.0, 128
        %1249 = vxpose.xlu0.b32.cont [9/16] 0.0, 128
        %1250 = vxpose.xlu0.b32.cont [10/16] 0.0, 128
        %1251 = vxpose.xlu0.b32.cont [11/16] 0.0, 128
        %1252 = vxpose.xlu0.b32.cont [12/16] 0.0, 128
        %1253 = vxpose.xlu0.b32.cont [13/16] 0.0, 128
        %1254 = vxpose.xlu0.b32.cont [14/16] 0.0, 128
        %1255 = vxpose.xlu0.b32.cont [15/16] 0.0, 128
        %1256 = vxpose.xlu0.b32.end [16/16] 0.0, 128
        %v1257 = vpop.trf.xlu0
        %v1258 = vpop.trf.xlu0
        %v1259 = vpop.trf.xlu0
        %v1260 = vpop.trf.xlu0
        %v1261 = vpop.trf.xlu0
        %v1262 = vpop.trf.xlu0
        %v1263 = vpop.trf.xlu0
        %v1264 = vpop.trf.xlu0
        %v1265 = vpop.trf.xlu0
        %v1266 = vpop.trf.xlu0
        %v1267 = vpop.trf.xlu0
        %v1268 = vpop.trf.xlu0
        %v1269 = vpop.trf.xlu0
        %v1270 = vpop.trf.xlu0
        %v1271 = vpop.trf.xlu0
        %v1272 = vpop.trf.xlu0
        %vm1273 = vcmask 58368
        %1274 = vst.msk [vmem:[%s572] sm:$0x3] %vm1273, %v1257
        %s1275 = sand.u32 %s342, 1
        %s1276 = scalar_lea.sflag [#allocation4], %s1275
        %s1277 = sand.u32 %s342, 1
        %s1278 = smul.addr %s1277, 2
        %s1279 = scalar_lea.vmem [#allocation16], %s1278
        // Predicated region
        $region109: #{tpu_custom_call.1} parent=75 // pred_check
          %p1280 = pneg %p352
        $region110: #{tpu_custom_call.1} parent=75 // pred_check_branch
          %1282 = sbr.rel (%p1280) target = $region112
        $region111: #{tpu_custom_call.1} parent=75 // pred_region
          %s1284 = ssub.s32 32, 32
          %1285 = vsyncadd %s1276, %s1284
          %s1286 = smul.addr %s35, 32
          %s1287 = scalar_lea.hbm %s14, %s1286
          %s1289 = sshll.u32 %s1279, 4
          %s1290 = int_to_ptr.vmem [resolvable:$true] %s1289
          %1292 = dma.vmem_to_hbm [thread:$0]  %s1290, 32, %s1287, %s1276
        $region112: #{tpu_custom_call.1} parent=75 // pred_fallthru
          _
      $region76: #{tpu_custom_call.1} parent=5 // pred_fallthru
        _
      %p1293 = scmp.le.s32.totalorder 2, %s30
      // Predicated region
      $region113: #{tpu_custom_call.1} parent=5 // pred_check
        %p1294 = pneg %p1293
      $region114: #{tpu_custom_call.1} parent=5 // pred_check_branch
        %1296 = sbr.rel (%p1294) target = $region116
      $region115: #{tpu_custom_call.1} parent=5 // pred_region
        %s1297 = ssub.s32 %s30, 2
        // Predicated region
        $region117: #{tpu_custom_call.1} parent=115 // pred_check
          %p1298 = pneg %p358
        $region118: #{tpu_custom_call.1} parent=115 // pred_check_branch
          %1300 = sbr.rel (%p1298) target = $region120
        $region119: #{tpu_custom_call.1} parent=115 // pred_region
          %s1301 = sand.u32 %s343, 1
          %s1302 = scalar_lea.sflag [#allocation4], %s1301
          %s1303 = sand.u32 %s343, 1
          %s1304 = smul.addr %s1303, 2
          %s1305 = scalar_lea.vmem [#allocation16], %s1304
          %1306 = dma.done %s1302, 32
        $region120: #{tpu_custom_call.1} parent=115 // pred_fallthru
          _
      $region116: #{tpu_custom_call.1} parent=5 // pred_fallthru
        _
    $region6: #{tpu_custom_call.1} parent=1 // loop_footer
      %s34 = sadd.s32 1, %s30
    $region7: #{tpu_custom_call.1} parent=1 // loop_footer_branch
      %29 = sbr.rel target = $region3
    $region8: #{tpu_custom_call.1} parent=1 // loop_exit
      _
    %1307 = vsyncpa [#allocation3], 1
    %s1308 = scalar_lea.sflag [#allocation3], 1
    %1309 = vsyncpa %s1308, 1
    %1310 = vsyncpa [#allocation6], 1
    %1311 = vsyncpa [#allocation9], 1
    %1312 = vsyncpa [#allocation12], 1
    %1313 = vsyncpa [#allocation15], 1
    %1314 = vsyncpa [#allocation4], 1
    %s1315 = scalar_lea.sflag [#allocation4], 1
    %1316 = vsyncpa %s1315, 1

// kernel: tpu_custom_call.1
$region0: #{tpu_custom_call.1}
  #allocation0 [shape = 'u32[]', space=smem, size = 0x4, offset = 0x4, fixed_abs, tag = 'smem constant byte address 0x4 - core index']
  #allocation1 [shape = 'u32[144,128]{1,0:T(1,128)}', space=vmem, size = 0x12000, scoped, tag = 'internal scratch']
  %s0 = inlined_call_operand.hbm [shape: bf16[2,8,32], index: 0, kind: input, shape index: {}]
  %s1 = inlined_call_operand.hbm [shape: f32[8,32], index: 1, kind: input, shape index: {}]
  %s2 = inlined_call_operand.vmem [shape: bf16[32,96], index: 2, kind: input, shape index: {}]
  %s3 = inlined_call_operand.hbm [shape: f32[1,96], index: 3, kind: input, shape index: {}]
  %s4 = inlined_call_operand.hbm [shape: bf16[32,32], index: 4, kind: input, shape index: {}]
  %s5 = inlined_call_operand.hbm [shape: f32[1,32], index: 5, kind: input, shape index: {}]
  %s6 = inlined_call_operand.vmem [shape: bf16[32,66], index: 6, kind: input, shape index: {}]
  %s7 = inlined_call_operand.hbm [shape: f32[1,66], index: 7, kind: input, shape index: {}]
  %s8 = inlined_call_operand.hbm [shape: f32[1,32], index: 8, kind: input, shape index: {}]
  %s9 = inlined_call_operand.hbm [shape: f32[1,32], index: 9, kind: input, shape index: {}]
  %s10 = inlined_call_operand.vmem [shape: bf16[32,16], index: 10, kind: input, shape index: {}]
  %s11 = inlined_call_operand.vmem [shape: f32[1,16], index: 11, kind: input, shape index: {}]
  %s12 = inlined_call_operand.vmem [shape: bf16[16,128], index: 12, kind: input, shape index: {}]
  %s13 = inlined_call_operand.vmem [shape: f32[1,128], index: 13, kind: input, shape index: {}]
  %s14 = inlined_call_operand.hbm [shape: f32[2,2,8], index: 14, kind: output, shape index: {}]
  %s15 = sld [smem:[#allocation0]]
  $region121: #{tpu_custom_call.1} parent=0
    _
  %s17 = ssub.s32 1, %s15
  %s18 = scalar_select 0, %s17, %s15
  $region1: #{tpu_custom_call.1} parent=0
    #allocation2 [shape = 'u8[4096]{0}', space=vmem, size = 0x1000, scoped, tag = 'input window, operand 0']
    #allocation3 [shape = 's32[2]{0}', space=sflag, size = 0x8, scoped, tag = 'scoped memory for tpu_custom_call.1']
    #allocation4 [shape = 's32[2]{0}', space=sflag, size = 0x8, scoped, tag = 'scoped memory for tpu_custom_call.1']
    #allocation5 [shape = 'u8[4096]{0}', space=vmem, size = 0x1000, scoped, tag = 'input window, operand 1, single buffered']
    #allocation6 [shape = 's32[1]{0}', space=sflag, size = 0x4, scoped, tag = 'scoped memory for tpu_custom_call.1']
    #allocation7 [shape = 'u8[512]{0}', space=vmem, size = 0x400, scoped, tag = 'input window, operand 3, single buffered']
    #allocation8 [shape = 'u8[8192]{0}', space=vmem, size = 0x2000, scoped, tag = 'input window, operand 4, single buffered']
    #allocation9 [shape = 's32[1]{0}', space=sflag, size = 0x4, scoped, tag = 'scoped memory for tpu_custom_call.1']
    #allocation10 [shape = 'u8[512]{0}', space=vmem, size = 0x400, scoped, tag = 'input window, operand 5, single buffered']
    #allocation11 [shape = 'u8[512]{0}', space=vmem, size = 0x400, scoped, tag = 'input window, operand 7, single buffered']
    #allocation12 [shape = 's32[1]{0}', space=sflag, size = 0x4, scoped, tag = 'scoped memory for tpu_custom_call.1']
    #allocation13 [shape = 'u8[512]{0}', space=vmem, size = 0x400, scoped, tag = 'input window, operand 8, single buffered']
    #allocation14 [shape = 'u8[512]{0}', space=vmem, size = 0x400, scoped, tag = 'input window, operand 9, single buffered']
    #allocation15 [shape = 's32[1]{0}', space=sflag, size = 0x4, scoped, tag = 'scoped memory for tpu_custom_call.1']
    #allocation16 [shape = 'u8[2048]{0}', space=vmem, size = 0x800, scoped, tag = 'output window, operand 0']
    %19 = vsyncpa [#allocation3], 0
    %s20 = scalar_lea.sflag [#allocation3], 1
    %21 = vsyncpa %s20, 0
    %22 = vsyncpa [#allocation6], 0
    %23 = vsyncpa [#allocation9], 0
    %24 = vsyncpa [#allocation12], 0
    %25 = vsyncpa [#allocation15], 0
    %26 = vsyncpa [#allocation4], 0
    %s27 = scalar_lea.sflag [#allocation4], 1
    %28 = vsyncpa %s27, 0
    loop: start=0, step=1, limit=4
    $region2: #{tpu_custom_call.1} parent=1 // loop_pre_header
      _
    $region3: #{tpu_custom_call.1} parent=1 // loop_header
      %s30 = sphi 0, %s34
      %p31 = scmp.ge.s32.totalorder %s30, 4
      %s40 = sphi 0, %s42
      %s43 = sphi 0, %s40
      %s44 = sphi 0, %s43
      %s60 = sphi 0, %s44
      %s64 = sphi 0, %s64
      %s66 = sphi 0, %s64
      %s67 = sphi 0, %s66
      %s81 = sphi 0, %s67
      %s85 = sphi 0, %s85
      %s87 = sphi 0, %s85
      %s88 = sphi 0, %s87
      %s102 = sphi 0, %s88
      %s106 = sphi 0, %s106
      %s108 = sphi 0, %s106
      %s109 = sphi 0, %s108
      %s123 = sphi 0, %s109
      %s127 = sphi 0, %s127
      %s129 = sphi 0, %s127
      %s130 = sphi 0, %s129
      %s144 = sphi 0, %s130
      %s148 = sphi 0, %s148
      %s150 = sphi 0, %s148
      %s151 = sphi 0, %s150
      %s165 = sphi 0, %s151
      %s169 = sphi 0, %s169
      %s171 = sphi 0, %s169
      %s172 = sphi 0, %s171
      %s186 = sphi 0, %s172
      %s190 = sphi 0, %s190
      %s192 = sphi 0, %s190
      %s193 = sphi 0, %s192
      %s207 = sphi 0, %s193
      %s211 = sphi 0, %s211
      %s213 = sphi 0, %s211
      %s214 = sphi 0, %s213
      %s228 = sphi 0, %s214
      %s232 = sphi 0, %s232
      %s234 = sphi 0, %s232
      %s235 = sphi 0, %s234
      %s249 = sphi 0, %s235
      %s253 = sphi 0, %s253
      %s255 = sphi 0, %s253
      %s256 = sphi 0, %s255
      %s270 = sphi 0, %s256
      %s274 = sphi 0, %s274
      %s276 = sphi 0, %s274
      %s277 = sphi 0, %s276
      %s291 = sphi 0, %s277
      %s295 = sphi 0, %s295
      %s297 = sphi 0, %s295
      %s298 = sphi 0, %s297
      %s312 = sphi 0, %s298
      %s316 = sphi 0, %s316
      %s318 = sphi 0, %s316
      %s319 = sphi 0, %s318
      %s333 = sphi 0, %s319
      %s339 = sphi 0, %s341
      %s342 = sphi 0, %s339
      %s343 = sphi 0, %s342
      %s359 = sphi 0, %s343
    $region4: #{tpu_custom_call.1} parent=1 // loop_header_branch
      %33 = sbr.rel (%p31) target = $region8
    $region5: #{tpu_custom_call.1} parent=1 // loop_body
      %s35 = ssub.s32 %s30, 1
      %s36 = ssub.s32 %s30, 2
      %s37 = sadd.s32 %s30, 1
      %s38 = ssub.s32 %s30, %s37
      %p39 = scmp.eq.s32.totalorder %s38, 0
      %s41 = sadd.s32 %s40, 1
      %s42 = scalar_select %p39, %s40, %s41
      %p45 = pneg %p39
      %p46 = scmp.eq.s32.totalorder %s30, 1
      %p47 = por %p45, %p46
      %p48 = scmp.ne.s32.totalorder %s40, %s43
      %p49 = scmp.eq.s32.totalorder %s30, 0
      %p50 = por %p48, %p49
      %p51 = scmp.ne.s32.totalorder %s40, %s43
      %p52 = scmp.eq.s32.totalorder %s35, 1
      %p53 = por %p51, %p52
      %p54 = scmp.ne.s32.totalorder %s43, %s44
      %p55 = scmp.eq.s32.totalorder %s35, 0
      %p56 = por %p54, %p55
      %p57 = scmp.ne.s32.totalorder %s43, %s44
      %p58 = scmp.eq.s32.totalorder %s36, 1
      %p59 = por %p57, %p58
      %p61 = scmp.ne.s32.totalorder %s44, %s60
      %p62 = scmp.eq.s32.totalorder %s36, 0
      %p63 = por %p61, %p62
      %s65 = sadd.s32 %s64, 1
      %p68 = scmp.eq.s32.totalorder %s30, 1
      %p69 = scmp.ne.s32.totalorder %s64, %s66
      %p70 = scmp.eq.s32.totalorder %s30, 0
      %p71 = por %p69, %p70
      %p72 = scmp.ne.s32.totalorder %s64, %s66
      %p73 = scmp.eq.s32.totalorder %s35, 1
      %p74 = por %p72, %p73
      %p75 = scmp.ne.s32.totalorder %s66, %s67
      %p76 = scmp.eq.s32.totalorder %s35, 0
      %p77 = por %p75, %p76
      %p78 = scmp.ne.s32.totalorder %s66, %s67
      %p79 = scmp.eq.s32.totalorder %s36, 1
      %p80 = por %p78, %p79
      %p82 = scmp.ne.s32.totalorder %s67, %s81
      %p83 = scmp.eq.s32.totalorder %s36, 0
      %p84 = por %p82, %p83
      %s86 = sadd.s32 %s85, 1
      %p89 = scmp.eq.s32.totalorder %s30, 1
      %p90 = scmp.ne.s32.totalorder %s85, %s87
      %p91 = scmp.eq.s32.totalorder %s30, 0
      %p92 = por %p90, %p91
      %p93 = scmp.ne.s32.totalorder %s85, %s87
      %p94 = scmp.eq.s32.totalorder %s35, 1
      %p95 = por %p93, %p94
      %p96 = scmp.ne.s32.totalorder %s87, %s88
      %p97 = scmp.eq.s32.totalorder %s35, 0
      %p98 = por %p96, %p97
      %p99 = scmp.ne.s32.totalorder %s87, %s88
      %p100 = scmp.eq.s32.totalorder %s36, 1
      %p101 = por %p99, %p100
      %p103 = scmp.ne.s32.totalorder %s88, %s102
      %p104 = scmp.eq.s32.totalorder %s36, 0
      %p105 = por %p103, %p104
      %s107 = sadd.s32 %s106, 1
      %p110 = scmp.eq.s32.totalorder %s30, 1
      %p111 = scmp.ne.s32.totalorder %s106, %s108
      %p112 = scmp.eq.s32.totalorder %s30, 0
      %p113 = por %p111, %p112
      %p114 = scmp.ne.s32.totalorder %s106, %s108
      %p115 = scmp.eq.s32.totalorder %s35, 1
      %p116 = por %p114, %p115
      %p117 = scmp.ne.s32.totalorder %s108, %s109
      %p118 = scmp.eq.s32.totalorder %s35, 0
      %p119 = por %p117, %p118
      %p120 = scmp.ne.s32.totalorder %s108, %s109
      %p121 = scmp.eq.s32.totalorder %s36, 1
      %p122 = por %p120, %p121
      %p124 = scmp.ne.s32.totalorder %s109, %s123
      %p125 = scmp.eq.s32.totalorder %s36, 0
      %p126 = por %p124, %p125
      %s128 = sadd.s32 %s127, 1
      %p131 = scmp.eq.s32.totalorder %s30, 1
      %p132 = scmp.ne.s32.totalorder %s127, %s129
      %p133 = scmp.eq.s32.totalorder %s30, 0
      %p134 = por %p132, %p133
      %p135 = scmp.ne.s32.totalorder %s127, %s129
      %p136 = scmp.eq.s32.totalorder %s35, 1
      %p137 = por %p135, %p136
      %p138 = scmp.ne.s32.totalorder %s129, %s130
      %p139 = scmp.eq.s32.totalorder %s35, 0
      %p140 = por %p138, %p139
      %p141 = scmp.ne.s32.totalorder %s129, %s130
      %p142 = scmp.eq.s32.totalorder %s36, 1
      %p143 = por %p141, %p142
      %p145 = scmp.ne.s32.totalorder %s130, %s144
      %p146 = scmp.eq.s32.totalorder %s36, 0
      %p147 = por %p145, %p146
      %s149 = sadd.s32 %s148, 1
      %p152 = scmp.eq.s32.totalorder %s30, 1
      %p153 = scmp.ne.s32.totalorder %s148, %s150
      %p154 = scmp.eq.s32.totalorder %s30, 0
      %p155 = por %p153, %p154
      %p156 = scmp.ne.s32.totalorder %s148, %s150
      %p157 = scmp.eq.s32.totalorder %s35, 1
      %p158 = por %p156, %p157
      %p159 = scmp.ne.s32.totalorder %s150, %s151
      %p160 = scmp.eq.s32.totalorder %s35, 0
      %p161 = por %p159, %p160
      %p162 = scmp.ne.s32.totalorder %s150, %s151
      %p163 = scmp.eq.s32.totalorder %s36, 1
      %p164 = por %p162, %p163
      %p166 = scmp.ne.s32.totalorder %s151, %s165
      %p167 = scmp.eq.s32.totalorder %s36, 0
      %p168 = por %p166, %p167
      %s170 = sadd.s32 %s169, 1
      %p173 = scmp.eq.s32.totalorder %s30, 1
      %p174 = scmp.ne.s32.totalorder %s169, %s171
      %p175 = scmp.eq.s32.totalorder %s30, 0
      %p176 = por %p174, %p175
      %p177 = scmp.ne.s32.totalorder %s169, %s171
      %p178 = scmp.eq.s32.totalorder %s35, 1
      %p179 = por %p177, %p178
      %p180 = scmp.ne.s32.totalorder %s171, %s172
      %p181 = scmp.eq.s32.totalorder %s35, 0
      %p182 = por %p180, %p181
      %p183 = scmp.ne.s32.totalorder %s171, %s172
      %p184 = scmp.eq.s32.totalorder %s36, 1
      %p185 = por %p183, %p184
      %p187 = scmp.ne.s32.totalorder %s172, %s186
      %p188 = scmp.eq.s32.totalorder %s36, 0
      %p189 = por %p187, %p188
      %s191 = sadd.s32 %s190, 1
      %p194 = scmp.eq.s32.totalorder %s30, 1
      %p195 = scmp.ne.s32.totalorder %s190, %s192
      %p196 = scmp.eq.s32.totalorder %s30, 0
      %p197 = por %p195, %p196
      %p198 = scmp.ne.s32.totalorder %s190, %s192
      %p199 = scmp.eq.s32.totalorder %s35, 1
      %p200 = por %p198, %p199
      %p201 = scmp.ne.s32.totalorder %s192, %s193
      %p202 = scmp.eq.s32.totalorder %s35, 0
      %p203 = por %p201, %p202
      %p204 = scmp.ne.s32.totalorder %s192, %s193
      %p205 = scmp.eq.s32.totalorder %s36, 1
      %p206 = por %p204, %p205
      %p208 = scmp.ne.s32.totalorder %s193, %s207
      %p209 = scmp.eq.s32.totalorder %s36, 0
      %p210 = por %p208, %p209
      %s212 = sadd.s32 %s211, 1
      %p215 = scmp.eq.s32.totalorder %s30, 1
      %p216 = scmp.ne.s32.totalorder %s211, %s213
      %p217 = scmp.eq.s32.totalorder %s30, 0
      %p218 = por %p216, %p217
      %p219 = scmp.ne.s32.totalorder %s211, %s213
      %p220 = scmp.eq.s32.totalorder %s35, 1
      %p221 = por %p219, %p220
      %p222 = scmp.ne.s32.totalorder %s213, %s214
      %p223 = scmp.eq.s32.totalorder %s35, 0
      %p224 = por %p222, %p223
      %p225 = scmp.ne.s32.totalorder %s213, %s214
      %p226 = scmp.eq.s32.totalorder %s36, 1
      %p227 = por %p225, %p226
      %p229 = scmp.ne.s32.totalorder %s214, %s228
      %p230 = scmp.eq.s32.totalorder %s36, 0
      %p231 = por %p229, %p230
      %s233 = sadd.s32 %s232, 1
      %p236 = scmp.eq.s32.totalorder %s30, 1
      %p237 = scmp.ne.s32.totalorder %s232, %s234
      %p238 = scmp.eq.s32.totalorder %s30, 0
      %p239 = por %p237, %p238
      %p240 = scmp.ne.s32.totalorder %s232, %s234
      %p241 = scmp.eq.s32.totalorder %s35, 1
      %p242 = por %p240, %p241
      %p243 = scmp.ne.s32.totalorder %s234, %s235
      %p244 = scmp.eq.s32.totalorder %s35, 0
      %p245 = por %p243, %p244
      %p246 = scmp.ne.s32.totalorder %s234, %s235
      %p247 = scmp.eq.s32.totalorder %s36, 1
      %p248 = por %p246, %p247
      %p250 = scmp.ne.s32.totalorder %s235, %s249
      %p251 = scmp.eq.s32.totalorder %s36, 0
      %p252 = por %p250, %p251
      %s254 = sadd.s32 %s253, 1
      %p257 = scmp.eq.s32.totalorder %s30, 1
      %p258 = scmp.ne.s32.totalorder %s253, %s255
      %p259 = scmp.eq.s32.totalorder %s30, 0
      %p260 = por %p258, %p259
      %p261 = scmp.ne.s32.totalorder %s253, %s255
      %p262 = scmp.eq.s32.totalorder %s35, 1
      %p263 = por %p261, %p262
      %p264 = scmp.ne.s32.totalorder %s255, %s256
      %p265 = scmp.eq.s32.totalorder %s35, 0
      %p266 = por %p264, %p265
      %p267 = scmp.ne.s32.totalorder %s255, %s256
      %p268 = scmp.eq.s32.totalorder %s36, 1
      %p269 = por %p267, %p268
      %p271 = scmp.ne.s32.totalorder %s256, %s270
      %p272 = scmp.eq.s32.totalorder %s36, 0
      %p273 = por %p271, %p272
      %s275 = sadd.s32 %s274, 1
      %p278 = scmp.eq.s32.totalorder %s30, 1
      %p279 = scmp.ne.s32.totalorder %s274, %s276
      %p280 = scmp.eq.s32.totalorder %s30, 0
      %p281 = por %p279, %p280
      %p282 = scmp.ne.s32.totalorder %s274, %s276
      %p283 = scmp.eq.s32.totalorder %s35, 1
      %p284 = por %p282, %p283
      %p285 = scmp.ne.s32.totalorder %s276, %s277
      %p286 = scmp.eq.s32.totalorder %s35, 0
      %p287 = por %p285, %p286
      %p288 = scmp.ne.s32.totalorder %s276, %s277
      %p289 = scmp.eq.s32.totalorder %s36, 1
      %p290 = por %p288, %p289
      %p292 = scmp.ne.s32.totalorder %s277, %s291
      %p293 = scmp.eq.s32.totalorder %s36, 0
      %p294 = por %p292, %p293
      %s296 = sadd.s32 %s295, 1
      %p299 = scmp.eq.s32.totalorder %s30, 1
      %p300 = scmp.ne.s32.totalorder %s295, %s297
      %p301 = scmp.eq.s32.totalorder %s30, 0
      %p302 = por %p300, %p301
      %p303 = scmp.ne.s32.totalorder %s295, %s297
      %p304 = scmp.eq.s32.totalorder %s35, 1
      %p305 = por %p303, %p304
      %p306 = scmp.ne.s32.totalorder %s297, %s298
      %p307 = scmp.eq.s32.totalorder %s35, 0
      %p308 = por %p306, %p307
      %p309 = scmp.ne.s32.totalorder %s297, %s298
      %p310 = scmp.eq.s32.totalorder %s36, 1
      %p311 = por %p309, %p310
      %p313 = scmp.ne.s32.totalorder %s298, %s312
      %p314 = scmp.eq.s32.totalorder %s36, 0
      %p315 = por %p313, %p314
      %s317 = sadd.s32 %s316, 1
      %p320 = scmp.eq.s32.totalorder %s30, 1
      %p321 = scmp.ne.s32.totalorder %s316, %s318
      %p322 = scmp.eq.s32.totalorder %s30, 0
      %p323 = por %p321, %p322
      %p324 = scmp.ne.s32.totalorder %s316, %s318
      %p325 = scmp.eq.s32.totalorder %s35, 1
      %p326 = por %p324, %p325
      %p327 = scmp.ne.s32.totalorder %s318, %s319
      %p328 = scmp.eq.s32.totalorder %s35, 0
      %p329 = por %p327, %p328
      %p330 = scmp.ne.s32.totalorder %s318, %s319
      %p331 = scmp.eq.s32.totalorder %s36, 1
      %p332 = por %p330, %p331
      %p334 = scmp.ne.s32.totalorder %s319, %s333
      %p335 = scmp.eq.s32.totalorder %s36, 0
      %p336 = por %p334, %p335
      %s337 = ssub.s32 %s30, %s37
      %p338 = scmp.eq.s32.totalorder %s337, 0
      %s340 = sadd.s32 %s339, 1
      %s341 = scalar_select %p338, %s339, %s340
      %p344 = pneg %p338
      %p345 = scmp.eq.s32.totalorder %s30, 1
      %p346 = por %p344, %p345
      %p347 = scmp.ne.s32.totalorder %s339, %s342
      %p348 = scmp.eq.s32.totalorder %s30, 0
      %p349 = por %p347, %p348
      %p350 = scmp.ne.s32.totalorder %s339, %s342
      %p351 = scmp.eq.s32.totalorder %s35, 1
      %p352 = por %p350, %p351
      %p353 = scmp.ne.s32.totalorder %s342, %s343
      %p354 = scmp.eq.s32.totalorder %s35, 0
      %p355 = por %p353, %p354
      %p356 = scmp.ne.s32.totalorder %s342, %s343
      %p357 = scmp.eq.s32.totalorder %s36, 1
      %p358 = por %p356, %p357
      %p360 = scmp.ne.s32.totalorder %s343, %s359
      %p361 = scmp.eq.s32.totalorder %s36, 0
      %p362 = por %p360, %p361
      %p363 = scmp.le.s32.totalorder 1, %s30
      %p364 = scmp.lt.s32.totalorder %s30, 3
      %p365 = pnand %p363, %p364
      %p366 = pneg %p365
      // Predicated region
      $region9: #{tpu_custom_call.1} parent=5 // pred_check
        _
      $region10: #{tpu_custom_call.1} parent=5 // pred_check_branch
        %368 = sbr.rel (%p365) target = $region12
      $region11: #{tpu_custom_call.1} parent=5 // pred_region
        %s369 = ssub.s32 %s30, 1
        // Predicated region
        $region13: #{tpu_custom_call.1} parent=11 // pred_check
          %p370 = pneg %p77
        $region14: #{tpu_custom_call.1} parent=11 // pred_check_branch
          %372 = sbr.rel (%p370) target = $region16
        $region15: #{tpu_custom_call.1} parent=11 // pred_region
          %s374 = ssub.s32 128, 128
          %375 = vsyncadd [#allocation6], %s374
          %s377 = sshll.u32 [#allocation5], 4
          %s378 = int_to_ptr.vmem [resolvable:$true] %s377
          %380 = dma.hbm_to_vmem [thread:$0]  %s1, 128, %s378, [#allocation6]
        $region16: #{tpu_custom_call.1} parent=11 // pred_fallthru
          _
        // Predicated region
        $region17: #{tpu_custom_call.1} parent=11 // pred_check
          %p381 = pneg %p98
        $region18: #{tpu_custom_call.1} parent=11 // pred_check_branch
          %383 = sbr.rel (%p381) target = $region20
        $region19: #{tpu_custom_call.1} parent=11 // pred_region
          _
        $region20: #{tpu_custom_call.1} parent=11 // pred_fallthru
          _
        // Predicated region
        $region21: #{tpu_custom_call.1} parent=11 // pred_check
          %p384 = pneg %p119
        $region22: #{tpu_custom_call.1} parent=11 // pred_check_branch
          %386 = sbr.rel (%p384) target = $region24
        $region23: #{tpu_custom_call.1} parent=11 // pred_region
          %s388 = ssub.s32 16, 16
          %389 = vsyncadd [#allocation6], %s388
          %s391 = sshll.u32 [#allocation7], 4
          %s392 = int_to_ptr.vmem [resolvable:$true] %s391
          %394 = dma.hbm_to_vmem [thread:$0]  %s3, 16, %s392, [#allocation6]
        $region24: #{tpu_custom_call.1} parent=11 // pred_fallthru
          _
        // Predicated region
        $region25: #{tpu_custom_call.1} parent=11 // pred_check
          %p395 = pneg %p140
        $region26: #{tpu_custom_call.1} parent=11 // pred_check_branch
          %397 = sbr.rel (%p395) target = $region28
        $region27: #{tpu_custom_call.1} parent=11 // pred_region
          %s399 = ssub.s32 256, 256
          %400 = vsyncadd [#allocation9], %s399
          %s401 = sshll.u32 [#allocation8], 4
          %s402 = int_to_ptr.vmem [resolvable:$true] %s401
          %407 = dma.hbm_to_vmem [thread:$0]  %s4, 256, %s402, [#allocation9], 64, 64, 4
        $region28: #{tpu_custom_call.1} parent=11 // pred_fallthru
          _
        // Predicated region
        $region29: #{tpu_custom_call.1} parent=11 // pred_check
          %p408 = pneg %p161
        $region30: #{tpu_custom_call.1} parent=11 // pred_check_branch
          %410 = sbr.rel (%p408) target = $region32
        $region31: #{tpu_custom_call.1} parent=11 // pred_region
          %s412 = ssub.s32 16, 16
          %413 = vsyncadd [#allocation9], %s412
          %s415 = sshll.u32 [#allocation10], 4
          %s416 = int_to_ptr.vmem [resolvable:$true] %s415
          %418 = dma.hbm_to_vmem [thread:$0]  %s5, 16, %s416, [#allocation9]
        $region32: #{tpu_custom_call.1} parent=11 // pred_fallthru
          _
        // Predicated region
        $region33: #{tpu_custom_call.1} parent=11 // pred_check
          %p419 = pneg %p182
        $region34: #{tpu_custom_call.1} parent=11 // pred_check_branch
          %421 = sbr.rel (%p419) target = $region36
        $region35: #{tpu_custom_call.1} parent=11 // pred_region
          _
        $region36: #{tpu_custom_call.1} parent=11 // pred_fallthru
          _
        // Predicated region
        $region37: #{tpu_custom_call.1} parent=11 // pred_check
          %p422 = pneg %p203
        $region38: #{tpu_custom_call.1} parent=11 // pred_check_branch
          %424 = sbr.rel (%p422) target = $region40
        $region39: #{tpu_custom_call.1} parent=11 // pred_region
          %s426 = ssub.s32 16, 16
          %427 = vsyncadd [#allocation12], %s426
          %s429 = sshll.u32 [#allocation11], 4
          %s430 = int_to_ptr.vmem [resolvable:$true] %s429
          %432 = dma.hbm_to_vmem [thread:$0]  %s7, 16, %s430, [#allocation12]
        $region40: #{tpu_custom_call.1} parent=11 // pred_fallthru
          _
        // Predicated region
        $region41: #{tpu_custom_call.1} parent=11 // pred_check
          %p433 = pneg %p224
        $region42: #{tpu_custom_call.1} parent=11 // pred_check_branch
          %435 = sbr.rel (%p433) target = $region44
        $region43: #{tpu_custom_call.1} parent=11 // pred_region
          %s437 = ssub.s32 16, 16
          %438 = vsyncadd [#allocation12], %s437
          %s440 = sshll.u32 [#allocation13], 4
          %s441 = int_to_ptr.vmem [resolvable:$true] %s440
          %443 = dma.hbm_to_vmem [thread:$0]  %s8, 16, %s441, [#allocation12]
        $region44: #{tpu_custom_call.1} parent=11 // pred_fallthru
          _
        // Predicated region
        $region45: #{tpu_custom_call.1} parent=11 // pred_check
          %p444 = pneg %p245
        $region46: #{tpu_custom_call.1} parent=11 // pred_check_branch
          %446 = sbr.rel (%p444) target = $region48
        $region47: #{tpu_custom_call.1} parent=11 // pred_region
          %s448 = ssub.s32 16, 16
          %449 = vsyncadd [#allocation15], %s448
          %s451 = sshll.u32 [#allocation14], 4
          %s452 = int_to_ptr.vmem [resolvable:$true] %s451
          %454 = dma.hbm_to_vmem [thread:$0]  %s9, 16, %s452, [#allocation15]
        $region48: #{tpu_custom_call.1} parent=11 // pred_fallthru
          _
        // Predicated region
        $region49: #{tpu_custom_call.1} parent=11 // pred_check
          %p455 = pneg %p266
        $region50: #{tpu_custom_call.1} parent=11 // pred_check_branch
          %457 = sbr.rel (%p455) target = $region52
        $region51: #{tpu_custom_call.1} parent=11 // pred_region
          _
        $region52: #{tpu_custom_call.1} parent=11 // pred_fallthru
          _
        // Predicated region
        $region53: #{tpu_custom_call.1} parent=11 // pred_check
          %p458 = pneg %p287
        $region54: #{tpu_custom_call.1} parent=11 // pred_check_branch
          %460 = sbr.rel (%p458) target = $region56
        $region55: #{tpu_custom_call.1} parent=11 // pred_region
          _
        $region56: #{tpu_custom_call.1} parent=11 // pred_fallthru
          _
        // Predicated region
        $region57: #{tpu_custom_call.1} parent=11 // pred_check
          %p461 = pneg %p308
        $region58: #{tpu_custom_call.1} parent=11 // pred_check_branch
          %463 = sbr.rel (%p461) target = $region60
        $region59: #{tpu_custom_call.1} parent=11 // pred_region
          _
        $region60: #{tpu_custom_call.1} parent=11 // pred_fallthru
          _
        // Predicated region
        $region61: #{tpu_custom_call.1} parent=11 // pred_check
          %p464 = pneg %p329
        $region62: #{tpu_custom_call.1} parent=11 // pred_check_branch
          %466 = sbr.rel (%p464) target = $region64
        $region63: #{tpu_custom_call.1} parent=11 // pred_region
          _
        $region64: #{tpu_custom_call.1} parent=11 // pred_fallthru
          _
      $region12: #{tpu_custom_call.1} parent=5 // pred_fallthru
        _
      %p467 = scmp.lt.s32.totalorder %s30, 2
      // Predicated region
      $region65: #{tpu_custom_call.1} parent=5 // pred_check
        %p468 = pneg %p467
      $region66: #{tpu_custom_call.1} parent=5 // pred_check_branch
        %470 = sbr.rel (%p468) target = $region68
      $region67: #{tpu_custom_call.1} parent=5 // pred_region
        // Predicated region
        $region69: #{tpu_custom_call.1} parent=67 // pred_check
          %p471 = pneg %p50
        $region70: #{tpu_custom_call.1} parent=67 // pred_check_branch
          %473 = sbr.rel (%p471) target = $region72
        $region71: #{tpu_custom_call.1} parent=67 // pred_region
          %s474 = sand.u32 %s40, 1
          %s475 = scalar_lea.sflag [#allocation3], %s474
          %s476 = sand.u32 %s40, 1
          %s477 = smul.addr %s476, 4
          %s478 = scalar_lea.vmem [#allocation2], %s477
          %s480 = ssub.s32 64, 64
          %481 = vsyncadd %s475, %s480
          %s482 = smul.addr %s30, 64
          %s483 = scalar_lea.hbm %s0, %s482
          %s485 = sshll.u32 %s478, 4
          %s486 = int_to_ptr.vmem [resolvable:$true] %s485
          %488 = dma.hbm_to_vmem [thread:$0]  %s483, 64, %s486, %s475
        $region72: #{tpu_custom_call.1} parent=67 // pred_fallthru
          _
      $region68: #{tpu_custom_call.1} parent=5 // pred_fallthru
        _
      %p489 = scmp.le.s32.totalorder 1, %s30
      %p490 = scmp.lt.s32.totalorder %s30, 3
      %p491 = pnand %p489, %p490
      %p492 = pneg %p491
      // Predicated region
      $region73: #{tpu_custom_call.1} parent=5 // pred_check
        _
      $region74: #{tpu_custom_call.1} parent=5 // pred_check_branch
        %494 = sbr.rel (%p491) target = $region76
      $region75: #{tpu_custom_call.1} parent=5 // pred_region
        %s495 = ssub.s32 %s30, 1
        %s496 = sand.u32 %s43, 1
        %s497 = scalar_lea.sflag [#allocation3], %s496
        %s498 = sand.u32 %s43, 1
        %s499 = smul.addr %s498, 4
        %s500 = scalar_lea.vmem [#allocation2], %s499
        // Predicated region
        $region77: #{tpu_custom_call.1} parent=75 // pred_check
          %p501 = pneg %p56
        $region78: #{tpu_custom_call.1} parent=75 // pred_check_branch
          %503 = sbr.rel (%p501) target = $region80
        $region79: #{tpu_custom_call.1} parent=75 // pred_region
          %504 = dma.done %s497, 64
        $region80: #{tpu_custom_call.1} parent=75 // pred_fallthru
          _
        // Predicated region
        $region81: #{tpu_custom_call.1} parent=75 // pred_check
          %p505 = pneg %p77
        $region82: #{tpu_custom_call.1} parent=75 // pred_check_branch
          %507 = sbr.rel (%p505) target = $region84
        $region83: #{tpu_custom_call.1} parent=75 // pred_region
          %508 = dma.done [#allocation6], 128
        $region84: #{tpu_custom_call.1} parent=75 // pred_fallthru
          _
        // Predicated region
        $region85: #{tpu_custom_call.1} parent=75 // pred_check
          %p509 = pneg %p119
        $region86: #{tpu_custom_call.1} parent=75 // pred_check_branch
          %511 = sbr.rel (%p509) target = $region88
        $region87: #{tpu_custom_call.1} parent=75 // pred_region
          %512 = dma.done [#allocation6], 16
        $region88: #{tpu_custom_call.1} parent=75 // pred_fallthru
          _
        // Predicated region
        $region89: #{tpu_custom_call.1} parent=75 // pred_check
          %p513 = pneg %p140
        $region90: #{tpu_custom_call.1} parent=75 // pred_check_branch
          %515 = sbr.rel (%p513) target = $region92
        $region91: #{tpu_custom_call.1} parent=75 // pred_region
          %516 = dma.done [#allocation9], 256
        $region92: #{tpu_custom_call.1} parent=75 // pred_fallthru
          _
        // Predicated region
        $region93: #{tpu_custom_call.1} parent=75 // pred_check
          %p517 = pneg %p161
        $region94: #{tpu_custom_call.1} parent=75 // pred_check_branch
          %519 = sbr.rel (%p517) target = $region96
        $region95: #{tpu_custom_call.1} parent=75 // pred_region
          %520 = dma.done [#allocation9], 16
        $region96: #{tpu_custom_call.1} parent=75 // pred_fallthru
          _
        // Predicated region
        $region97: #{tpu_custom_call.1} parent=75 // pred_check
          %p521 = pneg %p203
        $region98: #{tpu_custom_call.1} parent=75 // pred_check_branch
          %523 = sbr.rel (%p521) target = $region100
        $region99: #{tpu_custom_call.1} parent=75 // pred_region
          %524 = dma.done [#allocation12], 16
        $region100: #{tpu_custom_call.1} parent=75 // pred_fallthru
          _
        // Predicated region
        $region101: #{tpu_custom_call.1} parent=75 // pred_check
          %p525 = pneg %p224
        $region102: #{tpu_custom_call.1} parent=75 // pred_check_branch
          %527 = sbr.rel (%p525) target = $region104
        $region103: #{tpu_custom_call.1} parent=75 // pred_region
          %528 = dma.done [#allocation12], 16
        $region104: #{tpu_custom_call.1} parent=75 // pred_fallthru
          _
        // Predicated region
        $region105: #{tpu_custom_call.1} parent=75 // pred_check
          %p529 = pneg %p245
        $region106: #{tpu_custom_call.1} parent=75 // pred_check_branch
          %531 = sbr.rel (%p529) target = $region108
        $region107: #{tpu_custom_call.1} parent=75 // pred_region
          %532 = dma.done [#allocation15], 16
        $region108: #{tpu_custom_call.1} parent=75 // pred_fallthru
          _
        %s533 = sand.u32 %s43, 1
        %s534 = scalar_lea.sflag [#allocation3], %s533
        %s535 = sand.u32 %s43, 1
        %s536 = smul.addr %s535, 4
        %s537 = scalar_lea.vmem [#allocation2], %s536
        %p538 = pneg %p56
        %p539 = pneg %p53
        %p540 = pneg %p77
        %p541 = pneg %p74
        %p542 = pneg %p98
        %p543 = pneg %p95
        %p544 = pneg %p119
        %p545 = pneg %p116
        %p546 = pneg %p140
        %p547 = pneg %p137
        %p548 = pneg %p161
        %p549 = pneg %p158
        %p550 = pneg %p182
        %p551 = pneg %p179
        %p552 = pneg %p203
        %p553 = pneg %p200
        %p554 = pneg %p224
        %p555 = pneg %p221
        %p556 = pneg %p245
        %p557 = pneg %p242
        %p558 = pneg %p266
        %p559 = pneg %p263
        %p560 = pneg %p287
        %p561 = pneg %p284
        %p562 = pneg %p308
        %p563 = pneg %p305
        %p564 = pneg %p329
        %p565 = pneg %p326
        %p566 = pneg %p355
        %p567 = pneg %p352
        %s568 = sand.u32 %s342, 1
        %s569 = scalar_lea.sflag [#allocation4], %s568
        %s570 = sand.u32 %s342, 1
        %s571 = smul.addr %s570, 2
        %s572 = scalar_lea.vmem [#allocation16], %s571
        %v574 = vld [vmem:[%s500] sm:$0xf]
        %v575 = vunpack.c.l.bf16 %v574
        %v576 = vld [vmem:[#allocation5] sm:$0xff]
        %v577 = vadd.f32 %v575, %v576
        %v578 = vld [vmem:[%s2] sm:$0xf]
        %v579 = vld [vmem:[%s2 + $0x4] sm:$0xf]
        %v580 = vld [vmem:[%s2 + $0x8] sm:$0xf]
        %v581 = vld [vmem:[%s2 + $0xc] sm:$0xf]
        %v582 = vpack.c.bf16 %v577, %v577
        %v583 = vld [vmem:[#allocation7] sm:$0x1]
        %v585 = vlaneseq
        %v586 = vshrl.u32 %v585, 7
        %v587 = vsub.s32 0, %v586
        %v588 = vrot.slane %v583, %v587
        %v594 = vunpack.c.l.b16 %v578
        %v595 = vunpack.c.l.b16 %v579
        %v596 = vunpack.c.l.b16 %v580
        %v597 = vunpack.c.l.b16 %v581
        %v598 = vpack.c.b16 %v595, %v594
        %v599 = vpack.c.b16 %v597, %v596
        %vm602 = vcmask 261120
        %v604 = vsel %vm602, %v582, 0
        %606 = vmatprep.subr.bf16.mxu0 0
        %607 = vmatpush1.bf16.msra.mxu0 0
        %608 = vmatprep.subr.bf16.mxu0 0
        %609 = vmatpush1.bf16.msra.mxu0 0
        %610 = vmatprep.subr.bf16.mxu0 0
        %611 = vmatpush1.bf16.msra.mxu0 0
        %612 = vmatprep.subr.bf16.mxu0 0
        %613 = vmatpush1.bf16.msra.mxu0 0
        %614 = vmatprep.subr.bf16.mxu0 0
        %615 = vmatpush1.bf16.msra.mxu0 0
        %616 = vmatprep.subr.bf16.mxu0 0
        %617 = vmatpush1.bf16.msra.mxu0 0
        %618 = vmatprep.subr.bf16.mxu0 0
        %619 = vmatpush1.bf16.msra.mxu0 %v599
        %620 = vmatprep.subr.bf16.mxu0 0
        %621 = vmatpush1.bf16.msra.mxu0 %v598
        %622 = vmatprep.subr.bf16.mxu0 0
        %623 = vmatpush2.bf16.msra.mxu0 0
        %624 = vmatprep.subr.bf16.mxu0 0
        %625 = vmatpush2.bf16.msra.mxu0 0
        %626 = vmatprep.subr.bf16.mxu0 0
        %627 = vmatpush2.bf16.msra.mxu0 0
        %628 = vmatprep.subr.bf16.mxu0 0
        %629 = vmatpush2.bf16.msra.mxu0 0
        %630 = vmatprep.subr.bf16.mxu0 0
        %631 = vmatpush2.bf16.msra.mxu0 0
        %632 = vmatprep.subr.bf16.mxu0 0
        %633 = vmatpush2.bf16.msra.mxu0 0
        %634 = vmatprep.subr.bf16.mxu0 0
        %635 = vmatpush2.bf16.msra.mxu0 0
        %636 = vmatprep.subr.bf16.mxu0 0
        %637 = vmatpush2.bf16.msra.mxu0 0
        %638 = vmatprep.mubr.bf16.mxu0 0
        %639 = vmatmul.mubr.bf16.gmra.mxu0 %v604
        %v640 = vpop.f32.mrf.mxu0
        %v641 = vadd.f32 %v588, %v640
        %v642 = vpop.f32.mrf.mxu0
        %v643 = vpop.f32.mrf.mxu0
        %v644 = vpop.f32.mrf.mxu0
        %645 = vdwg.mxu0
        %v646 = vpack.c.bf16 %v641, %v641
        %v647 = vld [vmem:[#allocation10] sm:$0x1]
        %649 = vrot.lane.b32.xlu0 %v646, 96
        %v650 = vpop.permute.xlu0 %649
        %vm651 = vcmask 130048
        %v653 = vsel %vm651, %v646, 0
        %v656 = vsel %vm651, %v650, 0
        %658 = vmatprep.subr.bf16.mxu0 0
        %659 = vmatpush1.bf16.xpose.msra.mxu0 0
        %660 = vmatprep.subr.bf16.mxu0 0
        %661 = vmatpush1.bf16.xpose.msra.mxu0 0
        %662 = vmatprep.subr.bf16.mxu0 0
        %663 = vmatpush1.bf16.xpose.msra.mxu0 0
        %664 = vmatprep.subr.bf16.mxu0 0
        %665 = vmatpush1.bf16.xpose.msra.mxu0 0
        %666 = vmatprep.subr.bf16.mxu0 0
        %667 = vmatpush1.bf16.xpose.msra.mxu0 0
        %668 = vmatprep.subr.bf16.mxu0 0
        %669 = vmatpush1.bf16.xpose.msra.mxu0 0
        %670 = vmatprep.subr.bf16.mxu0 0
        %671 = vmatpush1.bf16.xpose.msra.mxu0 0
        %672 = vmatprep.subr.bf16.mxu0 0
        %673 = vmatpush1.bf16.xpose.msra.mxu0 %v656
        %674 = vmatprep.subr.bf16.mxu0 0
        %675 = vmatpush2.bf16.xpose.msra.mxu0 0
        %676 = vmatprep.subr.bf16.mxu0 0
        %677 = vmatpush2.bf16.xpose.msra.mxu0 0
        %678 = vmatprep.subr.bf16.mxu0 0
        %679 = vmatpush2.bf16.xpose.msra.mxu0 0
        %680 = vmatprep.subr.bf16.mxu0 0
        %681 = vmatpush2.bf16.xpose.msra.mxu0 0
        %682 = vmatprep.subr.bf16.mxu0 0
        %683 = vmatpush2.bf16.xpose.msra.mxu0 0
        %684 = vmatprep.subr.bf16.mxu0 0
        %685 = vmatpush2.bf16.xpose.msra.mxu0 0
        %686 = vmatprep.subr.bf16.mxu0 0
        %687 = vmatpush2.bf16.xpose.msra.mxu0 0
        %688 = vmatprep.subr.bf16.mxu0 0
        %689 = vmatpush2.bf16.xpose.msra.mxu0 0
        %690 = vmatprep.mubr.bf16.mxu0 0
        %691 = vmatmul.mubr.bf16.gmra.mxu0 %v653
        %v692 = vpop.f32.mrf.mxu0
        %v693 = vadd.f32 0.0, %v692
        %v694 = vpop.f32.mrf.mxu0
        %v695 = vpop.f32.mrf.mxu0
        %v696 = vpop.f32.mrf.mxu0
        %697 = vdwg.mxu0
        %v698 = vmul.f32 %v693, 0.25
        %vm699 = vcmask 64512
        %v700 = vsel %vm699, %v698, -inf
        %701 = vmax.xlane.f32.xlu0 %v700
        %v702 = vpop.xlane.xlu0 %701
        %v703 = vsub.f32 %v698, %v702
        %v704 = vmul.f32 %v703, 1.442695
        %v705 = vpow.pop %v704
        %v706 = vsel %vm699, %v705, 0.0
        %707 = vadd.xlane.f32.xlu0 %v706
        %v708 = vpop.xlane.xlu0 %707
        %v709 = vrcp.pop %v708
        %v710 = vmul.f32 %v705, %v709
        %v711 = vpack.c.bf16 %v710, %v710
        %712 = vrot.lane.b32.xlu0 %v646, 64
        %v713 = vpop.permute.xlu0 %712
        %v715 = vsel %vm699, %v711, 0
        %vm717 = vcmask 1043456
        %v719 = vsel %vm717, %v713, 0
        %721 = vmatprep.subr.bf16.mxu0 0
        %722 = vmatpush1.bf16.msra.mxu0 0
        %723 = vmatprep.subr.bf16.mxu0 0
        %724 = vmatpush1.bf16.msra.mxu0 0
        %725 = vmatprep.subr.bf16.mxu0 0
        %726 = vmatpush1.bf16.msra.mxu0 0
        %727 = vmatprep.subr.bf16.mxu0 0
        %728 = vmatpush1.bf16.msra.mxu0 0
        %729 = vmatprep.subr.bf16.mxu0 0
        %730 = vmatpush1.bf16.msra.mxu0 0
        %731 = vmatprep.subr.bf16.mxu0 0
        %732 = vmatpush1.bf16.msra.mxu0 0
        %733 = vmatprep.subr.bf16.mxu0 0
        %734 = vmatpush1.bf16.msra.mxu0 0
        %735 = vmatprep.subr.bf16.mxu0 0
        %736 = vmatpush1.bf16.msra.mxu0 %v719
        %737 = vmatprep.subr.bf16.mxu0 0
        %738 = vmatpush2.bf16.msra.mxu0 0
        %739 = vmatprep.subr.bf16.mxu0 0
        %740 = vmatpush2.bf16.msra.mxu0 0
        %741 = vmatprep.subr.bf16.mxu0 0
        %742 = vmatpush2.bf16.msra.mxu0 0
        %743 = vmatprep.subr.bf16.mxu0 0
        %744 = vmatpush2.bf16.msra.mxu0 0
        %745 = vmatprep.subr.bf16.mxu0 0
        %746 = vmatpush2.bf16.msra.mxu0 0
        %747 = vmatprep.subr.bf16.mxu0 0
        %748 = vmatpush2.bf16.msra.mxu0 0
        %749 = vmatprep.subr.bf16.mxu0 0
        %750 = vmatpush2.bf16.msra.mxu0 0
        %751 = vmatprep.subr.bf16.mxu0 0
        %752 = vmatpush2.bf16.msra.mxu0 0
        %753 = vmatprep.mubr.bf16.mxu0 0
        %754 = vmatmul.mubr.bf16.gmra.mxu0 %v715
        %v755 = vpop.f32.mrf.mxu0
        %v756 = vadd.f32 0.0, %v755
        %v757 = vpop.f32.mrf.mxu0
        %v758 = vpop.f32.mrf.mxu0
        %v759 = vpop.f32.mrf.mxu0
        %760 = vdwg.mxu0
        %v761 = vld [vmem:[#allocation8] sm:$0xf]
        %v762 = vld [vmem:[#allocation8 + $0x4] sm:$0xf]
        %v763 = vpack.c.bf16 %v756, %v756
        %v766 = vunpack.c.l.b16 %v761
        %v767 = vunpack.c.l.b16 %v762
        %v768 = vpack.c.b16 %v767, %v766
        %v771 = vsel %vm651, %v763, 0
        %773 = vmatprep.subr.bf16.mxu0 0
        %774 = vmatpush1.bf16.msra.mxu0 0
        %775 = vmatprep.subr.bf16.mxu0 0
        %776 = vmatpush1.bf16.msra.mxu0 0
        %777 = vmatprep.subr.bf16.mxu0 0
        %778 = vmatpush1.bf16.msra.mxu0 0
        %779 = vmatprep.subr.bf16.mxu0 0
        %780 = vmatpush1.bf16.msra.mxu0 0
        %781 = vmatprep.subr.bf16.mxu0 0
        %782 = vmatpush1.bf16.msra.mxu0 0
        %783 = vmatprep.subr.bf16.mxu0 0
        %784 = vmatpush1.bf16.msra.mxu0 0
        %785 = vmatprep.subr.bf16.mxu0 0
        %786 = vmatpush1.bf16.msra.mxu0 0
        %787 = vmatprep.subr.bf16.mxu0 0
        %788 = vmatpush1.bf16.msra.mxu0 %v768
        %789 = vmatprep.subr.bf16.mxu0 0
        %790 = vmatpush2.bf16.msra.mxu0 0
        %791 = vmatprep.subr.bf16.mxu0 0
        %792 = vmatpush2.bf16.msra.mxu0 0
        %793 = vmatprep.subr.bf16.mxu0 0
        %794 = vmatpush2.bf16.msra.mxu0 0
        %795 = vmatprep.subr.bf16.mxu0 0
        %796 = vmatpush2.bf16.msra.mxu0 0
        %797 = vmatprep.subr.bf16.mxu0 0
        %798 = vmatpush2.bf16.msra.mxu0 0
        %799 = vmatprep.subr.bf16.mxu0 0
        %800 = vmatpush2.bf16.msra.mxu0 0
        %801 = vmatprep.subr.bf16.mxu0 0
        %802 = vmatpush2.bf16.msra.mxu0 0
        %803 = vmatprep.subr.bf16.mxu0 0
        %804 = vmatpush2.bf16.msra.mxu0 0
        %805 = vmatprep.mubr.bf16.mxu0 0
        %806 = vmatmul.mubr.bf16.gmra.mxu0 %v771
        %v807 = vpop.f32.mrf.mxu0
        %v808 = vadd.f32 0.0, %v807
        %v809 = vpop.f32.mrf.mxu0
        %v810 = vpop.f32.mrf.mxu0
        %v811 = vpop.f32.mrf.mxu0
        %812 = vdwg.mxu0
        %v814 = vlaneseq
        %v815 = vshrl.u32 %v814, 7
        %v816 = vsub.s32 0, %v815
        %v817 = vrot.slane %v647, %v816
        %v819 = vadd.f32 %v817, %v808
        %820 = vrot.lane.b32.xlu0 %v646, 112
        %v821 = vpop.permute.xlu0 %820
        %822 = vrot.lane.b32.xlu0 %v646, 80
        %v823 = vpop.permute.xlu0 %822
        %v825 = vsel %vm651, %v821, 0
        %v828 = vsel %vm651, %v823, 0
        %830 = vmatprep.subr.bf16.mxu0 0
        %831 = vmatpush1.bf16.xpose.msra.mxu0 0
        %832 = vmatprep.subr.bf16.mxu0 0
        %833 = vmatpush1.bf16.xpose.msra.mxu0 0
        %834 = vmatprep.subr.bf16.mxu0 0
        %835 = vmatpush1.bf16.xpose.msra.mxu0 0
        %836 = vmatprep.subr.bf16.mxu0 0
        %837 = vmatpush1.bf16.xpose.msra.mxu0 0
        %838 = vmatprep.subr.bf16.mxu0 0
        %839 = vmatpush1.bf16.xpose.msra.mxu0 0
        %840 = vmatprep.subr.bf16.mxu0 0
        %841 = vmatpush1.bf16.xpose.msra.mxu0 0
        %842 = vmatprep.subr.bf16.mxu0 0
        %843 = vmatpush1.bf16.xpose.msra.mxu0 0
        %844 = vmatprep.subr.bf16.mxu0 0
        %845 = vmatpush1.bf16.xpose.msra.mxu0 %v828
        %846 = vmatprep.subr.bf16.mxu0 0
        %847 = vmatpush2.bf16.xpose.msra.mxu0 0
        %848 = vmatprep.subr.bf16.mxu0 0
        %849 = vmatpush2.bf16.xpose.msra.mxu0 0
        %850 = vmatprep.subr.bf16.mxu0 0
        %851 = vmatpush2.bf16.xpose.msra.mxu0 0
        %852 = vmatprep.subr.bf16.mxu0 0
        %853 = vmatpush2.bf16.xpose.msra.mxu0 0
        %854 = vmatprep.subr.bf16.mxu0 0
        %855 = vmatpush2.bf16.xpose.msra.mxu0 0
        %856 = vmatprep.subr.bf16.mxu0 0
        %857 = vmatpush2.bf16.xpose.msra.mxu0 0
        %858 = vmatprep.subr.bf16.mxu0 0
        %859 = vmatpush2.bf16.xpose.msra.mxu0 0
        %860 = vmatprep.subr.bf16.mxu0 0
        %861 = vmatpush2.bf16.xpose.msra.mxu0 0
        %862 = vmatprep.mubr.bf16.mxu0 0
        %863 = vmatmul.mubr.bf16.gmra.mxu0 %v825
        %v864 = vpop.f32.mrf.mxu0
        %v865 = vadd.f32 0.0, %v864
        %v866 = vpop.f32.mrf.mxu0
        %v867 = vpop.f32.mrf.mxu0
        %v868 = vpop.f32.mrf.mxu0
        %869 = vdwg.mxu0
        %v870 = vmul.f32 %v865, 0.25
        %v871 = vsel %vm699, %v870, -inf
        %872 = vmax.xlane.f32.xlu0 %v871
        %v873 = vpop.xlane.xlu0 %872
        %v874 = vsub.f32 %v870, %v873
        %v875 = vmul.f32 %v874, 1.442695
        %v876 = vpow.pop %v875
        %v877 = vsel %vm699, %v876, 0.0
        %878 = vadd.xlane.f32.xlu0 %v877
        %v879 = vpop.xlane.xlu0 %878
        %v880 = vrcp.pop %v879
        %v881 = vmul.f32 %v876, %v880
        %v882 = vpack.c.bf16 %v881, %v881
        %883 = vrot.lane.b32.xlu0 %v646, 48
        %v884 = vpop.permute.xlu0 %883
        %v886 = vsel %vm699, %v882, 0
        %v889 = vsel %vm717, %v884, 0
        %891 = vmatprep.subr.bf16.mxu0 0
        %892 = vmatpush1.bf16.msra.mxu0 0
        %893 = vmatprep.subr.bf16.mxu0 0
        %894 = vmatpush1.bf16.msra.mxu0 0
        %895 = vmatprep.subr.bf16.mxu0 0
        %896 = vmatpush1.bf16.msra.mxu0 0
        %897 = vmatprep.subr.bf16.mxu0 0
        %898 = vmatpush1.bf16.msra.mxu0 0
        %899 = vmatprep.subr.bf16.mxu0 0
        %900 = vmatpush1.bf16.msra.mxu0 0
        %901 = vmatprep.subr.bf16.mxu0 0
        %902 = vmatpush1.bf16.msra.mxu0 0
        %903 = vmatprep.subr.bf16.mxu0 0
        %904 = vmatpush1.bf16.msra.mxu0 0
        %905 = vmatprep.subr.bf16.mxu0 0
        %906 = vmatpush1.bf16.msra.mxu0 %v889
        %907 = vmatprep.subr.bf16.mxu0 0
        %908 = vmatpush2.bf16.msra.mxu0 0
        %909 = vmatprep.subr.bf16.mxu0 0
        %910 = vmatpush2.bf16.msra.mxu0 0
        %911 = vmatprep.subr.bf16.mxu0 0
        %912 = vmatpush2.bf16.msra.mxu0 0
        %913 = vmatprep.subr.bf16.mxu0 0
        %914 = vmatpush2.bf16.msra.mxu0 0
        %915 = vmatprep.subr.bf16.mxu0 0
        %916 = vmatpush2.bf16.msra.mxu0 0
        %917 = vmatprep.subr.bf16.mxu0 0
        %918 = vmatpush2.bf16.msra.mxu0 0
        %919 = vmatprep.subr.bf16.mxu0 0
        %920 = vmatpush2.bf16.msra.mxu0 0
        %921 = vmatprep.subr.bf16.mxu0 0
        %922 = vmatpush2.bf16.msra.mxu0 0
        %923 = vmatprep.mubr.bf16.mxu0 0
        %924 = vmatmul.mubr.bf16.gmra.mxu0 %v886
        %v925 = vpop.f32.mrf.mxu0
        %v926 = vadd.f32 0.0, %v925
        %v927 = vpop.f32.mrf.mxu0
        %v928 = vpop.f32.mrf.mxu0
        %v929 = vpop.f32.mrf.mxu0
        %930 = vdwg.mxu0
        %v931 = vld [vmem:[#allocation8 + $0x8] sm:$0xf]
        %v932 = vld [vmem:[#allocation8 + $0xc] sm:$0xf]
        %v933 = vpack.c.bf16 %v926, %v926
        %v936 = vunpack.c.l.b16 %v931
        %v937 = vunpack.c.l.b16 %v932
        %v938 = vpack.c.b16 %v937, %v936
        %v941 = vsel %vm651, %v933, 0
        %943 = vmatprep.subr.bf16.mxu0 0
        %944 = vmatpush1.bf16.msra.mxu0 0
        %945 = vmatprep.subr.bf16.mxu0 0
        %946 = vmatpush1.bf16.msra.mxu0 0
        %947 = vmatprep.subr.bf16.mxu0 0
        %948 = vmatpush1.bf16.msra.mxu0 0
        %949 = vmatprep.subr.bf16.mxu0 0
        %950 = vmatpush1.bf16.msra.mxu0 0
        %951 = vmatprep.subr.bf16.mxu0 0
        %952 = vmatpush1.bf16.msra.mxu0 0
        %953 = vmatprep.subr.bf16.mxu0 0
        %954 = vmatpush1.bf16.msra.mxu0 0
        %955 = vmatprep.subr.bf16.mxu0 0
        %956 = vmatpush1.bf16.msra.mxu0 0
        %957 = vmatprep.subr.bf16.mxu0 0
        %958 = vmatpush1.bf16.msra.mxu0 %v938
        %959 = vmatprep.subr.bf16.mxu0 0
        %960 = vmatpush2.bf16.msra.mxu0 0
        %961 = vmatprep.subr.bf16.mxu0 0
        %962 = vmatpush2.bf16.msra.mxu0 0
        %963 = vmatprep.subr.bf16.mxu0 0
        %964 = vmatpush2.bf16.msra.mxu0 0
        %965 = vmatprep.subr.bf16.mxu0 0
        %966 = vmatpush2.bf16.msra.mxu0 0
        %967 = vmatprep.subr.bf16.mxu0 0
        %968 = vmatpush2.bf16.msra.mxu0 0
        %969 = vmatprep.subr.bf16.mxu0 0
        %970 = vmatpush2.bf16.msra.mxu0 0
        %971 = vmatprep.subr.bf16.mxu0 0
        %972 = vmatpush2.bf16.msra.mxu0 0
        %973 = vmatprep.subr.bf16.mxu0 0
        %974 = vmatpush2.bf16.msra.mxu0 0
        %975 = vmatprep.mubr.bf16.mxu0 0
        %976 = vmatmul.mubr.bf16.gmra.mxu0 %v941
        %v977 = vpop.f32.mrf.mxu0
        %v978 = vadd.f32 0.0, %v977
        %v979 = vpop.f32.mrf.mxu0
        %v980 = vpop.f32.mrf.mxu0
        %v981 = vpop.f32.mrf.mxu0
        %982 = vdwg.mxu0
        %v983 = vadd.f32 %v819, %v978
        %v984 = vld [vmem:[%s6] sm:$0xf]
        %v985 = vld [vmem:[%s6 + $0x4] sm:$0xf]
        %v986 = vld [vmem:[%s6 + $0x8] sm:$0xf]
        %v987 = vld [vmem:[%s6 + $0xc] sm:$0xf]
        %v988 = vpack.c.bf16 %v983, %v983
        %v989 = vld [vmem:[#allocation11] sm:$0x1]
        %v991 = vlaneseq
        %v992 = vshrl.u32 %v991, 7
        %v993 = vsub.s32 0, %v992
        %v994 = vrot.slane %v989, %v993
        %v1000 = vunpack.c.l.b16 %v984
        %v1001 = vunpack.c.l.b16 %v985
        %v1002 = vunpack.c.l.b16 %v986
        %v1003 = vunpack.c.l.b16 %v987
        %v1004 = vpack.c.b16 %v1001, %v1000
        %v1005 = vpack.c.b16 %v1003, %v1002
        %v1009 = vsel %vm602, %v988, 0
        %1011 = vmatprep.subr.bf16.mxu0 0
        %1012 = vmatpush1.bf16.msra.mxu0 0
        %1013 = vmatprep.subr.bf16.mxu0 0
        %1014 = vmatpush1.bf16.msra.mxu0 0
        %1015 = vmatprep.subr.bf16.mxu0 0
        %1016 = vmatpush1.bf16.msra.mxu0 0
        %1017 = vmatprep.subr.bf16.mxu0 0
        %1018 = vmatpush1.bf16.msra.mxu0 0
        %1019 = vmatprep.subr.bf16.mxu0 0
        %1020 = vmatpush1.bf16.msra.mxu0 0
        %1021 = vmatprep.subr.bf16.mxu0 0
        %1022 = vmatpush1.bf16.msra.mxu0 0
        %1023 = vmatprep.subr.bf16.mxu0 0
        %1024 = vmatpush1.bf16.msra.mxu0 %v1005
        %1025 = vmatprep.subr.bf16.mxu0 0
        %1026 = vmatpush1.bf16.msra.mxu0 %v1004
        %1027 = vmatprep.subr.bf16.mxu0 0
        %1028 = vmatpush2.bf16.msra.mxu0 0
        %1029 = vmatprep.subr.bf16.mxu0 0
        %1030 = vmatpush2.bf16.msra.mxu0 0
        %1031 = vmatprep.subr.bf16.mxu0 0
        %1032 = vmatpush2.bf16.msra.mxu0 0
        %1033 = vmatprep.subr.bf16.mxu0 0
        %1034 = vmatpush2.bf16.msra.mxu0 0
        %1035 = vmatprep.subr.bf16.mxu0 0
        %1036 = vmatpush2.bf16.msra.mxu0 0
        %1037 = vmatprep.subr.bf16.mxu0 0
        %1038 = vmatpush2.bf16.msra.mxu0 0
        %1039 = vmatprep.subr.bf16.mxu0 0
        %1040 = vmatpush2.bf16.msra.mxu0 0
        %1041 = vmatprep.subr.bf16.mxu0 0
        %1042 = vmatpush2.bf16.msra.mxu0 0
        %1043 = vmatprep.mubr.bf16.mxu0 0
        %1044 = vmatmul.mubr.bf16.gmra.mxu0 %v1009
        %v1045 = vpop.f32.mrf.mxu0
        %v1046 = vadd.f32 %v994, %v1045
        %v1047 = vpop.f32.mrf.mxu0
        %v1048 = vpop.f32.mrf.mxu0
        %v1049 = vpop.f32.mrf.mxu0
        %1050 = vdwg.mxu0
        %vm1051 = vcmask 540160
        %v1052 = vsel %vm1051, %v1046, -inf
        %1053 = vmax.xlane.f32.xlu0 %v1052
        %v1054 = vpop.xlane.xlu0 %1053
        %v1055 = vsub.f32 %v1046, %v1054
        %v1056 = vmul.f32 %v1055, 1.442695
        %v1057 = vpow.pop %v1056
        %1059 = vrot.lane.b32.xlu0 %v1057, 64
        %v1060 = vpop.permute.xlu0 %1059
        %vm1062 = vcmask 15360
        %v1063 = vsel %vm1062, %v1060, 0.0
        %1064 = vadd.xlane.f32.xlu0 %v1063
        %v1065 = vpop.xlane.xlu0 %1064
        %v1066 = vrcp.pop %v1065
        %v1067 = vmul.f32 %v1057, %v1066
        %1069 = vset.pattern.permute.xlu0 64
        %1070 = vperm.xlu0 %1069, %v1067
        %v1071 = vpop.permute.xlu0 %1070
        %v1073 = vmul.f32 %v1071, %v1046
        %1074 = vset.pattern.permute.xlu0 65
        %1075 = vperm.xlu0 %1074, %v1067
        %v1076 = vpop.permute.xlu0 %1075
        %v1078 = vmul.f32 %v1076, %v1046
        %1080 = vrot.lane.b32.xlu0 %v1078, 96
        %v1081 = vpop.permute.xlu0 %1080
        %v1083 = vadd.f32 %v1073, %v1081
        %v1084 = vsel %vm602, %v1083, 0.0
        %1085 = vadd.xlane.f32.xlu0 %v1084
        %v1086 = vpop.xlane.xlu0 %1085
        %v1087 = vrcp.pop 32.0
        %v1088 = vmul.f32 %v1086, %v1087
        %v1089 = vsub.f32 %v1083, %v1088
        %v1090 = vmul.f32 %v1089, %v1089
        %v1091 = vsel %vm602, %v1090, 0.0
        %1092 = vadd.xlane.f32.xlu0 %v1091
        %v1093 = vpop.xlane.xlu0 %1092
        %v1094 = vmul.f32 %v1093, %v1087
        %v1095 = vadd.f32 %v1094, 1e-05
        %v1096 = vrsqrt.pop %v1095
        %v1097 = vmul.f32 %v1089, %v1096
        %v1098 = vld [vmem:[#allocation13] sm:$0x1]
        %v1100 = vlaneseq
        %v1101 = vshrl.u32 %v1100, 7
        %v1102 = vsub.s32 0, %v1101
        %v1103 = vrot.slane %v1098, %v1102
        %v1105 = vmul.f32 %v1097, %v1103
        %v1106 = vld [vmem:[#allocation14] sm:$0x1]
        %v1108 = vlaneseq
        %v1109 = vshrl.u32 %v1108, 7
        %v1110 = vsub.s32 0, %v1109
        %v1111 = vrot.slane %v1106, %v1110
        %v1113 = vadd.f32 %v1105, %v1111
        %v1114 = vld [vmem:[%s10] sm:$0xf]
        %v1115 = vld [vmem:[%s10 + $0x4] sm:$0xf]
        %v1116 = vld [vmem:[%s10 + $0x8] sm:$0xf]
        %v1117 = vld [vmem:[%s10 + $0xc] sm:$0xf]
        %v1118 = vpack.c.bf16 %v1113, %v1113
        %v1119 = vld [vmem:[%s11] sm:$0x1]
        %v1121 = vlaneseq
        %v1122 = vshrl.u32 %v1121, 7
        %v1123 = vsub.s32 0, %v1122
        %v1124 = vrot.slane %v1119, %v1123
        %v1130 = vunpack.c.l.b16 %v1114
        %v1131 = vunpack.c.l.b16 %v1115
        %v1132 = vunpack.c.l.b16 %v1116
        %v1133 = vunpack.c.l.b16 %v1117
        %v1134 = vpack.c.b16 %v1131, %v1130
        %v1135 = vpack.c.b16 %v1133, %v1132
        %v1139 = vsel %vm602, %v1118, 0
        %1141 = vmatprep.subr.bf16.mxu0 0
        %1142 = vmatpush1.bf16.msra.mxu0 0
        %1143 = vmatprep.subr.bf16.mxu0 0
        %1144 = vmatpush1.bf16.msra.mxu0 0
        %1145 = vmatprep.subr.bf16.mxu0 0
        %1146 = vmatpush1.bf16.msra.mxu0 0
        %1147 = vmatprep.subr.bf16.mxu0 0
        %1148 = vmatpush1.bf16.msra.mxu0 0
        %1149 = vmatprep.subr.bf16.mxu0 0
        %1150 = vmatpush1.bf16.msra.mxu0 0
        %1151 = vmatprep.subr.bf16.mxu0 0
        %1152 = vmatpush1.bf16.msra.mxu0 0
        %1153 = vmatprep.subr.bf16.mxu0 0
        %1154 = vmatpush1.bf16.msra.mxu0 %v1135
        %1155 = vmatprep.subr.bf16.mxu0 0
        %1156 = vmatpush1.bf16.msra.mxu0 %v1134
        %1157 = vmatprep.subr.bf16.mxu0 0
        %1158 = vmatpush2.bf16.msra.mxu0 0
        %1159 = vmatprep.subr.bf16.mxu0 0
        %1160 = vmatpush2.bf16.msra.mxu0 0
        %1161 = vmatprep.subr.bf16.mxu0 0
        %1162 = vmatpush2.bf16.msra.mxu0 0
        %1163 = vmatprep.subr.bf16.mxu0 0
        %1164 = vmatpush2.bf16.msra.mxu0 0
        %1165 = vmatprep.subr.bf16.mxu0 0
        %1166 = vmatpush2.bf16.msra.mxu0 0
        %1167 = vmatprep.subr.bf16.mxu0 0
        %1168 = vmatpush2.bf16.msra.mxu0 0
        %1169 = vmatprep.subr.bf16.mxu0 0
        %1170 = vmatpush2.bf16.msra.mxu0 0
        %1171 = vmatprep.subr.bf16.mxu0 0
        %1172 = vmatpush2.bf16.msra.mxu0 0
        %1173 = vmatprep.mubr.bf16.mxu0 0
        %1174 = vmatmul.mubr.bf16.gmra.mxu0 %v1139
        %v1175 = vpop.f32.mrf.mxu0
        %v1176 = vadd.f32 %v1124, %v1175
        %v1177 = vpop.f32.mrf.mxu0
        %v1178 = vpop.f32.mrf.mxu0
        %v1179 = vpop.f32.mrf.mxu0
        %1180 = vdwg.mxu0
        %v1181 = vmax.f32 %v1176, 0.0
        %v1182 = vld [vmem:[%s12] sm:$0xf]
        %v1183 = vld [vmem:[%s12 + $0x4] sm:$0xf]
        %v1184 = vpack.c.bf16 %v1181, %v1181
        %v1185 = vld [vmem:[%s13] sm:$0x1]
        %v1187 = vlaneseq
        %v1188 = vshrl.u32 %v1187, 7
        %v1189 = vsub.s32 0, %v1188
        %v1190 = vrot.slane %v1185, %v1189
        %v1194 = vunpack.c.l.b16 %v1182
        %v1195 = vunpack.c.l.b16 %v1183
        %v1196 = vpack.c.b16 %v1195, %v1194
        %v1199 = vsel %vm651, %v1184, 0
        %1201 = vmatprep.subr.bf16.mxu0 0
        %1202 = vmatpush1.bf16.msra.mxu0 0
        %1203 = vmatprep.subr.bf16.mxu0 0
        %1204 = vmatpush1.bf16.msra.mxu0 0
        %1205 = vmatprep.subr.bf16.mxu0 0
        %1206 = vmatpush1.bf16.msra.mxu0 0
        %1207 = vmatprep.subr.bf16.mxu0 0
        %1208 = vmatpush1.bf16.msra.mxu0 0
        %1209 = vmatprep.subr.bf16.mxu0 0
        %1210 = vmatpush1.bf16.msra.mxu0 0
        %1211 = vmatprep.subr.bf16.mxu0 0
        %1212 = vmatpush1.bf16.msra.mxu0 0
        %1213 = vmatprep.subr.bf16.mxu0 0
        %1214 = vmatpush1.bf16.msra.mxu0 0
        %1215 = vmatprep.subr.bf16.mxu0 0
        %1216 = vmatpush1.bf16.msra.mxu0 %v1196
        %1217 = vmatprep.subr.bf16.mxu0 0
        %1218 = vmatpush2.bf16.msra.mxu0 0
        %1219 = vmatprep.subr.bf16.mxu0 0
        %1220 = vmatpush2.bf16.msra.mxu0 0
        %1221 = vmatprep.subr.bf16.mxu0 0
        %1222 = vmatpush2.bf16.msra.mxu0 0
        %1223 = vmatprep.subr.bf16.mxu0 0
        %1224 = vmatpush2.bf16.msra.mxu0 0
        %1225 = vmatprep.subr.bf16.mxu0 0
        %1226 = vmatpush2.bf16.msra.mxu0 0
        %1227 = vmatprep.subr.bf16.mxu0 0
        %1228 = vmatpush2.bf16.msra.mxu0 0
        %1229 = vmatprep.subr.bf16.mxu0 0
        %1230 = vmatpush2.bf16.msra.mxu0 0
        %1231 = vmatprep.subr.bf16.mxu0 0
        %1232 = vmatpush2.bf16.msra.mxu0 0
        %1233 = vmatprep.mubr.bf16.mxu0 0
        %1234 = vmatmul.mubr.bf16.gmra.mxu0 %v1199
        %v1235 = vpop.f32.mrf.mxu0
        %v1236 = vadd.f32 %v1190, %v1235
        %v1237 = vpop.f32.mrf.mxu0
        %v1238 = vpop.f32.mrf.mxu0
        %v1239 = vpop.f32.mrf.mxu0
        %1240 = vdwg.mxu0
        %1241 = vxpose.xlu0.b32.start [1/16] %v1236, 128
        %1242 = vxpose.xlu0.b32.cont [2/16] 0.0, 128
        %1243 = vxpose.xlu0.b32.cont [3/16] 0.0, 128
        %1244 = vxpose.xlu0.b32.cont [4/16] 0.0, 128
        %1245 = vxpose.xlu0.b32.cont [5/16] 0.0, 128
        %1246 = vxpose.xlu0.b32.cont [6/16] 0.0, 128
        %1247 = vxpose.xlu0.b32.cont [7/16] 0.0, 128
        %1248 = vxpose.xlu0.b32.cont [8/16] 0.0, 128
        %1249 = vxpose.xlu0.b32.cont [9/16] 0.0, 128
        %1250 = vxpose.xlu0.b32.cont [10/16] 0.0, 128
        %1251 = vxpose.xlu0.b32.cont [11/16] 0.0, 128
        %1252 = vxpose.xlu0.b32.cont [12/16] 0.0, 128
        %1253 = vxpose.xlu0.b32.cont [13/16] 0.0, 128
        %1254 = vxpose.xlu0.b32.cont [14/16] 0.0, 128
        %1255 = vxpose.xlu0.b32.cont [15/16] 0.0, 128
        %1256 = vxpose.xlu0.b32.end [16/16] 0.0, 128
        %v1257 = vpop.trf.xlu0
        %v1258 = vpop.trf.xlu0
        %v1259 = vpop.trf.xlu0
        %v1260 = vpop.trf.xlu0
        %v1261 = vpop.trf.xlu0
        %v1262 = vpop.trf.xlu0
        %v1263 = vpop.trf.xlu0
        %v1264 = vpop.trf.xlu0
        %v1265 = vpop.trf.xlu0
        %v1266 = vpop.trf.xlu0
        %v1267 = vpop.trf.xlu0
        %v1268 = vpop.trf.xlu0
        %v1269 = vpop.trf.xlu0
        %v1270 = vpop.trf.xlu0
        %v1271 = vpop.trf.xlu0
        %v1272 = vpop.trf.xlu0
        %vm1273 = vcmask 58368
        %1274 = vst.msk [vmem:[%s572] sm:$0x3] %vm1273, %v1257
        %s1275 = sand.u32 %s342, 1
        %s1276 = scalar_lea.sflag [#allocation4], %s1275
        %s1277 = sand.u32 %s342, 1
        %s1278 = smul.addr %s1277, 2
        %s1279 = scalar_lea.vmem [#allocation16], %s1278
        // Predicated region
        $region109: #{tpu_custom_call.1} parent=75 // pred_check
          %p1280 = pneg %p352
        $region110: #{tpu_custom_call.1} parent=75 // pred_check_branch
          %1282 = sbr.rel (%p1280) target = $region112
        $region111: #{tpu_custom_call.1} parent=75 // pred_region
          %s1284 = ssub.s32 32, 32
          %1285 = vsyncadd %s1276, %s1284
          %s1286 = smul.addr %s35, 32
          %s1287 = scalar_lea.hbm %s14, %s1286
          %s1289 = sshll.u32 %s1279, 4
          %s1290 = int_to_ptr.vmem [resolvable:$true] %s1289
          %1292 = dma.vmem_to_hbm [thread:$0]  %s1290, 32, %s1287, %s1276
        $region112: #{tpu_custom_call.1} parent=75 // pred_fallthru
          _
      $region76: #{tpu_custom_call.1} parent=5 // pred_fallthru
        _
      %p1293 = scmp.le.s32.totalorder 2, %s30
      // Predicated region
      $region113: #{tpu_custom_call.1} parent=5 // pred_check
        %p1294 = pneg %p1293
      $region114: #{tpu_custom_call.1} parent=5 // pred_check_branch
        %1296 = sbr.rel (%p1294) target = $region116
      $region115: #{tpu_custom_call.1} parent=5 // pred_region
        %s1297 = ssub.s32 %s30, 2
        // Predicated region
        $region117: #{tpu_custom_call.1} parent=115 // pred_check
          %p1298 = pneg %p358
        $region118: #{tpu_custom_call.1} parent=115 // pred_check_branch
          %1300 = sbr.rel (%p1298) target = $region120
        $region119: #{tpu_custom_call.1} parent=115 // pred_region
          %s1301 = sand.u32 %s343, 1
          %s1302 = scalar_lea.sflag [#allocation4], %s1301
          %s1303 = sand.u32 %s343, 1
          %s1304 = smul.addr %s1303, 2
          %s1305 = scalar_lea.vmem [#allocation16], %s1304
          %1306 = dma.done %s1302, 32
        $region120: #{tpu_custom_call.1} parent=115 // pred_fallthru
          _
      $region116: #{tpu_custom_call.1} parent=5 // pred_fallthru
        _
    $region6: #{tpu_custom_call.1} parent=1 // loop_footer
      %s34 = sadd.s32 1, %s30
    $region7: #{tpu_custom_call.1} parent=1 // loop_footer_branch
      %29 = sbr.rel target = $region3
    $region8: #{tpu_custom_call.1} parent=1 // loop_exit
      _
    %1307 = vsyncpa [#allocation3], 1
    %s1308 = scalar_lea.sflag [#allocation3], 1
    %1309 = vsyncpa %s1308, 1
    %1310 = vsyncpa [#allocation6], 1
    %1311 = vsyncpa [#allocation9], 1
    %1312 = vsyncpa [#allocation12], 1
    %1313 = vsyncpa [#allocation15], 1
    %1314 = vsyncpa [#allocation4], 1
    %s1315 = scalar_lea.sflag [#allocation4], 1
    %1316 = vsyncpa %s1315, 1

</llo_original>
